<compile_context>
chip_gen: v5e
topology: v5e:2x2
jax: 0.10.0
libtpu: 0.0.40
codegen_flags: <defaults>
</compile_context>

<pallas_src>
import math
import numpy as np
import jax
import jax.numpy as jnp
from jax import lax
from jax.experimental import pallas as pl
from jax.experimental.pallas import tpu as pltpu

# ---------------- static config ----------------
B = 2
TIME_LEN = 8
JOINT_NUM = 22           # joints per frame (attention domain)
JP = 24                  # joints padded up to a multiple of the 8-sublane tile
PE_JOINT_NUM = 68        # PositionalEncoding hard-codes joint_num = 68
S = TIME_LEN * JOINT_NUM             # 176 real tokens
SP = TIME_LEN * JP                   # 192 padded tokens
D_IN = 32                            # input_size
D_OUT = 32                           # output_size
H_NUM = 2
H_DIM = 8
H_TOT = H_NUM * H_DIM                # 16
EPS = 1e-6
NEG_BIG = -9e15


# ---------------- Pallas kernel ----------------
def transformer_layer_kernel(x_ref, pe_ref, wqkv_ref, bqkv_ref, wo_ref,
                             aff_ref, o_ref):
    # x_ref / o_ref: (SP, D) padded-token slab for ONE batch element.
    # Frame t occupies the sublane-aligned row range [24t, 24t+24); rows 22,23
    # of each frame are zero padding and are sliced away by the wrapper.
    x = x_ref[...] + pe_ref[...]                                   # PE add

    # Fused Q|K|V projection: one MXU matmul over the whole 192-row slab.
    # 1/sqrt(h_dim) is folded into the Q columns; Dropout = identity.
    qkv = jnp.dot(x, wqkv_ref[...],
                  preferred_element_type=jnp.float32) + bqkv_ref[...]

    wo = wo_ref[...]                                   # (H_TOT, D_OUT)
    wo_h = [wo[h * H_DIM:(h + 1) * H_DIM, :] for h in range(H_NUM)]
    bo = aff_ref[0:1, :]                               # ft_map bias
    a2 = aff_ref[1:2, :]                               # LayerNorm gamma
    b2 = aff_ref[2:3, :]                               # LayerNorm beta

    # Mask for the 2 padded key columns of every frame (hoisted, 3 vregs).
    pad_key = lax.broadcasted_iota(jnp.int32, (JP, JP), 1) >= JOINT_NUM

    # Block-diagonal attention: every query only sees the keys of its own
    # 22-joint frame, so the score tile per (frame, head) is just (24, 24).
    for t in range(TIME_LEN):              # static unroll (8)
        r0 = t * JP
        acc = jnp.zeros((JP, D_OUT), jnp.float32)
        for h in range(H_NUM):             # static unroll (2)
            c0 = h * H_DIM
            qf = qkv[r0:r0 + JP, c0:c0 + H_DIM]                       # (24, 8)
            kf = qkv[r0:r0 + JP, H_TOT + c0:H_TOT + c0 + H_DIM]       # (24, 8)
            vf = jnp.maximum(
                qkv[r0:r0 + JP, 2 * H_TOT + c0:2 * H_TOT + c0 + H_DIM], 0.0)
            # Fold Wo into V: removes an MXU pass and the (.,8) intermediate.
            vwo = jnp.dot(vf, wo_h[h],
                          preferred_element_type=jnp.float32)         # (24, 32)
            # scores = (q / sqrt(h_dim)) @ k^T ; pad key columns -> -9e15
            s = lax.dot_general(qf, kf, (((1,), (1,)), ((), ())),
                                preferred_element_type=jnp.float32)   # (24, 24)
            s = jnp.where(pad_key, NEG_BIG, s)
            # softmax (deferred normalization)
            m = jnp.max(s, axis=-1, keepdims=True)
            p = jnp.exp(s - m)                                        # EUP
            l = jnp.sum(p, axis=-1, keepdims=True)
            # NOTE: approx=True would use the EUP rcp slot, but its ~2^-12
            # relative error breaks the 1e-4 test tolerance -> keep exact.
            pn = p * pl.reciprocal(l, approx=False)
            acc = acc + jnp.dot(pn, vwo, preferred_element_type=jnp.float32)

        # ft_map bias, LayerNorm (torch.std is UNBIASED; eps added to std),
        # ReLU, and an aligned per-frame store (no full-sequence accumulator).
        y = acc + bo
        mean = jnp.mean(y, axis=-1, keepdims=True)
        diff = y - mean
        var_u = jnp.sum(diff * diff, axis=-1, keepdims=True) * (1.0 / (D_OUT - 1))
        std = jnp.sqrt(var_u)
        z = a2 * diff / (std + EPS) + b2
        o_ref[pl.ds(r0, JP), :] = jnp.maximum(z, 0.0)


# ---------------- wrapper ----------------
def pad_frames(a):
    """(..., S, C) -> (..., SP, C): pad every 22-joint frame to 24 aligned rows."""
    lead, c = a.shape[:-2], a.shape[-1]
    a4 = a.reshape(lead + (TIME_LEN, JOINT_NUM, c))
    pad_cfg = [(0, 0)] * len(lead) + [(0, 0), (0, JP - JOINT_NUM), (0, 0)]
    return jnp.pad(a4, pad_cfg).reshape(lead + (SP, c))


def _transformer_layer(x, pe_pad, wqkv, bqkv, wo, aff):
    batch = x.shape[0]
    xp = pad_frames(x)                                   # (B, SP, D_IN)

    per_batch_in = pl.BlockSpec((None, SP, D_IN), lambda b: (b, 0, 0))
    per_batch_out = pl.BlockSpec((None, SP, D_OUT), lambda b: (b, 0, 0))

    def shared(shape):
        return pl.BlockSpec(shape, lambda b: (0,) * len(shape))

    out = pl.pallas_call(
        transformer_layer_kernel,
        out_shape=jax.ShapeDtypeStruct((batch, SP, D_OUT), jnp.float32),
        grid=(batch,),
        in_specs=[
            per_batch_in,                    # x (frame-padded)
            shared((SP, D_IN)),              # PE (frame-padded, shared)
            shared((D_IN, 3 * H_TOT)),       # Wq|Wk|Wv (1/sqrt(h_dim) in Q)
            shared((1, 3 * H_TOT)),          # bq|bk|bv
            shared((H_TOT, D_OUT)),          # Wo
            shared((3, D_OUT)),              # [bo; a_2; b_2]
        ],
        out_specs=per_batch_out,
        compiler_params=pltpu.CompilerParams(
            dimension_semantics=("parallel",)),   # v7x: one batch per TensorCore
    )(xp, pe_pad, wqkv, bqkv, wo, aff)

    # drop the 2 pad rows of each frame
    out = out.reshape(batch, TIME_LEN, JP, D_OUT)[:, :, :JOINT_NUM, :]
    return out.reshape(batch, S, D_OUT)


transformer_layer = jax.jit(_transformer_layer)


# ---------------- parameter / buffer construction (deterministic) ----------------
def make_positional_encoding():
    # domain == 'spatial': position index is the joint id within each frame,
    # PE table built with joint_num = 68, then sliced to the first S rows
    # (exactly what the PyTorch module does).
    pos_list = np.array([j for _ in range(TIME_LEN) for j in range(PE_JOINT_NUM)],
                        dtype=np.float32)
    position = pos_list[:, None]
    div_term = np.exp(np.arange(0, D_IN, 2, dtype=np.float32)
                      * (-(math.log(10000.0) / D_IN)))
    ang = position * div_term[None, :]
    pe = np.stack([np.sin(ang), np.cos(ang)], axis=-1).reshape(-1, D_IN)
    return jnp.asarray(pe[:S], dtype=jnp.float32)          # (S, D_IN)


def make_spatial_mask():
    # s_mask = 1 - t_mask = block-diagonal of 22x22 ones (within-frame attention)
    frame = np.arange(S) // JOINT_NUM
    mask = (frame[:, None] == frame[None, :]).astype(np.float32)
    return jnp.asarray(mask)


def make_constants(wq, bq, wk, bk, wv, bv, wo, bo, a2, b2):
    """Host-side one-time fusions, computed OUTSIDE the jitted hot path."""
    scale = 1.0 / math.sqrt(H_DIM)
    wqkv = jnp.concatenate([wq * scale, wk, wv], axis=1)    # (D_IN, 3*H_TOT)
    bqkv = jnp.concatenate([bq * scale, bk, bv], axis=1)    # (1, 3*H_TOT)
    aff = jnp.concatenate([bo, a2, b2], axis=0)             # (3, D_OUT)
    pe_pad = pad_frames(make_positional_encoding())         # (SP, D_IN)
    return pe_pad, wqkv, bqkv, aff


def make_params(key):
    ks = jax.random.split(key, 8)
    scale = 0.05
    wq = scale * jax.random.normal(ks[0], (D_IN, H_TOT), jnp.float32)
    bq = scale * jax.random.normal(ks[1], (1, H_TOT), jnp.float32)
    wk = scale * jax.random.normal(ks[2], (D_IN, H_TOT), jnp.float32)
    bk = scale * jax.random.normal(ks[3], (1, H_TOT), jnp.float32)
    wv = scale * jax.random.normal(ks[4], (D_IN, H_TOT), jnp.float32)
    bv = scale * jax.random.normal(ks[5], (1, H_TOT), jnp.float32)
    wo = scale * jax.random.normal(ks[6], (H_TOT, D_OUT), jnp.float32)
    bo = scale * jax.random.normal(ks[7], (1, D_OUT), jnp.float32)
    a2 = jnp.ones((1, D_OUT), jnp.float32)    # LayerNorm gamma
    b2 = jnp.zeros((1, D_OUT), jnp.float32)   # LayerNorm beta
    return wq, bq, wk, bk, wv, bv, wo, bo, a2, b2


# ---------------- pure-JAX reference (original, unfused formulation) ----------------
def reference(x, pe, wq, bq, wk, bk, wv, bv, wo, bo, mask, a2, b2):
    xp = x + pe[None]
    q = xp @ wq + bq
    k = xp @ wk + bk
    v = jax.nn.relu(xp @ wv + bv)

    def split_heads(t):
        return t.reshape(B, S, H_NUM, H_DIM).transpose(0, 2, 1, 3)

    qh, kh, vh = split_heads(q), split_heads(k), split_heads(v)
    scores = jnp.einsum('bhqd,bhkd->bhqk', qh, kh) / math.sqrt(H_DIM)
    scores = scores * mask + (1.0 - mask) * NEG_BIG
    p = jax.nn.softmax(scores, axis=-1)
    o = jnp.einsum('bhqk,bhkd->bhqd', p, vh).transpose(0, 2, 1, 3).reshape(B, S, H_TOT)
    y = o @ wo + bo
    mean = y.mean(-1, keepdims=True)
    std = jnp.sqrt(((y - mean) ** 2).sum(-1, keepdims=True) / (D_OUT - 1))
    z = a2 * (y - mean) / (std + EPS) + b2
    return jax.nn.relu(z)


if __name__ == "__main__":
    key = jax.random.PRNGKey(0)
    k_x, k_p = jax.random.split(key)

    x = jax.random.normal(k_x, (B, S, D_IN), jnp.float32)
    wq, bq, wk, bk, wv, bv, wo, bo, a2, b2 = make_params(k_p)
    pe_pad, wqkv, bqkv, aff = make_constants(wq, bq, wk, bk, wv, bv,
                                             wo, bo, a2, b2)

    out = transformer_layer(x, pe_pad, wqkv, bqkv, wo, aff)
    out = jax.block_until_ready(out)

    pe = make_positional_encoding()
    mask = make_spatial_mask()
    ref = reference(x, pe, wq, bq, wk, bk, wv, bv, wo, bo, mask, a2, b2)
    assert out.shape == (B, S, D_OUT)
    np.testing.assert_allclose(np.asarray(out), np.asarray(ref),
                               rtol=1e-4, atol=1e-4)

    print("KERNEL_OK")
</pallas_src>

<mosaic_0001>
module attributes {stable_mosaic.version = 11 : i64} {
  func.func @transformer_layer_kernel(%arg0: i32, %arg1: memref<1x192x32xf32, #tpu.memory_space<vmem>>, %arg2: memref<192x32xf32, #tpu.memory_space<vmem>>, %arg3: memref<32x48xf32, #tpu.memory_space<vmem>>, %arg4: memref<1x48xf32, #tpu.memory_space<vmem>>, %arg5: memref<16x32xf32, #tpu.memory_space<vmem>>, %arg6: memref<3x32xf32, #tpu.memory_space<vmem>>, %arg7: memref<1x192x32xf32, #tpu.memory_space<vmem>>) attributes {dimension_semantics = [#tpu.dimension_semantics<parallel>], iteration_bounds = array<i64: 2>, scalar_prefetch = 0 : i64, scratch_operands = 0 : i64, tpu.core_type = #tpu.core_type<tc>, window_params = [{transform_indices = @transform_0, window_bounds = array<i64: 1, 192, 32>}, {pipeline_mode = #tpu.pipeline_mode<synchronous>, transform_indices = @transform_1, window_bounds = array<i64: 192, 32>}, {pipeline_mode = #tpu.pipeline_mode<synchronous>, transform_indices = @transform_2, window_bounds = array<i64: 32, 48>}, {pipeline_mode = #tpu.pipeline_mode<synchronous>, transform_indices = @transform_3, window_bounds = array<i64: 1, 48>}, {pipeline_mode = #tpu.pipeline_mode<synchronous>, transform_indices = @transform_4, window_bounds = array<i64: 16, 32>}, {pipeline_mode = #tpu.pipeline_mode<synchronous>, transform_indices = @transform_5, window_bounds = array<i64: 3, 32>}, {transform_indices = @transform_6, window_bounds = array<i64: 1, 192, 32>}]} {
    %c0 = arith.constant 0 : index
    %c0_0 = arith.constant 0 : index
    %c0_1 = arith.constant 0 : index
    %0 = vector.load %arg1[%c0, %c0_0, %c0_1] : memref<1x192x32xf32, #tpu.memory_space<vmem>>, vector<1x192x32xf32>
    %1 = vector.shape_cast %0 : vector<1x192x32xf32> to vector<192x32xf32>
    %c0_2 = arith.constant 0 : index
    %c0_3 = arith.constant 0 : index
    %2 = vector.load %arg2[%c0_2, %c0_3] : memref<192x32xf32, #tpu.memory_space<vmem>>, vector<192x32xf32>
    %3 = arith.addf %1, %2 : vector<192x32xf32>
    %c0_4 = arith.constant 0 : index
    %c0_5 = arith.constant 0 : index
    %4 = vector.load %arg3[%c0_4, %c0_5] : memref<32x48xf32, #tpu.memory_space<vmem>>, vector<32x48xf32>
    %cst = arith.constant dense<0.000000e+00> : vector<192x48xf32>
    %5 = tpu.matmul %3, %4, %cst {dimension_numbers = #tpu.dot_dimension_numbers<[1], [0], [0], [1], [0, 0, 1, 1], [], []>} : vector<192x32xf32>, vector<32x48xf32>, vector<192x48xf32> -> vector<192x48xf32>
    %c0_6 = arith.constant 0 : index
    %c0_7 = arith.constant 0 : index
    %6 = vector.load %arg4[%c0_6, %c0_7] : memref<1x48xf32, #tpu.memory_space<vmem>>, vector<1x48xf32>
    %7 = vector.broadcast %6 : vector<1x48xf32> to vector<192x48xf32>
    %8 = arith.addf %5, %7 : vector<192x48xf32>
    %c0_8 = arith.constant 0 : index
    %c0_9 = arith.constant 0 : index
    %9 = vector.load %arg5[%c0_8, %c0_9] : memref<16x32xf32, #tpu.memory_space<vmem>>, vector<16x32xf32>
    %10 = vector.extract_strided_slice %9 {offsets = [0, 0], sizes = [8, 32], strides = [1, 1]} : vector<16x32xf32> to vector<8x32xf32>
    %11 = vector.extract_strided_slice %9 {offsets = [8, 0], sizes = [8, 32], strides = [1, 1]} : vector<16x32xf32> to vector<8x32xf32>
    %c0_10 = arith.constant 0 : index
    %c0_11 = arith.constant 0 : index
    %12 = vector.load %arg6[%c0_10, %c0_11] : memref<3x32xf32, #tpu.memory_space<vmem>>, vector<1x32xf32>
    %c1 = arith.constant 1 : index
    %c0_12 = arith.constant 0 : index
    %13 = vector.load %arg6[%c1, %c0_12] : memref<3x32xf32, #tpu.memory_space<vmem>>, vector<1x32xf32>
    %c2 = arith.constant 2 : index
    %c0_13 = arith.constant 0 : index
    %14 = vector.load %arg6[%c2, %c0_13] : memref<3x32xf32, #tpu.memory_space<vmem>>, vector<1x32xf32>
    %15 = tpu.iota {dimensions = array<i32: 1>} : vector<24x24xi32>
    %c22_i32 = arith.constant 22 : i32
    %16 = vector.broadcast %c22_i32 : i32 to vector<24x24xi32>
    %17 = arith.cmpi sge, %15, %16 : vector<24x24xi32>
    %cst_14 = arith.constant 0.000000e+00 : f32
    %18 = vector.broadcast %cst_14 : f32 to vector<24x32xf32>
    %19 = vector.extract_strided_slice %8 {offsets = [0, 0], sizes = [24, 8], strides = [1, 1]} : vector<192x48xf32> to vector<24x8xf32>
    %20 = vector.extract_strided_slice %8 {offsets = [0, 16], sizes = [24, 8], strides = [1, 1]} : vector<192x48xf32> to vector<24x8xf32>
    %21 = vector.extract_strided_slice %8 {offsets = [0, 32], sizes = [24, 8], strides = [1, 1]} : vector<192x48xf32> to vector<24x8xf32>
    %cst_15 = arith.constant 0.000000e+00 : f32
    %22 = vector.broadcast %cst_15 : f32 to vector<24x8xf32>
    %23 = arith.maximumf %21, %22 : vector<24x8xf32>
    %cst_16 = arith.constant dense<0.000000e+00> : vector<24x32xf32>
    %24 = tpu.matmul %23, %10, %cst_16 {dimension_numbers = #tpu.dot_dimension_numbers<[1], [0], [0], [1], [0, 0, 1, 1], [], []>} : vector<24x8xf32>, vector<8x32xf32>, vector<24x32xf32> -> vector<24x32xf32>
    %cst_17 = arith.constant dense<0.000000e+00> : vector<24x24xf32>
    %25 = tpu.matmul %19, %20, %cst_17 {dimension_numbers = #tpu.dot_dimension_numbers<[1], [1], [0], [0], [0, 0, 1, 0], [], []>} : vector<24x8xf32>, vector<24x8xf32>, vector<24x24xf32> -> vector<24x24xf32>
    %cst_18 = arith.constant -9.000000e+15 : f32
    %26 = vector.broadcast %cst_18 : f32 to vector<24x24xf32>
    %27 = arith.select %17, %26, %25 : vector<24x24xi1>, vector<24x24xf32>
    %cst_19 = arith.constant dense<0xFF800000> : vector<24xf32>
    %28 = vector.multi_reduction <maximumf>, %27, %cst_19 [1] : vector<24x24xf32> to vector<24xf32>
    %29 = vector.shape_cast %28 : vector<24xf32> to vector<24x1xf32>
    %30 = vector.broadcast %29 : vector<24x1xf32> to vector<24x24xf32>
    %31 = arith.subf %27, %30 : vector<24x24xf32>
    %32 = math.exp %31 : vector<24x24xf32>
    %cst_20 = arith.constant dense<0.000000e+00> : vector<24xf32>
    %33 = vector.multi_reduction <add>, %32, %cst_20 [1] : vector<24x24xf32> to vector<24xf32>
    %34 = vector.shape_cast %33 : vector<24xf32> to vector<24x1xf32>
    %35 = tpu.reciprocal %34 : vector<24x1xf32> -> vector<24x1xf32>
    %36 = vector.broadcast %35 : vector<24x1xf32> to vector<24x24xf32>
    %37 = arith.mulf %32, %36 : vector<24x24xf32>
    %cst_21 = arith.constant dense<0.000000e+00> : vector<24x32xf32>
    %38 = tpu.matmul %37, %24, %cst_21 {dimension_numbers = #tpu.dot_dimension_numbers<[1], [0], [0], [1], [0, 0, 1, 1], [], []>} : vector<24x24xf32>, vector<24x32xf32>, vector<24x32xf32> -> vector<24x32xf32>
    %39 = arith.addf %18, %38 : vector<24x32xf32>
    %40 = vector.extract_strided_slice %8 {offsets = [0, 8], sizes = [24, 8], strides = [1, 1]} : vector<192x48xf32> to vector<24x8xf32>
    %41 = vector.extract_strided_slice %8 {offsets = [0, 24], sizes = [24, 8], strides = [1, 1]} : vector<192x48xf32> to vector<24x8xf32>
    %42 = vector.extract_strided_slice %8 {offsets = [0, 40], sizes = [24, 8], strides = [1, 1]} : vector<192x48xf32> to vector<24x8xf32>
    %cst_22 = arith.constant 0.000000e+00 : f32
    %43 = vector.broadcast %cst_22 : f32 to vector<24x8xf32>
    %44 = arith.maximumf %42, %43 : vector<24x8xf32>
    %cst_23 = arith.constant dense<0.000000e+00> : vector<24x32xf32>
    %45 = tpu.matmul %44, %11, %cst_23 {dimension_numbers = #tpu.dot_dimension_numbers<[1], [0], [0], [1], [0, 0, 1, 1], [], []>} : vector<24x8xf32>, vector<8x32xf32>, vector<24x32xf32> -> vector<24x32xf32>
    %cst_24 = arith.constant dense<0.000000e+00> : vector<24x24xf32>
    %46 = tpu.matmul %40, %41, %cst_24 {dimension_numbers = #tpu.dot_dimension_numbers<[1], [1], [0], [0], [0, 0, 1, 0], [], []>} : vector<24x8xf32>, vector<24x8xf32>, vector<24x24xf32> -> vector<24x24xf32>
    %cst_25 = arith.constant -9.000000e+15 : f32
    %47 = vector.broadcast %cst_25 : f32 to vector<24x24xf32>
    %48 = arith.select %17, %47, %46 : vector<24x24xi1>, vector<24x24xf32>
    %cst_26 = arith.constant dense<0xFF800000> : vector<24xf32>
    %49 = vector.multi_reduction <maximumf>, %48, %cst_26 [1] : vector<24x24xf32> to vector<24xf32>
    %50 = vector.shape_cast %49 : vector<24xf32> to vector<24x1xf32>
    %51 = vector.broadcast %50 : vector<24x1xf32> to vector<24x24xf32>
    %52 = arith.subf %48, %51 : vector<24x24xf32>
    %53 = math.exp %52 : vector<24x24xf32>
    %cst_27 = arith.constant dense<0.000000e+00> : vector<24xf32>
    %54 = vector.multi_reduction <add>, %53, %cst_27 [1] : vector<24x24xf32> to vector<24xf32>
    %55 = vector.shape_cast %54 : vector<24xf32> to vector<24x1xf32>
    %56 = tpu.reciprocal %55 : vector<24x1xf32> -> vector<24x1xf32>
    %57 = vector.broadcast %56 : vector<24x1xf32> to vector<24x24xf32>
    %58 = arith.mulf %53, %57 : vector<24x24xf32>
    %cst_28 = arith.constant dense<0.000000e+00> : vector<24x32xf32>
    %59 = tpu.matmul %58, %45, %cst_28 {dimension_numbers = #tpu.dot_dimension_numbers<[1], [0], [0], [1], [0, 0, 1, 1], [], []>} : vector<24x24xf32>, vector<24x32xf32>, vector<24x32xf32> -> vector<24x32xf32>
    %60 = arith.addf %39, %59 : vector<24x32xf32>
    %61 = vector.broadcast %12 : vector<1x32xf32> to vector<24x32xf32>
    %62 = arith.addf %60, %61 : vector<24x32xf32>
    %cst_29 = arith.constant dense<0.000000e+00> : vector<24xf32>
    %63 = vector.multi_reduction <add>, %62, %cst_29 [1] : vector<24x32xf32> to vector<24xf32>
    %64 = vector.shape_cast %63 : vector<24xf32> to vector<24x1xf32>
    %cst_30 = arith.constant 3.200000e+01 : f32
    %65 = vector.broadcast %cst_30 : f32 to vector<24x1xf32>
    %66 = arith.divf %64, %65 : vector<24x1xf32>
    %67 = vector.broadcast %66 : vector<24x1xf32> to vector<24x32xf32>
    %68 = arith.subf %62, %67 : vector<24x32xf32>
    %69 = arith.mulf %68, %68 : vector<24x32xf32>
    %cst_31 = arith.constant dense<0.000000e+00> : vector<24xf32>
    %70 = vector.multi_reduction <add>, %69, %cst_31 [1] : vector<24x32xf32> to vector<24xf32>
    %71 = vector.shape_cast %70 : vector<24xf32> to vector<24x1xf32>
    %cst_32 = arith.constant 0.0322580636 : f32
    %72 = vector.broadcast %cst_32 : f32 to vector<24x1xf32>
    %73 = arith.mulf %71, %72 : vector<24x1xf32>
    %74 = math.sqrt %73 : vector<24x1xf32>
    %75 = vector.broadcast %13 : vector<1x32xf32> to vector<24x32xf32>
    %76 = arith.mulf %75, %68 : vector<24x32xf32>
    %cst_33 = arith.constant 9.99999997E-7 : f32
    %77 = vector.broadcast %cst_33 : f32 to vector<24x1xf32>
    %78 = arith.addf %74, %77 : vector<24x1xf32>
    %79 = vector.broadcast %78 : vector<24x1xf32> to vector<24x32xf32>
    %80 = arith.divf %76, %79 : vector<24x32xf32>
    %81 = vector.broadcast %14 : vector<1x32xf32> to vector<24x32xf32>
    %82 = arith.addf %80, %81 : vector<24x32xf32>
    %cst_34 = arith.constant 0.000000e+00 : f32
    %83 = vector.broadcast %cst_34 : f32 to vector<24x32xf32>
    %84 = arith.maximumf %82, %83 : vector<24x32xf32>
    %c0_35 = arith.constant 0 : index
    %c0_36 = arith.constant 0 : index
    %c0_37 = arith.constant 0 : index
    %85 = vector.load %arg7[%c0_35, %c0_36, %c0_37] : memref<1x192x32xf32, #tpu.memory_space<vmem>>, vector<1x24x32xf32>
    %86 = vector.shape_cast %85 : vector<1x24x32xf32> to vector<24x32xf32>
    %87 = vector.shape_cast %84 : vector<24x32xf32> to vector<1x24x32xf32>
    tpu.vector_store %arg7[%c0_35, %c0_36, %c0_37], %87 {strides = array<i32>} : memref<1x192x32xf32, #tpu.memory_space<vmem>>, vector<1x24x32xf32>,
    %cst_38 = arith.constant 0.000000e+00 : f32
    %88 = vector.broadcast %cst_38 : f32 to vector<24x32xf32>
    %89 = vector.extract_strided_slice %8 {offsets = [24, 0], sizes = [24, 8], strides = [1, 1]} : vector<192x48xf32> to vector<24x8xf32>
    %90 = vector.extract_strided_slice %8 {offsets = [24, 16], sizes = [24, 8], strides = [1, 1]} : vector<192x48xf32> to vector<24x8xf32>
    %91 = vector.extract_strided_slice %8 {offsets = [24, 32], sizes = [24, 8], strides = [1, 1]} : vector<192x48xf32> to vector<24x8xf32>
    %cst_39 = arith.constant 0.000000e+00 : f32
    %92 = vector.broadcast %cst_39 : f32 to vector<24x8xf32>
    %93 = arith.maximumf %91, %92 : vector<24x8xf32>
    %cst_40 = arith.constant dense<0.000000e+00> : vector<24x32xf32>
    %94 = tpu.matmul %93, %10, %cst_40 {dimension_numbers = #tpu.dot_dimension_numbers<[1], [0], [0], [1], [0, 0, 1, 1], [], []>} : vector<24x8xf32>, vector<8x32xf32>, vector<24x32xf32> -> vector<24x32xf32>
    %cst_41 = arith.constant dense<0.000000e+00> : vector<24x24xf32>
    %95 = tpu.matmul %89, %90, %cst_41 {dimension_numbers = #tpu.dot_dimension_numbers<[1], [1], [0], [0], [0, 0, 1, 0], [], []>} : vector<24x8xf32>, vector<24x8xf32>, vector<24x24xf32> -> vector<24x24xf32>
    %cst_42 = arith.constant -9.000000e+15 : f32
    %96 = vector.broadcast %cst_42 : f32 to vector<24x24xf32>
    %97 = arith.select %17, %96, %95 : vector<24x24xi1>, vector<24x24xf32>
    %cst_43 = arith.constant dense<0xFF800000> : vector<24xf32>
    %98 = vector.multi_reduction <maximumf>, %97, %cst_43 [1] : vector<24x24xf32> to vector<24xf32>
    %99 = vector.shape_cast %98 : vector<24xf32> to vector<24x1xf32>
    %100 = vector.broadcast %99 : vector<24x1xf32> to vector<24x24xf32>
    %101 = arith.subf %97, %100 : vector<24x24xf32>
    %102 = math.exp %101 : vector<24x24xf32>
    %cst_44 = arith.constant dense<0.000000e+00> : vector<24xf32>
    %103 = vector.multi_reduction <add>, %102, %cst_44 [1] : vector<24x24xf32> to vector<24xf32>
    %104 = vector.shape_cast %103 : vector<24xf32> to vector<24x1xf32>
    %105 = tpu.reciprocal %104 : vector<24x1xf32> -> vector<24x1xf32>
    %106 = vector.broadcast %105 : vector<24x1xf32> to vector<24x24xf32>
    %107 = arith.mulf %102, %106 : vector<24x24xf32>
    %cst_45 = arith.constant dense<0.000000e+00> : vector<24x32xf32>
    %108 = tpu.matmul %107, %94, %cst_45 {dimension_numbers = #tpu.dot_dimension_numbers<[1], [0], [0], [1], [0, 0, 1, 1], [], []>} : vector<24x24xf32>, vector<24x32xf32>, vector<24x32xf32> -> vector<24x32xf32>
    %109 = arith.addf %88, %108 : vector<24x32xf32>
    %110 = vector.extract_strided_slice %8 {offsets = [24, 8], sizes = [24, 8], strides = [1, 1]} : vector<192x48xf32> to vector<24x8xf32>
    %111 = vector.extract_strided_slice %8 {offsets = [24, 24], sizes = [24, 8], strides = [1, 1]} : vector<192x48xf32> to vector<24x8xf32>
    %112 = vector.extract_strided_slice %8 {offsets = [24, 40], sizes = [24, 8], strides = [1, 1]} : vector<192x48xf32> to vector<24x8xf32>
    %cst_46 = arith.constant 0.000000e+00 : f32
    %113 = vector.broadcast %cst_46 : f32 to vector<24x8xf32>
    %114 = arith.maximumf %112, %113 : vector<24x8xf32>
    %cst_47 = arith.constant dense<0.000000e+00> : vector<24x32xf32>
    %115 = tpu.matmul %114, %11, %cst_47 {dimension_numbers = #tpu.dot_dimension_numbers<[1], [0], [0], [1], [0, 0, 1, 1], [], []>} : vector<24x8xf32>, vector<8x32xf32>, vector<24x32xf32> -> vector<24x32xf32>
    %cst_48 = arith.constant dense<0.000000e+00> : vector<24x24xf32>
    %116 = tpu.matmul %110, %111, %cst_48 {dimension_numbers = #tpu.dot_dimension_numbers<[1], [1], [0], [0], [0, 0, 1, 0], [], []>} : vector<24x8xf32>, vector<24x8xf32>, vector<24x24xf32> -> vector<24x24xf32>
    %cst_49 = arith.constant -9.000000e+15 : f32
    %117 = vector.broadcast %cst_49 : f32 to vector<24x24xf32>
    %118 = arith.select %17, %117, %116 : vector<24x24xi1>, vector<24x24xf32>
    %cst_50 = arith.constant dense<0xFF800000> : vector<24xf32>
    %119 = vector.multi_reduction <maximumf>, %118, %cst_50 [1] : vector<24x24xf32> to vector<24xf32>
    %120 = vector.shape_cast %119 : vector<24xf32> to vector<24x1xf32>
    %121 = vector.broadcast %120 : vector<24x1xf32> to vector<24x24xf32>
    %122 = arith.subf %118, %121 : vector<24x24xf32>
    %123 = math.exp %122 : vector<24x24xf32>
    %cst_51 = arith.constant dense<0.000000e+00> : vector<24xf32>
    %124 = vector.multi_reduction <add>, %123, %cst_51 [1] : vector<24x24xf32> to vector<24xf32>
    %125 = vector.shape_cast %124 : vector<24xf32> to vector<24x1xf32>
    %126 = tpu.reciprocal %125 : vector<24x1xf32> -> vector<24x1xf32>
    %127 = vector.broadcast %126 : vector<24x1xf32> to vector<24x24xf32>
    %128 = arith.mulf %123, %127 : vector<24x24xf32>
    %cst_52 = arith.constant dense<0.000000e+00> : vector<24x32xf32>
    %129 = tpu.matmul %128, %115, %cst_52 {dimension_numbers = #tpu.dot_dimension_numbers<[1], [0], [0], [1], [0, 0, 1, 1], [], []>} : vector<24x24xf32>, vector<24x32xf32>, vector<24x32xf32> -> vector<24x32xf32>
    %130 = arith.addf %109, %129 : vector<24x32xf32>
    %131 = vector.broadcast %12 : vector<1x32xf32> to vector<24x32xf32>
    %132 = arith.addf %130, %131 : vector<24x32xf32>
    %cst_53 = arith.constant dense<0.000000e+00> : vector<24xf32>
    %133 = vector.multi_reduction <add>, %132, %cst_53 [1] : vector<24x32xf32> to vector<24xf32>
    %134 = vector.shape_cast %133 : vector<24xf32> to vector<24x1xf32>
    %cst_54 = arith.constant 3.200000e+01 : f32
    %135 = vector.broadcast %cst_54 : f32 to vector<24x1xf32>
    %136 = arith.divf %134, %135 : vector<24x1xf32>
    %137 = vector.broadcast %136 : vector<24x1xf32> to vector<24x32xf32>
    %138 = arith.subf %132, %137 : vector<24x32xf32>
    %139 = arith.mulf %138, %138 : vector<24x32xf32>
    %cst_55 = arith.constant dense<0.000000e+00> : vector<24xf32>
    %140 = vector.multi_reduction <add>, %139, %cst_55 [1] : vector<24x32xf32> to vector<24xf32>
    %141 = vector.shape_cast %140 : vector<24xf32> to vector<24x1xf32>
    %cst_56 = arith.constant 0.0322580636 : f32
    %142 = vector.broadcast %cst_56 : f32 to vector<24x1xf32>
    %143 = arith.mulf %141, %142 : vector<24x1xf32>
    %144 = math.sqrt %143 : vector<24x1xf32>
    %145 = vector.broadcast %13 : vector<1x32xf32> to vector<24x32xf32>
    %146 = arith.mulf %145, %138 : vector<24x32xf32>
    %cst_57 = arith.constant 9.99999997E-7 : f32
    %147 = vector.broadcast %cst_57 : f32 to vector<24x1xf32>
    %148 = arith.addf %144, %147 : vector<24x1xf32>
    %149 = vector.broadcast %148 : vector<24x1xf32> to vector<24x32xf32>
    %150 = arith.divf %146, %149 : vector<24x32xf32>
    %151 = vector.broadcast %14 : vector<1x32xf32> to vector<24x32xf32>
    %152 = arith.addf %150, %151 : vector<24x32xf32>
    %cst_58 = arith.constant 0.000000e+00 : f32
    %153 = vector.broadcast %cst_58 : f32 to vector<24x32xf32>
    %154 = arith.maximumf %152, %153 : vector<24x32xf32>
    %c0_59 = arith.constant 0 : index
    %c24 = arith.constant 24 : index
    %c0_60 = arith.constant 0 : index
    %155 = vector.load %arg7[%c0_59, %c24, %c0_60] : memref<1x192x32xf32, #tpu.memory_space<vmem>>, vector<1x24x32xf32>
    %156 = vector.shape_cast %155 : vector<1x24x32xf32> to vector<24x32xf32>
    %157 = vector.shape_cast %154 : vector<24x32xf32> to vector<1x24x32xf32>
    tpu.vector_store %arg7[%c0_59, %c24, %c0_60], %157 {strides = array<i32>} : memref<1x192x32xf32, #tpu.memory_space<vmem>>, vector<1x24x32xf32>,
    %cst_61 = arith.constant 0.000000e+00 : f32
    %158 = vector.broadcast %cst_61 : f32 to vector<24x32xf32>
    %159 = vector.extract_strided_slice %8 {offsets = [48, 0], sizes = [24, 8], strides = [1, 1]} : vector<192x48xf32> to vector<24x8xf32>
    %160 = vector.extract_strided_slice %8 {offsets = [48, 16], sizes = [24, 8], strides = [1, 1]} : vector<192x48xf32> to vector<24x8xf32>
    %161 = vector.extract_strided_slice %8 {offsets = [48, 32], sizes = [24, 8], strides = [1, 1]} : vector<192x48xf32> to vector<24x8xf32>
    %cst_62 = arith.constant 0.000000e+00 : f32
    %162 = vector.broadcast %cst_62 : f32 to vector<24x8xf32>
    %163 = arith.maximumf %161, %162 : vector<24x8xf32>
    %cst_63 = arith.constant dense<0.000000e+00> : vector<24x32xf32>
    %164 = tpu.matmul %163, %10, %cst_63 {dimension_numbers = #tpu.dot_dimension_numbers<[1], [0], [0], [1], [0, 0, 1, 1], [], []>} : vector<24x8xf32>, vector<8x32xf32>, vector<24x32xf32> -> vector<24x32xf32>
    %cst_64 = arith.constant dense<0.000000e+00> : vector<24x24xf32>
    %165 = tpu.matmul %159, %160, %cst_64 {dimension_numbers = #tpu.dot_dimension_numbers<[1], [1], [0], [0], [0, 0, 1, 0], [], []>} : vector<24x8xf32>, vector<24x8xf32>, vector<24x24xf32> -> vector<24x24xf32>
    %cst_65 = arith.constant -9.000000e+15 : f32
    %166 = vector.broadcast %cst_65 : f32 to vector<24x24xf32>
    %167 = arith.select %17, %166, %165 : vector<24x24xi1>, vector<24x24xf32>
    %cst_66 = arith.constant dense<0xFF800000> : vector<24xf32>
    %168 = vector.multi_reduction <maximumf>, %167, %cst_66 [1] : vector<24x24xf32> to vector<24xf32>
    %169 = vector.shape_cast %168 : vector<24xf32> to vector<24x1xf32>
    %170 = vector.broadcast %169 : vector<24x1xf32> to vector<24x24xf32>
    %171 = arith.subf %167, %170 : vector<24x24xf32>
    %172 = math.exp %171 : vector<24x24xf32>
    %cst_67 = arith.constant dense<0.000000e+00> : vector<24xf32>
    %173 = vector.multi_reduction <add>, %172, %cst_67 [1] : vector<24x24xf32> to vector<24xf32>
    %174 = vector.shape_cast %173 : vector<24xf32> to vector<24x1xf32>
    %175 = tpu.reciprocal %174 : vector<24x1xf32> -> vector<24x1xf32>
    %176 = vector.broadcast %175 : vector<24x1xf32> to vector<24x24xf32>
    %177 = arith.mulf %172, %176 : vector<24x24xf32>
    %cst_68 = arith.constant dense<0.000000e+00> : vector<24x32xf32>
    %178 = tpu.matmul %177, %164, %cst_68 {dimension_numbers = #tpu.dot_dimension_numbers<[1], [0], [0], [1], [0, 0, 1, 1], [], []>} : vector<24x24xf32>, vector<24x32xf32>, vector<24x32xf32> -> vector<24x32xf32>
    %179 = arith.addf %158, %178 : vector<24x32xf32>
    %180 = vector.extract_strided_slice %8 {offsets = [48, 8], sizes = [24, 8], strides = [1, 1]} : vector<192x48xf32> to vector<24x8xf32>
    %181 = vector.extract_strided_slice %8 {offsets = [48, 24], sizes = [24, 8], strides = [1, 1]} : vector<192x48xf32> to vector<24x8xf32>
    %182 = vector.extract_strided_slice %8 {offsets = [48, 40], sizes = [24, 8], strides = [1, 1]} : vector<192x48xf32> to vector<24x8xf32>
    %cst_69 = arith.constant 0.000000e+00 : f32
    %183 = vector.broadcast %cst_69 : f32 to vector<24x8xf32>
    %184 = arith.maximumf %182, %183 : vector<24x8xf32>
    %cst_70 = arith.constant dense<0.000000e+00> : vector<24x32xf32>
    %185 = tpu.matmul %184, %11, %cst_70 {dimension_numbers = #tpu.dot_dimension_numbers<[1], [0], [0], [1], [0, 0, 1, 1], [], []>} : vector<24x8xf32>, vector<8x32xf32>, vector<24x32xf32> -> vector<24x32xf32>
    %cst_71 = arith.constant dense<0.000000e+00> : vector<24x24xf32>
    %186 = tpu.matmul %180, %181, %cst_71 {dimension_numbers = #tpu.dot_dimension_numbers<[1], [1], [0], [0], [0, 0, 1, 0], [], []>} : vector<24x8xf32>, vector<24x8xf32>, vector<24x24xf32> -> vector<24x24xf32>
    %cst_72 = arith.constant -9.000000e+15 : f32
    %187 = vector.broadcast %cst_72 : f32 to vector<24x24xf32>
    %188 = arith.select %17, %187, %186 : vector<24x24xi1>, vector<24x24xf32>
    %cst_73 = arith.constant dense<0xFF800000> : vector<24xf32>
    %189 = vector.multi_reduction <maximumf>, %188, %cst_73 [1] : vector<24x24xf32> to vector<24xf32>
    %190 = vector.shape_cast %189 : vector<24xf32> to vector<24x1xf32>
    %191 = vector.broadcast %190 : vector<24x1xf32> to vector<24x24xf32>
    %192 = arith.subf %188, %191 : vector<24x24xf32>
    %193 = math.exp %192 : vector<24x24xf32>
    %cst_74 = arith.constant dense<0.000000e+00> : vector<24xf32>
    %194 = vector.multi_reduction <add>, %193, %cst_74 [1] : vector<24x24xf32> to vector<24xf32>
    %195 = vector.shape_cast %194 : vector<24xf32> to vector<24x1xf32>
    %196 = tpu.reciprocal %195 : vector<24x1xf32> -> vector<24x1xf32>
    %197 = vector.broadcast %196 : vector<24x1xf32> to vector<24x24xf32>
    %198 = arith.mulf %193, %197 : vector<24x24xf32>
    %cst_75 = arith.constant dense<0.000000e+00> : vector<24x32xf32>
    %199 = tpu.matmul %198, %185, %cst_75 {dimension_numbers = #tpu.dot_dimension_numbers<[1], [0], [0], [1], [0, 0, 1, 1], [], []>} : vector<24x24xf32>, vector<24x32xf32>, vector<24x32xf32> -> vector<24x32xf32>
    %200 = arith.addf %179, %199 : vector<24x32xf32>
    %201 = vector.broadcast %12 : vector<1x32xf32> to vector<24x32xf32>
    %202 = arith.addf %200, %201 : vector<24x32xf32>
    %cst_76 = arith.constant dense<0.000000e+00> : vector<24xf32>
    %203 = vector.multi_reduction <add>, %202, %cst_76 [1] : vector<24x32xf32> to vector<24xf32>
    %204 = vector.shape_cast %203 : vector<24xf32> to vector<24x1xf32>
    %cst_77 = arith.constant 3.200000e+01 : f32
    %205 = vector.broadcast %cst_77 : f32 to vector<24x1xf32>
    %206 = arith.divf %204, %205 : vector<24x1xf32>
    %207 = vector.broadcast %206 : vector<24x1xf32> to vector<24x32xf32>
    %208 = arith.subf %202, %207 : vector<24x32xf32>
    %209 = arith.mulf %208, %208 : vector<24x32xf32>
    %cst_78 = arith.constant dense<0.000000e+00> : vector<24xf32>
    %210 = vector.multi_reduction <add>, %209, %cst_78 [1] : vector<24x32xf32> to vector<24xf32>
    %211 = vector.shape_cast %210 : vector<24xf32> to vector<24x1xf32>
    %cst_79 = arith.constant 0.0322580636 : f32
    %212 = vector.broadcast %cst_79 : f32 to vector<24x1xf32>
    %213 = arith.mulf %211, %212 : vector<24x1xf32>
    %214 = math.sqrt %213 : vector<24x1xf32>
    %215 = vector.broadcast %13 : vector<1x32xf32> to vector<24x32xf32>
    %216 = arith.mulf %215, %208 : vector<24x32xf32>
    %cst_80 = arith.constant 9.99999997E-7 : f32
    %217 = vector.broadcast %cst_80 : f32 to vector<24x1xf32>
    %218 = arith.addf %214, %217 : vector<24x1xf32>
    %219 = vector.broadcast %218 : vector<24x1xf32> to vector<24x32xf32>
    %220 = arith.divf %216, %219 : vector<24x32xf32>
    %221 = vector.broadcast %14 : vector<1x32xf32> to vector<24x32xf32>
    %222 = arith.addf %220, %221 : vector<24x32xf32>
    %cst_81 = arith.constant 0.000000e+00 : f32
    %223 = vector.broadcast %cst_81 : f32 to vector<24x32xf32>
    %224 = arith.maximumf %222, %223 : vector<24x32xf32>
    %c0_82 = arith.constant 0 : index
    %c48 = arith.constant 48 : index
    %c0_83 = arith.constant 0 : index
    %225 = vector.load %arg7[%c0_82, %c48, %c0_83] : memref<1x192x32xf32, #tpu.memory_space<vmem>>, vector<1x24x32xf32>
    %226 = vector.shape_cast %225 : vector<1x24x32xf32> to vector<24x32xf32>
    %227 = vector.shape_cast %224 : vector<24x32xf32> to vector<1x24x32xf32>
    tpu.vector_store %arg7[%c0_82, %c48, %c0_83], %227 {strides = array<i32>} : memref<1x192x32xf32, #tpu.memory_space<vmem>>, vector<1x24x32xf32>,
    %cst_84 = arith.constant 0.000000e+00 : f32
    %228 = vector.broadcast %cst_84 : f32 to vector<24x32xf32>
    %229 = vector.extract_strided_slice %8 {offsets = [72, 0], sizes = [24, 8], strides = [1, 1]} : vector<192x48xf32> to vector<24x8xf32>
    %230 = vector.extract_strided_slice %8 {offsets = [72, 16], sizes = [24, 8], strides = [1, 1]} : vector<192x48xf32> to vector<24x8xf32>
    %231 = vector.extract_strided_slice %8 {offsets = [72, 32], sizes = [24, 8], strides = [1, 1]} : vector<192x48xf32> to vector<24x8xf32>
    %cst_85 = arith.constant 0.000000e+00 : f32
    %232 = vector.broadcast %cst_85 : f32 to vector<24x8xf32>
    %233 = arith.maximumf %231, %232 : vector<24x8xf32>
    %cst_86 = arith.constant dense<0.000000e+00> : vector<24x32xf32>
    %234 = tpu.matmul %233, %10, %cst_86 {dimension_numbers = #tpu.dot_dimension_numbers<[1], [0], [0], [1], [0, 0, 1, 1], [], []>} : vector<24x8xf32>, vector<8x32xf32>, vector<24x32xf32> -> vector<24x32xf32>
    %cst_87 = arith.constant dense<0.000000e+00> : vector<24x24xf32>
    %235 = tpu.matmul %229, %230, %cst_87 {dimension_numbers = #tpu.dot_dimension_numbers<[1], [1], [0], [0], [0, 0, 1, 0], [], []>} : vector<24x8xf32>, vector<24x8xf32>, vector<24x24xf32> -> vector<24x24xf32>
    %cst_88 = arith.constant -9.000000e+15 : f32
    %236 = vector.broadcast %cst_88 : f32 to vector<24x24xf32>
    %237 = arith.select %17, %236, %235 : vector<24x24xi1>, vector<24x24xf32>
    %cst_89 = arith.constant dense<0xFF800000> : vector<24xf32>
    %238 = vector.multi_reduction <maximumf>, %237, %cst_89 [1] : vector<24x24xf32> to vector<24xf32>
    %239 = vector.shape_cast %238 : vector<24xf32> to vector<24x1xf32>
    %240 = vector.broadcast %239 : vector<24x1xf32> to vector<24x24xf32>
    %241 = arith.subf %237, %240 : vector<24x24xf32>
    %242 = math.exp %241 : vector<24x24xf32>
    %cst_90 = arith.constant dense<0.000000e+00> : vector<24xf32>
    %243 = vector.multi_reduction <add>, %242, %cst_90 [1] : vector<24x24xf32> to vector<24xf32>
    %244 = vector.shape_cast %243 : vector<24xf32> to vector<24x1xf32>
    %245 = tpu.reciprocal %244 : vector<24x1xf32> -> vector<24x1xf32>
    %246 = vector.broadcast %245 : vector<24x1xf32> to vector<24x24xf32>
    %247 = arith.mulf %242, %246 : vector<24x24xf32>
    %cst_91 = arith.constant dense<0.000000e+00> : vector<24x32xf32>
    %248 = tpu.matmul %247, %234, %cst_91 {dimension_numbers = #tpu.dot_dimension_numbers<[1], [0], [0], [1], [0, 0, 1, 1], [], []>} : vector<24x24xf32>, vector<24x32xf32>, vector<24x32xf32> -> vector<24x32xf32>
    %249 = arith.addf %228, %248 : vector<24x32xf32>
    %250 = vector.extract_strided_slice %8 {offsets = [72, 8], sizes = [24, 8], strides = [1, 1]} : vector<192x48xf32> to vector<24x8xf32>
    %251 = vector.extract_strided_slice %8 {offsets = [72, 24], sizes = [24, 8], strides = [1, 1]} : vector<192x48xf32> to vector<24x8xf32>
    %252 = vector.extract_strided_slice %8 {offsets = [72, 40], sizes = [24, 8], strides = [1, 1]} : vector<192x48xf32> to vector<24x8xf32>
    %cst_92 = arith.constant 0.000000e+00 : f32
    %253 = vector.broadcast %cst_92 : f32 to vector<24x8xf32>
    %254 = arith.maximumf %252, %253 : vector<24x8xf32>
    %cst_93 = arith.constant dense<0.000000e+00> : vector<24x32xf32>
    %255 = tpu.matmul %254, %11, %cst_93 {dimension_numbers = #tpu.dot_dimension_numbers<[1], [0], [0], [1], [0, 0, 1, 1], [], []>} : vector<24x8xf32>, vector<8x32xf32>, vector<24x32xf32> -> vector<24x32xf32>
    %cst_94 = arith.constant dense<0.000000e+00> : vector<24x24xf32>
    %256 = tpu.matmul %250, %251, %cst_94 {dimension_numbers = #tpu.dot_dimension_numbers<[1], [1], [0], [0], [0, 0, 1, 0], [], []>} : vector<24x8xf32>, vector<24x8xf32>, vector<24x24xf32> -> vector<24x24xf32>
    %cst_95 = arith.constant -9.000000e+15 : f32
    %257 = vector.broadcast %cst_95 : f32 to vector<24x24xf32>
    %258 = arith.select %17, %257, %256 : vector<24x24xi1>, vector<24x24xf32>
    %cst_96 = arith.constant dense<0xFF800000> : vector<24xf32>
    %259 = vector.multi_reduction <maximumf>, %258, %cst_96 [1] : vector<24x24xf32> to vector<24xf32>
    %260 = vector.shape_cast %259 : vector<24xf32> to vector<24x1xf32>
    %261 = vector.broadcast %260 : vector<24x1xf32> to vector<24x24xf32>
    %262 = arith.subf %258, %261 : vector<24x24xf32>
    %263 = math.exp %262 : vector<24x24xf32>
    %cst_97 = arith.constant dense<0.000000e+00> : vector<24xf32>
    %264 = vector.multi_reduction <add>, %263, %cst_97 [1] : vector<24x24xf32> to vector<24xf32>
    %265 = vector.shape_cast %264 : vector<24xf32> to vector<24x1xf32>
    %266 = tpu.reciprocal %265 : vector<24x1xf32> -> vector<24x1xf32>
    %267 = vector.broadcast %266 : vector<24x1xf32> to vector<24x24xf32>
    %268 = arith.mulf %263, %267 : vector<24x24xf32>
    %cst_98 = arith.constant dense<0.000000e+00> : vector<24x32xf32>
    %269 = tpu.matmul %268, %255, %cst_98 {dimension_numbers = #tpu.dot_dimension_numbers<[1], [0], [0], [1], [0, 0, 1, 1], [], []>} : vector<24x24xf32>, vector<24x32xf32>, vector<24x32xf32> -> vector<24x32xf32>
    %270 = arith.addf %249, %269 : vector<24x32xf32>
    %271 = vector.broadcast %12 : vector<1x32xf32> to vector<24x32xf32>
    %272 = arith.addf %270, %271 : vector<24x32xf32>
    %cst_99 = arith.constant dense<0.000000e+00> : vector<24xf32>
    %273 = vector.multi_reduction <add>, %272, %cst_99 [1] : vector<24x32xf32> to vector<24xf32>
    %274 = vector.shape_cast %273 : vector<24xf32> to vector<24x1xf32>
    %cst_100 = arith.constant 3.200000e+01 : f32
    %275 = vector.broadcast %cst_100 : f32 to vector<24x1xf32>
    %276 = arith.divf %274, %275 : vector<24x1xf32>
    %277 = vector.broadcast %276 : vector<24x1xf32> to vector<24x32xf32>
    %278 = arith.subf %272, %277 : vector<24x32xf32>
    %279 = arith.mulf %278, %278 : vector<24x32xf32>
    %cst_101 = arith.constant dense<0.000000e+00> : vector<24xf32>
    %280 = vector.multi_reduction <add>, %279, %cst_101 [1] : vector<24x32xf32> to vector<24xf32>
    %281 = vector.shape_cast %280 : vector<24xf32> to vector<24x1xf32>
    %cst_102 = arith.constant 0.0322580636 : f32
    %282 = vector.broadcast %cst_102 : f32 to vector<24x1xf32>
    %283 = arith.mulf %281, %282 : vector<24x1xf32>
    %284 = math.sqrt %283 : vector<24x1xf32>
    %285 = vector.broadcast %13 : vector<1x32xf32> to vector<24x32xf32>
    %286 = arith.mulf %285, %278 : vector<24x32xf32>
    %cst_103 = arith.constant 9.99999997E-7 : f32
    %287 = vector.broadcast %cst_103 : f32 to vector<24x1xf32>
    %288 = arith.addf %284, %287 : vector<24x1xf32>
    %289 = vector.broadcast %288 : vector<24x1xf32> to vector<24x32xf32>
    %290 = arith.divf %286, %289 : vector<24x32xf32>
    %291 = vector.broadcast %14 : vector<1x32xf32> to vector<24x32xf32>
    %292 = arith.addf %290, %291 : vector<24x32xf32>
    %cst_104 = arith.constant 0.000000e+00 : f32
    %293 = vector.broadcast %cst_104 : f32 to vector<24x32xf32>
    %294 = arith.maximumf %292, %293 : vector<24x32xf32>
    %c0_105 = arith.constant 0 : index
    %c72 = arith.constant 72 : index
    %c0_106 = arith.constant 0 : index
    %295 = vector.load %arg7[%c0_105, %c72, %c0_106] : memref<1x192x32xf32, #tpu.memory_space<vmem>>, vector<1x24x32xf32>
    %296 = vector.shape_cast %295 : vector<1x24x32xf32> to vector<24x32xf32>
    %297 = vector.shape_cast %294 : vector<24x32xf32> to vector<1x24x32xf32>
    tpu.vector_store %arg7[%c0_105, %c72, %c0_106], %297 {strides = array<i32>} : memref<1x192x32xf32, #tpu.memory_space<vmem>>, vector<1x24x32xf32>,
    %cst_107 = arith.constant 0.000000e+00 : f32
    %298 = vector.broadcast %cst_107 : f32 to vector<24x32xf32>
    %299 = vector.extract_strided_slice %8 {offsets = [96, 0], sizes = [24, 8], strides = [1, 1]} : vector<192x48xf32> to vector<24x8xf32>
    %300 = vector.extract_strided_slice %8 {offsets = [96, 16], sizes = [24, 8], strides = [1, 1]} : vector<192x48xf32> to vector<24x8xf32>
    %301 = vector.extract_strided_slice %8 {offsets = [96, 32], sizes = [24, 8], strides = [1, 1]} : vector<192x48xf32> to vector<24x8xf32>
    %cst_108 = arith.constant 0.000000e+00 : f32
    %302 = vector.broadcast %cst_108 : f32 to vector<24x8xf32>
    %303 = arith.maximumf %301, %302 : vector<24x8xf32>
    %cst_109 = arith.constant dense<0.000000e+00> : vector<24x32xf32>
    %304 = tpu.matmul %303, %10, %cst_109 {dimension_numbers = #tpu.dot_dimension_numbers<[1], [0], [0], [1], [0, 0, 1, 1], [], []>} : vector<24x8xf32>, vector<8x32xf32>, vector<24x32xf32> -> vector<24x32xf32>
    %cst_110 = arith.constant dense<0.000000e+00> : vector<24x24xf32>
    %305 = tpu.matmul %299, %300, %cst_110 {dimension_numbers = #tpu.dot_dimension_numbers<[1], [1], [0], [0], [0, 0, 1, 0], [], []>} : vector<24x8xf32>, vector<24x8xf32>, vector<24x24xf32> -> vector<24x24xf32>
    %cst_111 = arith.constant -9.000000e+15 : f32
    %306 = vector.broadcast %cst_111 : f32 to vector<24x24xf32>
    %307 = arith.select %17, %306, %305 : vector<24x24xi1>, vector<24x24xf32>
    %cst_112 = arith.constant dense<0xFF800000> : vector<24xf32>
    %308 = vector.multi_reduction <maximumf>, %307, %cst_112 [1] : vector<24x24xf32> to vector<24xf32>
    %309 = vector.shape_cast %308 : vector<24xf32> to vector<24x1xf32>
    %310 = vector.broadcast %309 : vector<24x1xf32> to vector<24x24xf32>
    %311 = arith.subf %307, %310 : vector<24x24xf32>
    %312 = math.exp %311 : vector<24x24xf32>
    %cst_113 = arith.constant dense<0.000000e+00> : vector<24xf32>
    %313 = vector.multi_reduction <add>, %312, %cst_113 [1] : vector<24x24xf32> to vector<24xf32>
    %314 = vector.shape_cast %313 : vector<24xf32> to vector<24x1xf32>
    %315 = tpu.reciprocal %314 : vector<24x1xf32> -> vector<24x1xf32>
    %316 = vector.broadcast %315 : vector<24x1xf32> to vector<24x24xf32>
    %317 = arith.mulf %312, %316 : vector<24x24xf32>
    %cst_114 = arith.constant dense<0.000000e+00> : vector<24x32xf32>
    %318 = tpu.matmul %317, %304, %cst_114 {dimension_numbers = #tpu.dot_dimension_numbers<[1], [0], [0], [1], [0, 0, 1, 1], [], []>} : vector<24x24xf32>, vector<24x32xf32>, vector<24x32xf32> -> vector<24x32xf32>
    %319 = arith.addf %298, %318 : vector<24x32xf32>
    %320 = vector.extract_strided_slice %8 {offsets = [96, 8], sizes = [24, 8], strides = [1, 1]} : vector<192x48xf32> to vector<24x8xf32>
    %321 = vector.extract_strided_slice %8 {offsets = [96, 24], sizes = [24, 8], strides = [1, 1]} : vector<192x48xf32> to vector<24x8xf32>
    %322 = vector.extract_strided_slice %8 {offsets = [96, 40], sizes = [24, 8], strides = [1, 1]} : vector<192x48xf32> to vector<24x8xf32>
    %cst_115 = arith.constant 0.000000e+00 : f32
    %323 = vector.broadcast %cst_115 : f32 to vector<24x8xf32>
    %324 = arith.maximumf %322, %323 : vector<24x8xf32>
    %cst_116 = arith.constant dense<0.000000e+00> : vector<24x32xf32>
    %325 = tpu.matmul %324, %11, %cst_116 {dimension_numbers = #tpu.dot_dimension_numbers<[1], [0], [0], [1], [0, 0, 1, 1], [], []>} : vector<24x8xf32>, vector<8x32xf32>, vector<24x32xf32> -> vector<24x32xf32>
    %cst_117 = arith.constant dense<0.000000e+00> : vector<24x24xf32>
    %326 = tpu.matmul %320, %321, %cst_117 {dimension_numbers = #tpu.dot_dimension_numbers<[1], [1], [0], [0], [0, 0, 1, 0], [], []>} : vector<24x8xf32>, vector<24x8xf32>, vector<24x24xf32> -> vector<24x24xf32>
    %cst_118 = arith.constant -9.000000e+15 : f32
    %327 = vector.broadcast %cst_118 : f32 to vector<24x24xf32>
    %328 = arith.select %17, %327, %326 : vector<24x24xi1>, vector<24x24xf32>
    %cst_119 = arith.constant dense<0xFF800000> : vector<24xf32>
    %329 = vector.multi_reduction <maximumf>, %328, %cst_119 [1] : vector<24x24xf32> to vector<24xf32>
    %330 = vector.shape_cast %329 : vector<24xf32> to vector<24x1xf32>
    %331 = vector.broadcast %330 : vector<24x1xf32> to vector<24x24xf32>
    %332 = arith.subf %328, %331 : vector<24x24xf32>
    %333 = math.exp %332 : vector<24x24xf32>
    %cst_120 = arith.constant dense<0.000000e+00> : vector<24xf32>
    %334 = vector.multi_reduction <add>, %333, %cst_120 [1] : vector<24x24xf32> to vector<24xf32>
    %335 = vector.shape_cast %334 : vector<24xf32> to vector<24x1xf32>
    %336 = tpu.reciprocal %335 : vector<24x1xf32> -> vector<24x1xf32>
    %337 = vector.broadcast %336 : vector<24x1xf32> to vector<24x24xf32>
    %338 = arith.mulf %333, %337 : vector<24x24xf32>
    %cst_121 = arith.constant dense<0.000000e+00> : vector<24x32xf32>
    %339 = tpu.matmul %338, %325, %cst_121 {dimension_numbers = #tpu.dot_dimension_numbers<[1], [0], [0], [1], [0, 0, 1, 1], [], []>} : vector<24x24xf32>, vector<24x32xf32>, vector<24x32xf32> -> vector<24x32xf32>
    %340 = arith.addf %319, %339 : vector<24x32xf32>
    %341 = vector.broadcast %12 : vector<1x32xf32> to vector<24x32xf32>
    %342 = arith.addf %340, %341 : vector<24x32xf32>
    %cst_122 = arith.constant dense<0.000000e+00> : vector<24xf32>
    %343 = vector.multi_reduction <add>, %342, %cst_122 [1] : vector<24x32xf32> to vector<24xf32>
    %344 = vector.shape_cast %343 : vector<24xf32> to vector<24x1xf32>
    %cst_123 = arith.constant 3.200000e+01 : f32
    %345 = vector.broadcast %cst_123 : f32 to vector<24x1xf32>
    %346 = arith.divf %344, %345 : vector<24x1xf32>
    %347 = vector.broadcast %346 : vector<24x1xf32> to vector<24x32xf32>
    %348 = arith.subf %342, %347 : vector<24x32xf32>
    %349 = arith.mulf %348, %348 : vector<24x32xf32>
    %cst_124 = arith.constant dense<0.000000e+00> : vector<24xf32>
    %350 = vector.multi_reduction <add>, %349, %cst_124 [1] : vector<24x32xf32> to vector<24xf32>
    %351 = vector.shape_cast %350 : vector<24xf32> to vector<24x1xf32>
    %cst_125 = arith.constant 0.0322580636 : f32
    %352 = vector.broadcast %cst_125 : f32 to vector<24x1xf32>
    %353 = arith.mulf %351, %352 : vector<24x1xf32>
    %354 = math.sqrt %353 : vector<24x1xf32>
    %355 = vector.broadcast %13 : vector<1x32xf32> to vector<24x32xf32>
    %356 = arith.mulf %355, %348 : vector<24x32xf32>
    %cst_126 = arith.constant 9.99999997E-7 : f32
    %357 = vector.broadcast %cst_126 : f32 to vector<24x1xf32>
    %358 = arith.addf %354, %357 : vector<24x1xf32>
    %359 = vector.broadcast %358 : vector<24x1xf32> to vector<24x32xf32>
    %360 = arith.divf %356, %359 : vector<24x32xf32>
    %361 = vector.broadcast %14 : vector<1x32xf32> to vector<24x32xf32>
    %362 = arith.addf %360, %361 : vector<24x32xf32>
    %cst_127 = arith.constant 0.000000e+00 : f32
    %363 = vector.broadcast %cst_127 : f32 to vector<24x32xf32>
    %364 = arith.maximumf %362, %363 : vector<24x32xf32>
    %c0_128 = arith.constant 0 : index
    %c96 = arith.constant 96 : index
    %c0_129 = arith.constant 0 : index
    %365 = vector.load %arg7[%c0_128, %c96, %c0_129] : memref<1x192x32xf32, #tpu.memory_space<vmem>>, vector<1x24x32xf32>
    %366 = vector.shape_cast %365 : vector<1x24x32xf32> to vector<24x32xf32>
    %367 = vector.shape_cast %364 : vector<24x32xf32> to vector<1x24x32xf32>
    tpu.vector_store %arg7[%c0_128, %c96, %c0_129], %367 {strides = array<i32>} : memref<1x192x32xf32, #tpu.memory_space<vmem>>, vector<1x24x32xf32>,
    %cst_130 = arith.constant 0.000000e+00 : f32
    %368 = vector.broadcast %cst_130 : f32 to vector<24x32xf32>
    %369 = vector.extract_strided_slice %8 {offsets = [120, 0], sizes = [24, 8], strides = [1, 1]} : vector<192x48xf32> to vector<24x8xf32>
    %370 = vector.extract_strided_slice %8 {offsets = [120, 16], sizes = [24, 8], strides = [1, 1]} : vector<192x48xf32> to vector<24x8xf32>
    %371 = vector.extract_strided_slice %8 {offsets = [120, 32], sizes = [24, 8], strides = [1, 1]} : vector<192x48xf32> to vector<24x8xf32>
    %cst_131 = arith.constant 0.000000e+00 : f32
    %372 = vector.broadcast %cst_131 : f32 to vector<24x8xf32>
    %373 = arith.maximumf %371, %372 : vector<24x8xf32>
    %cst_132 = arith.constant dense<0.000000e+00> : vector<24x32xf32>
    %374 = tpu.matmul %373, %10, %cst_132 {dimension_numbers = #tpu.dot_dimension_numbers<[1], [0], [0], [1], [0, 0, 1, 1], [], []>} : vector<24x8xf32>, vector<8x32xf32>, vector<24x32xf32> -> vector<24x32xf32>
    %cst_133 = arith.constant dense<0.000000e+00> : vector<24x24xf32>
    %375 = tpu.matmul %369, %370, %cst_133 {dimension_numbers = #tpu.dot_dimension_numbers<[1], [1], [0], [0], [0, 0, 1, 0], [], []>} : vector<24x8xf32>, vector<24x8xf32>, vector<24x24xf32> -> vector<24x24xf32>
    %cst_134 = arith.constant -9.000000e+15 : f32
    %376 = vector.broadcast %cst_134 : f32 to vector<24x24xf32>
    %377 = arith.select %17, %376, %375 : vector<24x24xi1>, vector<24x24xf32>
    %cst_135 = arith.constant dense<0xFF800000> : vector<24xf32>
    %378 = vector.multi_reduction <maximumf>, %377, %cst_135 [1] : vector<24x24xf32> to vector<24xf32>
    %379 = vector.shape_cast %378 : vector<24xf32> to vector<24x1xf32>
    %380 = vector.broadcast %379 : vector<24x1xf32> to vector<24x24xf32>
    %381 = arith.subf %377, %380 : vector<24x24xf32>
    %382 = math.exp %381 : vector<24x24xf32>
    %cst_136 = arith.constant dense<0.000000e+00> : vector<24xf32>
    %383 = vector.multi_reduction <add>, %382, %cst_136 [1] : vector<24x24xf32> to vector<24xf32>
    %384 = vector.shape_cast %383 : vector<24xf32> to vector<24x1xf32>
    %385 = tpu.reciprocal %384 : vector<24x1xf32> -> vector<24x1xf32>
    %386 = vector.broadcast %385 : vector<24x1xf32> to vector<24x24xf32>
    %387 = arith.mulf %382, %386 : vector<24x24xf32>
    %cst_137 = arith.constant dense<0.000000e+00> : vector<24x32xf32>
    %388 = tpu.matmul %387, %374, %cst_137 {dimension_numbers = #tpu.dot_dimension_numbers<[1], [0], [0], [1], [0, 0, 1, 1], [], []>} : vector<24x24xf32>, vector<24x32xf32>, vector<24x32xf32> -> vector<24x32xf32>
    %389 = arith.addf %368, %388 : vector<24x32xf32>
    %390 = vector.extract_strided_slice %8 {offsets = [120, 8], sizes = [24, 8], strides = [1, 1]} : vector<192x48xf32> to vector<24x8xf32>
    %391 = vector.extract_strided_slice %8 {offsets = [120, 24], sizes = [24, 8], strides = [1, 1]} : vector<192x48xf32> to vector<24x8xf32>
    %392 = vector.extract_strided_slice %8 {offsets = [120, 40], sizes = [24, 8], strides = [1, 1]} : vector<192x48xf32> to vector<24x8xf32>
    %cst_138 = arith.constant 0.000000e+00 : f32
    %393 = vector.broadcast %cst_138 : f32 to vector<24x8xf32>
    %394 = arith.maximumf %392, %393 : vector<24x8xf32>
    %cst_139 = arith.constant dense<0.000000e+00> : vector<24x32xf32>
    %395 = tpu.matmul %394, %11, %cst_139 {dimension_numbers = #tpu.dot_dimension_numbers<[1], [0], [0], [1], [0, 0, 1, 1], [], []>} : vector<24x8xf32>, vector<8x32xf32>, vector<24x32xf32> -> vector<24x32xf32>
    %cst_140 = arith.constant dense<0.000000e+00> : vector<24x24xf32>
    %396 = tpu.matmul %390, %391, %cst_140 {dimension_numbers = #tpu.dot_dimension_numbers<[1], [1], [0], [0], [0, 0, 1, 0], [], []>} : vector<24x8xf32>, vector<24x8xf32>, vector<24x24xf32> -> vector<24x24xf32>
    %cst_141 = arith.constant -9.000000e+15 : f32
    %397 = vector.broadcast %cst_141 : f32 to vector<24x24xf32>
    %398 = arith.select %17, %397, %396 : vector<24x24xi1>, vector<24x24xf32>
    %cst_142 = arith.constant dense<0xFF800000> : vector<24xf32>
    %399 = vector.multi_reduction <maximumf>, %398, %cst_142 [1] : vector<24x24xf32> to vector<24xf32>
    %400 = vector.shape_cast %399 : vector<24xf32> to vector<24x1xf32>
    %401 = vector.broadcast %400 : vector<24x1xf32> to vector<24x24xf32>
    %402 = arith.subf %398, %401 : vector<24x24xf32>
    %403 = math.exp %402 : vector<24x24xf32>
    %cst_143 = arith.constant dense<0.000000e+00> : vector<24xf32>
    %404 = vector.multi_reduction <add>, %403, %cst_143 [1] : vector<24x24xf32> to vector<24xf32>
    %405 = vector.shape_cast %404 : vector<24xf32> to vector<24x1xf32>
    %406 = tpu.reciprocal %405 : vector<24x1xf32> -> vector<24x1xf32>
    %407 = vector.broadcast %406 : vector<24x1xf32> to vector<24x24xf32>
    %408 = arith.mulf %403, %407 : vector<24x24xf32>
    %cst_144 = arith.constant dense<0.000000e+00> : vector<24x32xf32>
    %409 = tpu.matmul %408, %395, %cst_144 {dimension_numbers = #tpu.dot_dimension_numbers<[1], [0], [0], [1], [0, 0, 1, 1], [], []>} : vector<24x24xf32>, vector<24x32xf32>, vector<24x32xf32> -> vector<24x32xf32>
    %410 = arith.addf %389, %409 : vector<24x32xf32>
    %411 = vector.broadcast %12 : vector<1x32xf32> to vector<24x32xf32>
    %412 = arith.addf %410, %411 : vector<24x32xf32>
    %cst_145 = arith.constant dense<0.000000e+00> : vector<24xf32>
    %413 = vector.multi_reduction <add>, %412, %cst_145 [1] : vector<24x32xf32> to vector<24xf32>
    %414 = vector.shape_cast %413 : vector<24xf32> to vector<24x1xf32>
    %cst_146 = arith.constant 3.200000e+01 : f32
    %415 = vector.broadcast %cst_146 : f32 to vector<24x1xf32>
    %416 = arith.divf %414, %415 : vector<24x1xf32>
    %417 = vector.broadcast %416 : vector<24x1xf32> to vector<24x32xf32>
    %418 = arith.subf %412, %417 : vector<24x32xf32>
    %419 = arith.mulf %418, %418 : vector<24x32xf32>
    %cst_147 = arith.constant dense<0.000000e+00> : vector<24xf32>
    %420 = vector.multi_reduction <add>, %419, %cst_147 [1] : vector<24x32xf32> to vector<24xf32>
    %421 = vector.shape_cast %420 : vector<24xf32> to vector<24x1xf32>
    %cst_148 = arith.constant 0.0322580636 : f32
    %422 = vector.broadcast %cst_148 : f32 to vector<24x1xf32>
    %423 = arith.mulf %421, %422 : vector<24x1xf32>
    %424 = math.sqrt %423 : vector<24x1xf32>
    %425 = vector.broadcast %13 : vector<1x32xf32> to vector<24x32xf32>
    %426 = arith.mulf %425, %418 : vector<24x32xf32>
    %cst_149 = arith.constant 9.99999997E-7 : f32
    %427 = vector.broadcast %cst_149 : f32 to vector<24x1xf32>
    %428 = arith.addf %424, %427 : vector<24x1xf32>
    %429 = vector.broadcast %428 : vector<24x1xf32> to vector<24x32xf32>
    %430 = arith.divf %426, %429 : vector<24x32xf32>
    %431 = vector.broadcast %14 : vector<1x32xf32> to vector<24x32xf32>
    %432 = arith.addf %430, %431 : vector<24x32xf32>
    %cst_150 = arith.constant 0.000000e+00 : f32
    %433 = vector.broadcast %cst_150 : f32 to vector<24x32xf32>
    %434 = arith.maximumf %432, %433 : vector<24x32xf32>
    %c0_151 = arith.constant 0 : index
    %c120 = arith.constant 120 : index
    %c0_152 = arith.constant 0 : index
    %435 = vector.load %arg7[%c0_151, %c120, %c0_152] : memref<1x192x32xf32, #tpu.memory_space<vmem>>, vector<1x24x32xf32>
    %436 = vector.shape_cast %435 : vector<1x24x32xf32> to vector<24x32xf32>
    %437 = vector.shape_cast %434 : vector<24x32xf32> to vector<1x24x32xf32>
    tpu.vector_store %arg7[%c0_151, %c120, %c0_152], %437 {strides = array<i32>} : memref<1x192x32xf32, #tpu.memory_space<vmem>>, vector<1x24x32xf32>,
    %cst_153 = arith.constant 0.000000e+00 : f32
    %438 = vector.broadcast %cst_153 : f32 to vector<24x32xf32>
    %439 = vector.extract_strided_slice %8 {offsets = [144, 0], sizes = [24, 8], strides = [1, 1]} : vector<192x48xf32> to vector<24x8xf32>
    %440 = vector.extract_strided_slice %8 {offsets = [144, 16], sizes = [24, 8], strides = [1, 1]} : vector<192x48xf32> to vector<24x8xf32>
    %441 = vector.extract_strided_slice %8 {offsets = [144, 32], sizes = [24, 8], strides = [1, 1]} : vector<192x48xf32> to vector<24x8xf32>
    %cst_154 = arith.constant 0.000000e+00 : f32
    %442 = vector.broadcast %cst_154 : f32 to vector<24x8xf32>
    %443 = arith.maximumf %441, %442 : vector<24x8xf32>
    %cst_155 = arith.constant dense<0.000000e+00> : vector<24x32xf32>
    %444 = tpu.matmul %443, %10, %cst_155 {dimension_numbers = #tpu.dot_dimension_numbers<[1], [0], [0], [1], [0, 0, 1, 1], [], []>} : vector<24x8xf32>, vector<8x32xf32>, vector<24x32xf32> -> vector<24x32xf32>
    %cst_156 = arith.constant dense<0.000000e+00> : vector<24x24xf32>
    %445 = tpu.matmul %439, %440, %cst_156 {dimension_numbers = #tpu.dot_dimension_numbers<[1], [1], [0], [0], [0, 0, 1, 0], [], []>} : vector<24x8xf32>, vector<24x8xf32>, vector<24x24xf32> -> vector<24x24xf32>
    %cst_157 = arith.constant -9.000000e+15 : f32
    %446 = vector.broadcast %cst_157 : f32 to vector<24x24xf32>
    %447 = arith.select %17, %446, %445 : vector<24x24xi1>, vector<24x24xf32>
    %cst_158 = arith.constant dense<0xFF800000> : vector<24xf32>
    %448 = vector.multi_reduction <maximumf>, %447, %cst_158 [1] : vector<24x24xf32> to vector<24xf32>
    %449 = vector.shape_cast %448 : vector<24xf32> to vector<24x1xf32>
    %450 = vector.broadcast %449 : vector<24x1xf32> to vector<24x24xf32>
    %451 = arith.subf %447, %450 : vector<24x24xf32>
    %452 = math.exp %451 : vector<24x24xf32>
    %cst_159 = arith.constant dense<0.000000e+00> : vector<24xf32>
    %453 = vector.multi_reduction <add>, %452, %cst_159 [1] : vector<24x24xf32> to vector<24xf32>
    %454 = vector.shape_cast %453 : vector<24xf32> to vector<24x1xf32>
    %455 = tpu.reciprocal %454 : vector<24x1xf32> -> vector<24x1xf32>
    %456 = vector.broadcast %455 : vector<24x1xf32> to vector<24x24xf32>
    %457 = arith.mulf %452, %456 : vector<24x24xf32>
    %cst_160 = arith.constant dense<0.000000e+00> : vector<24x32xf32>
    %458 = tpu.matmul %457, %444, %cst_160 {dimension_numbers = #tpu.dot_dimension_numbers<[1], [0], [0], [1], [0, 0, 1, 1], [], []>} : vector<24x24xf32>, vector<24x32xf32>, vector<24x32xf32> -> vector<24x32xf32>
    %459 = arith.addf %438, %458 : vector<24x32xf32>
    %460 = vector.extract_strided_slice %8 {offsets = [144, 8], sizes = [24, 8], strides = [1, 1]} : vector<192x48xf32> to vector<24x8xf32>
    %461 = vector.extract_strided_slice %8 {offsets = [144, 24], sizes = [24, 8], strides = [1, 1]} : vector<192x48xf32> to vector<24x8xf32>
    %462 = vector.extract_strided_slice %8 {offsets = [144, 40], sizes = [24, 8], strides = [1, 1]} : vector<192x48xf32> to vector<24x8xf32>
    %cst_161 = arith.constant 0.000000e+00 : f32
    %463 = vector.broadcast %cst_161 : f32 to vector<24x8xf32>
    %464 = arith.maximumf %462, %463 : vector<24x8xf32>
    %cst_162 = arith.constant dense<0.000000e+00> : vector<24x32xf32>
    %465 = tpu.matmul %464, %11, %cst_162 {dimension_numbers = #tpu.dot_dimension_numbers<[1], [0], [0], [1], [0, 0, 1, 1], [], []>} : vector<24x8xf32>, vector<8x32xf32>, vector<24x32xf32> -> vector<24x32xf32>
    %cst_163 = arith.constant dense<0.000000e+00> : vector<24x24xf32>
    %466 = tpu.matmul %460, %461, %cst_163 {dimension_numbers = #tpu.dot_dimension_numbers<[1], [1], [0], [0], [0, 0, 1, 0], [], []>} : vector<24x8xf32>, vector<24x8xf32>, vector<24x24xf32> -> vector<24x24xf32>
    %cst_164 = arith.constant -9.000000e+15 : f32
    %467 = vector.broadcast %cst_164 : f32 to vector<24x24xf32>
    %468 = arith.select %17, %467, %466 : vector<24x24xi1>, vector<24x24xf32>
    %cst_165 = arith.constant dense<0xFF800000> : vector<24xf32>
    %469 = vector.multi_reduction <maximumf>, %468, %cst_165 [1] : vector<24x24xf32> to vector<24xf32>
    %470 = vector.shape_cast %469 : vector<24xf32> to vector<24x1xf32>
    %471 = vector.broadcast %470 : vector<24x1xf32> to vector<24x24xf32>
    %472 = arith.subf %468, %471 : vector<24x24xf32>
    %473 = math.exp %472 : vector<24x24xf32>
    %cst_166 = arith.constant dense<0.000000e+00> : vector<24xf32>
    %474 = vector.multi_reduction <add>, %473, %cst_166 [1] : vector<24x24xf32> to vector<24xf32>
    %475 = vector.shape_cast %474 : vector<24xf32> to vector<24x1xf32>
    %476 = tpu.reciprocal %475 : vector<24x1xf32> -> vector<24x1xf32>
    %477 = vector.broadcast %476 : vector<24x1xf32> to vector<24x24xf32>
    %478 = arith.mulf %473, %477 : vector<24x24xf32>
    %cst_167 = arith.constant dense<0.000000e+00> : vector<24x32xf32>
    %479 = tpu.matmul %478, %465, %cst_167 {dimension_numbers = #tpu.dot_dimension_numbers<[1], [0], [0], [1], [0, 0, 1, 1], [], []>} : vector<24x24xf32>, vector<24x32xf32>, vector<24x32xf32> -> vector<24x32xf32>
    %480 = arith.addf %459, %479 : vector<24x32xf32>
    %481 = vector.broadcast %12 : vector<1x32xf32> to vector<24x32xf32>
    %482 = arith.addf %480, %481 : vector<24x32xf32>
    %cst_168 = arith.constant dense<0.000000e+00> : vector<24xf32>
    %483 = vector.multi_reduction <add>, %482, %cst_168 [1] : vector<24x32xf32> to vector<24xf32>
    %484 = vector.shape_cast %483 : vector<24xf32> to vector<24x1xf32>
    %cst_169 = arith.constant 3.200000e+01 : f32
    %485 = vector.broadcast %cst_169 : f32 to vector<24x1xf32>
    %486 = arith.divf %484, %485 : vector<24x1xf32>
    %487 = vector.broadcast %486 : vector<24x1xf32> to vector<24x32xf32>
    %488 = arith.subf %482, %487 : vector<24x32xf32>
    %489 = arith.mulf %488, %488 : vector<24x32xf32>
    %cst_170 = arith.constant dense<0.000000e+00> : vector<24xf32>
    %490 = vector.multi_reduction <add>, %489, %cst_170 [1] : vector<24x32xf32> to vector<24xf32>
    %491 = vector.shape_cast %490 : vector<24xf32> to vector<24x1xf32>
    %cst_171 = arith.constant 0.0322580636 : f32
    %492 = vector.broadcast %cst_171 : f32 to vector<24x1xf32>
    %493 = arith.mulf %491, %492 : vector<24x1xf32>
    %494 = math.sqrt %493 : vector<24x1xf32>
    %495 = vector.broadcast %13 : vector<1x32xf32> to vector<24x32xf32>
    %496 = arith.mulf %495, %488 : vector<24x32xf32>
    %cst_172 = arith.constant 9.99999997E-7 : f32
    %497 = vector.broadcast %cst_172 : f32 to vector<24x1xf32>
    %498 = arith.addf %494, %497 : vector<24x1xf32>
    %499 = vector.broadcast %498 : vector<24x1xf32> to vector<24x32xf32>
    %500 = arith.divf %496, %499 : vector<24x32xf32>
    %501 = vector.broadcast %14 : vector<1x32xf32> to vector<24x32xf32>
    %502 = arith.addf %500, %501 : vector<24x32xf32>
    %cst_173 = arith.constant 0.000000e+00 : f32
    %503 = vector.broadcast %cst_173 : f32 to vector<24x32xf32>
    %504 = arith.maximumf %502, %503 : vector<24x32xf32>
    %c0_174 = arith.constant 0 : index
    %c144 = arith.constant 144 : index
    %c0_175 = arith.constant 0 : index
    %505 = vector.load %arg7[%c0_174, %c144, %c0_175] : memref<1x192x32xf32, #tpu.memory_space<vmem>>, vector<1x24x32xf32>
    %506 = vector.shape_cast %505 : vector<1x24x32xf32> to vector<24x32xf32>
    %507 = vector.shape_cast %504 : vector<24x32xf32> to vector<1x24x32xf32>
    tpu.vector_store %arg7[%c0_174, %c144, %c0_175], %507 {strides = array<i32>} : memref<1x192x32xf32, #tpu.memory_space<vmem>>, vector<1x24x32xf32>,
    %cst_176 = arith.constant 0.000000e+00 : f32
    %508 = vector.broadcast %cst_176 : f32 to vector<24x32xf32>
    %509 = vector.extract_strided_slice %8 {offsets = [168, 0], sizes = [24, 8], strides = [1, 1]} : vector<192x48xf32> to vector<24x8xf32>
    %510 = vector.extract_strided_slice %8 {offsets = [168, 16], sizes = [24, 8], strides = [1, 1]} : vector<192x48xf32> to vector<24x8xf32>
    %511 = vector.extract_strided_slice %8 {offsets = [168, 32], sizes = [24, 8], strides = [1, 1]} : vector<192x48xf32> to vector<24x8xf32>
    %cst_177 = arith.constant 0.000000e+00 : f32
    %512 = vector.broadcast %cst_177 : f32 to vector<24x8xf32>
    %513 = arith.maximumf %511, %512 : vector<24x8xf32>
    %cst_178 = arith.constant dense<0.000000e+00> : vector<24x32xf32>
    %514 = tpu.matmul %513, %10, %cst_178 {dimension_numbers = #tpu.dot_dimension_numbers<[1], [0], [0], [1], [0, 0, 1, 1], [], []>} : vector<24x8xf32>, vector<8x32xf32>, vector<24x32xf32> -> vector<24x32xf32>
    %cst_179 = arith.constant dense<0.000000e+00> : vector<24x24xf32>
    %515 = tpu.matmul %509, %510, %cst_179 {dimension_numbers = #tpu.dot_dimension_numbers<[1], [1], [0], [0], [0, 0, 1, 0], [], []>} : vector<24x8xf32>, vector<24x8xf32>, vector<24x24xf32> -> vector<24x24xf32>
    %cst_180 = arith.constant -9.000000e+15 : f32
    %516 = vector.broadcast %cst_180 : f32 to vector<24x24xf32>
    %517 = arith.select %17, %516, %515 : vector<24x24xi1>, vector<24x24xf32>
    %cst_181 = arith.constant dense<0xFF800000> : vector<24xf32>
    %518 = vector.multi_reduction <maximumf>, %517, %cst_181 [1] : vector<24x24xf32> to vector<24xf32>
    %519 = vector.shape_cast %518 : vector<24xf32> to vector<24x1xf32>
    %520 = vector.broadcast %519 : vector<24x1xf32> to vector<24x24xf32>
    %521 = arith.subf %517, %520 : vector<24x24xf32>
    %522 = math.exp %521 : vector<24x24xf32>
    %cst_182 = arith.constant dense<0.000000e+00> : vector<24xf32>
    %523 = vector.multi_reduction <add>, %522, %cst_182 [1] : vector<24x24xf32> to vector<24xf32>
    %524 = vector.shape_cast %523 : vector<24xf32> to vector<24x1xf32>
    %525 = tpu.reciprocal %524 : vector<24x1xf32> -> vector<24x1xf32>
    %526 = vector.broadcast %525 : vector<24x1xf32> to vector<24x24xf32>
    %527 = arith.mulf %522, %526 : vector<24x24xf32>
    %cst_183 = arith.constant dense<0.000000e+00> : vector<24x32xf32>
    %528 = tpu.matmul %527, %514, %cst_183 {dimension_numbers = #tpu.dot_dimension_numbers<[1], [0], [0], [1], [0, 0, 1, 1], [], []>} : vector<24x24xf32>, vector<24x32xf32>, vector<24x32xf32> -> vector<24x32xf32>
    %529 = arith.addf %508, %528 : vector<24x32xf32>
    %530 = vector.extract_strided_slice %8 {offsets = [168, 8], sizes = [24, 8], strides = [1, 1]} : vector<192x48xf32> to vector<24x8xf32>
    %531 = vector.extract_strided_slice %8 {offsets = [168, 24], sizes = [24, 8], strides = [1, 1]} : vector<192x48xf32> to vector<24x8xf32>
    %532 = vector.extract_strided_slice %8 {offsets = [168, 40], sizes = [24, 8], strides = [1, 1]} : vector<192x48xf32> to vector<24x8xf32>
    %cst_184 = arith.constant 0.000000e+00 : f32
    %533 = vector.broadcast %cst_184 : f32 to vector<24x8xf32>
    %534 = arith.maximumf %532, %533 : vector<24x8xf32>
    %cst_185 = arith.constant dense<0.000000e+00> : vector<24x32xf32>
    %535 = tpu.matmul %534, %11, %cst_185 {dimension_numbers = #tpu.dot_dimension_numbers<[1], [0], [0], [1], [0, 0, 1, 1], [], []>} : vector<24x8xf32>, vector<8x32xf32>, vector<24x32xf32> -> vector<24x32xf32>
    %cst_186 = arith.constant dense<0.000000e+00> : vector<24x24xf32>
    %536 = tpu.matmul %530, %531, %cst_186 {dimension_numbers = #tpu.dot_dimension_numbers<[1], [1], [0], [0], [0, 0, 1, 0], [], []>} : vector<24x8xf32>, vector<24x8xf32>, vector<24x24xf32> -> vector<24x24xf32>
    %cst_187 = arith.constant -9.000000e+15 : f32
    %537 = vector.broadcast %cst_187 : f32 to vector<24x24xf32>
    %538 = arith.select %17, %537, %536 : vector<24x24xi1>, vector<24x24xf32>
    %cst_188 = arith.constant dense<0xFF800000> : vector<24xf32>
    %539 = vector.multi_reduction <maximumf>, %538, %cst_188 [1] : vector<24x24xf32> to vector<24xf32>
    %540 = vector.shape_cast %539 : vector<24xf32> to vector<24x1xf32>
    %541 = vector.broadcast %540 : vector<24x1xf32> to vector<24x24xf32>
    %542 = arith.subf %538, %541 : vector<24x24xf32>
    %543 = math.exp %542 : vector<24x24xf32>
    %cst_189 = arith.constant dense<0.000000e+00> : vector<24xf32>
    %544 = vector.multi_reduction <add>, %543, %cst_189 [1] : vector<24x24xf32> to vector<24xf32>
    %545 = vector.shape_cast %544 : vector<24xf32> to vector<24x1xf32>
    %546 = tpu.reciprocal %545 : vector<24x1xf32> -> vector<24x1xf32>
    %547 = vector.broadcast %546 : vector<24x1xf32> to vector<24x24xf32>
    %548 = arith.mulf %543, %547 : vector<24x24xf32>
    %cst_190 = arith.constant dense<0.000000e+00> : vector<24x32xf32>
    %549 = tpu.matmul %548, %535, %cst_190 {dimension_numbers = #tpu.dot_dimension_numbers<[1], [0], [0], [1], [0, 0, 1, 1], [], []>} : vector<24x24xf32>, vector<24x32xf32>, vector<24x32xf32> -> vector<24x32xf32>
    %550 = arith.addf %529, %549 : vector<24x32xf32>
    %551 = vector.broadcast %12 : vector<1x32xf32> to vector<24x32xf32>
    %552 = arith.addf %550, %551 : vector<24x32xf32>
    %cst_191 = arith.constant dense<0.000000e+00> : vector<24xf32>
    %553 = vector.multi_reduction <add>, %552, %cst_191 [1] : vector<24x32xf32> to vector<24xf32>
    %554 = vector.shape_cast %553 : vector<24xf32> to vector<24x1xf32>
    %cst_192 = arith.constant 3.200000e+01 : f32
    %555 = vector.broadcast %cst_192 : f32 to vector<24x1xf32>
    %556 = arith.divf %554, %555 : vector<24x1xf32>
    %557 = vector.broadcast %556 : vector<24x1xf32> to vector<24x32xf32>
    %558 = arith.subf %552, %557 : vector<24x32xf32>
    %559 = arith.mulf %558, %558 : vector<24x32xf32>
    %cst_193 = arith.constant dense<0.000000e+00> : vector<24xf32>
    %560 = vector.multi_reduction <add>, %559, %cst_193 [1] : vector<24x32xf32> to vector<24xf32>
    %561 = vector.shape_cast %560 : vector<24xf32> to vector<24x1xf32>
    %cst_194 = arith.constant 0.0322580636 : f32
    %562 = vector.broadcast %cst_194 : f32 to vector<24x1xf32>
    %563 = arith.mulf %561, %562 : vector<24x1xf32>
    %564 = math.sqrt %563 : vector<24x1xf32>
    %565 = vector.broadcast %13 : vector<1x32xf32> to vector<24x32xf32>
    %566 = arith.mulf %565, %558 : vector<24x32xf32>
    %cst_195 = arith.constant 9.99999997E-7 : f32
    %567 = vector.broadcast %cst_195 : f32 to vector<24x1xf32>
    %568 = arith.addf %564, %567 : vector<24x1xf32>
    %569 = vector.broadcast %568 : vector<24x1xf32> to vector<24x32xf32>
    %570 = arith.divf %566, %569 : vector<24x32xf32>
    %571 = vector.broadcast %14 : vector<1x32xf32> to vector<24x32xf32>
    %572 = arith.addf %570, %571 : vector<24x32xf32>
    %cst_196 = arith.constant 0.000000e+00 : f32
    %573 = vector.broadcast %cst_196 : f32 to vector<24x32xf32>
    %574 = arith.maximumf %572, %573 : vector<24x32xf32>
    %c0_197 = arith.constant 0 : index
    %c168 = arith.constant 168 : index
    %c0_198 = arith.constant 0 : index
    %575 = vector.load %arg7[%c0_197, %c168, %c0_198] : memref<1x192x32xf32, #tpu.memory_space<vmem>>, vector<1x24x32xf32>
    %576 = vector.shape_cast %575 : vector<1x24x32xf32> to vector<24x32xf32>
    %577 = vector.shape_cast %574 : vector<24x32xf32> to vector<1x24x32xf32>
    tpu.vector_store %arg7[%c0_197, %c168, %c0_198], %577 {strides = array<i32>} : memref<1x192x32xf32, #tpu.memory_space<vmem>>, vector<1x24x32xf32>,
    return
  }
  func.func @transform_0(%arg0: i32) -> (i32, i32, i32) {
    %c0_i32 = arith.constant 0 : i32
    %c0_i32_0 = arith.constant 0 : i32
    %c0_i32_1 = arith.constant 0 : i32
    return %arg0, %c0_i32, %c0_i32_0 : i32, i32, i32
  }
  func.func @transform_1(%arg0: i32) -> (i32, i32) {
    %c0_i32 = arith.constant 0 : i32
    %c0_i32_0 = arith.constant 0 : i32
    %c0_i32_1 = arith.constant 0 : i32
    return %c0_i32, %c0_i32_0 : i32, i32
  }
  func.func @transform_2(%arg0: i32) -> (i32, i32) {
    %c0_i32 = arith.constant 0 : i32
    %c0_i32_0 = arith.constant 0 : i32
    %c0_i32_1 = arith.constant 0 : i32
    return %c0_i32, %c0_i32_0 : i32, i32
  }
  func.func @transform_3(%arg0: i32) -> (i32, i32) {
    %c0_i32 = arith.constant 0 : i32
    %c0_i32_0 = arith.constant 0 : i32
    %c0_i32_1 = arith.constant 0 : i32
    return %c0_i32, %c0_i32_0 : i32, i32
  }
  func.func @transform_4(%arg0: i32) -> (i32, i32) {
    %c0_i32 = arith.constant 0 : i32
    %c0_i32_0 = arith.constant 0 : i32
    %c0_i32_1 = arith.constant 0 : i32
    return %c0_i32, %c0_i32_0 : i32, i32
  }
  func.func @transform_5(%arg0: i32) -> (i32, i32) {
    %c0_i32 = arith.constant 0 : i32
    %c0_i32_0 = arith.constant 0 : i32
    %c0_i32_1 = arith.constant 0 : i32
    return %c0_i32, %c0_i32_0 : i32, i32
  }
  func.func @transform_6(%arg0: i32) -> (i32, i32, i32) {
    %c0_i32 = arith.constant 0 : i32
    %c0_i32_0 = arith.constant 0 : i32
    %c0_i32_1 = arith.constant 0 : i32
    return %arg0, %c0_i32, %c0_i32_0 : i32, i32, i32
  }
}

</mosaic_0001>

<llo_original>
// kernel: _transformer_layer.1
$region0: #{_transformer_layer.1}
  #allocation0 [shape = 'u32[]', space=smem, size = 0x4, offset = 0x4, fixed_abs, tag = 'smem constant byte address 0x4 - core index']
  #allocation1 [shape = 'u32[72,128]{1,0:T(1,128)}', space=vmem, size = 0x9000, scoped, tag = 'internal scratch']
  %s0 = inlined_call_operand.vmem [shape: f32[2,192,32], index: 0, kind: input, shape index: {}]
  %s1 = inlined_call_operand.vmem [shape: f32[192,32], index: 1, kind: input, shape index: {}]
  %s2 = inlined_call_operand.vmem [shape: f32[32,48], index: 2, kind: input, shape index: {}]
  %s3 = inlined_call_operand.vmem [shape: f32[1,48], index: 3, kind: input, shape index: {}]
  %s4 = inlined_call_operand.vmem [shape: f32[16,32], index: 4, kind: input, shape index: {}]
  %s5 = inlined_call_operand.vmem [shape: f32[3,32], index: 5, kind: input, shape index: {}]
  %s6 = inlined_call_operand.vmem [shape: f32[2,192,32], index: 6, kind: output, shape index: {}]
  %s7 = sld [smem:[#allocation0]]
  $region57: #{_transformer_layer.1} parent=0
    _
  %s9 = ssub.s32 1, %s7
  %s10 = scalar_select 0, %s9, %s7
  loop: start=0, step=1, limit=4
  $region2: #{_transformer_layer.1} parent=0 // loop_pre_header
    _
  $region3: #{_transformer_layer.1} parent=0 // loop_header
    %s12 = sphi 0, %s16
    %p13 = scmp.ge.s32.totalorder %s12, 4
    %s22 = sphi 0, %s24
    %s25 = sphi 0, %s22
    %s26 = sphi 0, %s25
    %s42 = sphi 0, %s26
    %s46 = sphi 0, %s46
    %s48 = sphi 0, %s46
    %s49 = sphi 0, %s48
    %s63 = sphi 0, %s49
    %s67 = sphi 0, %s67
    %s69 = sphi 0, %s67
    %s70 = sphi 0, %s69
    %s84 = sphi 0, %s70
    %s88 = sphi 0, %s88
    %s90 = sphi 0, %s88
    %s91 = sphi 0, %s90
    %s105 = sphi 0, %s91
    %s109 = sphi 0, %s109
    %s111 = sphi 0, %s109
    %s112 = sphi 0, %s111
    %s126 = sphi 0, %s112
    %s130 = sphi 0, %s130
    %s132 = sphi 0, %s130
    %s133 = sphi 0, %s132
    %s147 = sphi 0, %s133
    %s153 = sphi 0, %s155
    %s156 = sphi 0, %s153
    %s157 = sphi 0, %s156
    %s173 = sphi 0, %s157
  $region4: #{_transformer_layer.1} parent=0 // loop_header_branch
    %15 = sbr.rel (%p13) target = $region8
  $region5: #{_transformer_layer.1} parent=0 // loop_body
    %s17 = ssub.s32 %s12, 1
    %s18 = ssub.s32 %s12, 2
    %s19 = sadd.s32 %s12, 1
    %s20 = ssub.s32 %s12, %s19
    %p21 = scmp.eq.s32.totalorder %s20, 0
    %s23 = sadd.s32 %s22, 1
    %s24 = scalar_select %p21, %s22, %s23
    %p27 = pneg %p21
    %p28 = scmp.eq.s32.totalorder %s12, 1
    %p29 = por %p27, %p28
    %p30 = scmp.ne.s32.totalorder %s22, %s25
    %p31 = scmp.eq.s32.totalorder %s12, 0
    %p32 = por %p30, %p31
    %p33 = scmp.ne.s32.totalorder %s22, %s25
    %p34 = scmp.eq.s32.totalorder %s17, 1
    %p35 = por %p33, %p34
    %p36 = scmp.ne.s32.totalorder %s25, %s26
    %p37 = scmp.eq.s32.totalorder %s17, 0
    %p38 = por %p36, %p37
    %p39 = scmp.ne.s32.totalorder %s25, %s26
    %p40 = scmp.eq.s32.totalorder %s18, 1
    %p41 = por %p39, %p40
    %p43 = scmp.ne.s32.totalorder %s26, %s42
    %p44 = scmp.eq.s32.totalorder %s18, 0
    %p45 = por %p43, %p44
    %s47 = sadd.s32 %s46, 1
    %p50 = scmp.eq.s32.totalorder %s12, 1
    %p51 = scmp.ne.s32.totalorder %s46, %s48
    %p52 = scmp.eq.s32.totalorder %s12, 0
    %p53 = por %p51, %p52
    %p54 = scmp.ne.s32.totalorder %s46, %s48
    %p55 = scmp.eq.s32.totalorder %s17, 1
    %p56 = por %p54, %p55
    %p57 = scmp.ne.s32.totalorder %s48, %s49
    %p58 = scmp.eq.s32.totalorder %s17, 0
    %p59 = por %p57, %p58
    %p60 = scmp.ne.s32.totalorder %s48, %s49
    %p61 = scmp.eq.s32.totalorder %s18, 1
    %p62 = por %p60, %p61
    %p64 = scmp.ne.s32.totalorder %s49, %s63
    %p65 = scmp.eq.s32.totalorder %s18, 0
    %p66 = por %p64, %p65
    %s68 = sadd.s32 %s67, 1
    %p71 = scmp.eq.s32.totalorder %s12, 1
    %p72 = scmp.ne.s32.totalorder %s67, %s69
    %p73 = scmp.eq.s32.totalorder %s12, 0
    %p74 = por %p72, %p73
    %p75 = scmp.ne.s32.totalorder %s67, %s69
    %p76 = scmp.eq.s32.totalorder %s17, 1
    %p77 = por %p75, %p76
    %p78 = scmp.ne.s32.totalorder %s69, %s70
    %p79 = scmp.eq.s32.totalorder %s17, 0
    %p80 = por %p78, %p79
    %p81 = scmp.ne.s32.totalorder %s69, %s70
    %p82 = scmp.eq.s32.totalorder %s18, 1
    %p83 = por %p81, %p82
    %p85 = scmp.ne.s32.totalorder %s70, %s84
    %p86 = scmp.eq.s32.totalorder %s18, 0
    %p87 = por %p85, %p86
    %s89 = sadd.s32 %s88, 1
    %p92 = scmp.eq.s32.totalorder %s12, 1
    %p93 = scmp.ne.s32.totalorder %s88, %s90
    %p94 = scmp.eq.s32.totalorder %s12, 0
    %p95 = por %p93, %p94
    %p96 = scmp.ne.s32.totalorder %s88, %s90
    %p97 = scmp.eq.s32.totalorder %s17, 1
    %p98 = por %p96, %p97
    %p99 = scmp.ne.s32.totalorder %s90, %s91
    %p100 = scmp.eq.s32.totalorder %s17, 0
    %p101 = por %p99, %p100
    %p102 = scmp.ne.s32.totalorder %s90, %s91
    %p103 = scmp.eq.s32.totalorder %s18, 1
    %p104 = por %p102, %p103
    %p106 = scmp.ne.s32.totalorder %s91, %s105
    %p107 = scmp.eq.s32.totalorder %s18, 0
    %p108 = por %p106, %p107
    %s110 = sadd.s32 %s109, 1
    %p113 = scmp.eq.s32.totalorder %s12, 1
    %p114 = scmp.ne.s32.totalorder %s109, %s111
    %p115 = scmp.eq.s32.totalorder %s12, 0
    %p116 = por %p114, %p115
    %p117 = scmp.ne.s32.totalorder %s109, %s111
    %p118 = scmp.eq.s32.totalorder %s17, 1
    %p119 = por %p117, %p118
    %p120 = scmp.ne.s32.totalorder %s111, %s112
    %p121 = scmp.eq.s32.totalorder %s17, 0
    %p122 = por %p120, %p121
    %p123 = scmp.ne.s32.totalorder %s111, %s112
    %p124 = scmp.eq.s32.totalorder %s18, 1
    %p125 = por %p123, %p124
    %p127 = scmp.ne.s32.totalorder %s112, %s126
    %p128 = scmp.eq.s32.totalorder %s18, 0
    %p129 = por %p127, %p128
    %s131 = sadd.s32 %s130, 1
    %p134 = scmp.eq.s32.totalorder %s12, 1
    %p135 = scmp.ne.s32.totalorder %s130, %s132
    %p136 = scmp.eq.s32.totalorder %s12, 0
    %p137 = por %p135, %p136
    %p138 = scmp.ne.s32.totalorder %s130, %s132
    %p139 = scmp.eq.s32.totalorder %s17, 1
    %p140 = por %p138, %p139
    %p141 = scmp.ne.s32.totalorder %s132, %s133
    %p142 = scmp.eq.s32.totalorder %s17, 0
    %p143 = por %p141, %p142
    %p144 = scmp.ne.s32.totalorder %s132, %s133
    %p145 = scmp.eq.s32.totalorder %s18, 1
    %p146 = por %p144, %p145
    %p148 = scmp.ne.s32.totalorder %s133, %s147
    %p149 = scmp.eq.s32.totalorder %s18, 0
    %p150 = por %p148, %p149
    %s151 = ssub.s32 %s12, %s19
    %p152 = scmp.eq.s32.totalorder %s151, 0
    %s154 = sadd.s32 %s153, 1
    %s155 = scalar_select %p152, %s153, %s154
    %p158 = pneg %p152
    %p159 = scmp.eq.s32.totalorder %s12, 1
    %p160 = por %p158, %p159
    %p161 = scmp.ne.s32.totalorder %s153, %s156
    %p162 = scmp.eq.s32.totalorder %s12, 0
    %p163 = por %p161, %p162
    %p164 = scmp.ne.s32.totalorder %s153, %s156
    %p165 = scmp.eq.s32.totalorder %s17, 1
    %p166 = por %p164, %p165
    %p167 = scmp.ne.s32.totalorder %s156, %s157
    %p168 = scmp.eq.s32.totalorder %s17, 0
    %p169 = por %p167, %p168
    %p170 = scmp.ne.s32.totalorder %s156, %s157
    %p171 = scmp.eq.s32.totalorder %s18, 1
    %p172 = por %p170, %p171
    %p174 = scmp.ne.s32.totalorder %s157, %s173
    %p175 = scmp.eq.s32.totalorder %s18, 0
    %p176 = por %p174, %p175
    %p177 = scmp.le.s32.totalorder 1, %s12
    %p178 = scmp.lt.s32.totalorder %s12, 3
    %p179 = pnand %p177, %p178
    %p180 = pneg %p179
    // Predicated region
    $region9: #{_transformer_layer.1} parent=5 // pred_check
      _
    $region10: #{_transformer_layer.1} parent=5 // pred_check_branch
      %182 = sbr.rel (%p179) target = $region12
    $region11: #{_transformer_layer.1} parent=5 // pred_region
      %s183 = ssub.s32 %s12, 1
      // Predicated region
      $region13: #{_transformer_layer.1} parent=11 // pred_check
        %p184 = pneg %p59
      $region14: #{_transformer_layer.1} parent=11 // pred_check_branch
        %186 = sbr.rel (%p184) target = $region16
      $region15: #{_transformer_layer.1} parent=11 // pred_region
        _
      $region16: #{_transformer_layer.1} parent=11 // pred_fallthru
        _
      // Predicated region
      $region17: #{_transformer_layer.1} parent=11 // pred_check
        %p187 = pneg %p80
      $region18: #{_transformer_layer.1} parent=11 // pred_check_branch
        %189 = sbr.rel (%p187) target = $region20
      $region19: #{_transformer_layer.1} parent=11 // pred_region
        _
      $region20: #{_transformer_layer.1} parent=11 // pred_fallthru
        _
      // Predicated region
      $region21: #{_transformer_layer.1} parent=11 // pred_check
        %p190 = pneg %p101
      $region22: #{_transformer_layer.1} parent=11 // pred_check_branch
        %192 = sbr.rel (%p190) target = $region24
      $region23: #{_transformer_layer.1} parent=11 // pred_region
        _
      $region24: #{_transformer_layer.1} parent=11 // pred_fallthru
        _
      // Predicated region
      $region25: #{_transformer_layer.1} parent=11 // pred_check
        %p193 = pneg %p122
      $region26: #{_transformer_layer.1} parent=11 // pred_check_branch
        %195 = sbr.rel (%p193) target = $region28
      $region27: #{_transformer_layer.1} parent=11 // pred_region
        _
      $region28: #{_transformer_layer.1} parent=11 // pred_fallthru
        _
      // Predicated region
      $region29: #{_transformer_layer.1} parent=11 // pred_check
        %p196 = pneg %p143
      $region30: #{_transformer_layer.1} parent=11 // pred_check_branch
        %198 = sbr.rel (%p196) target = $region32
      $region31: #{_transformer_layer.1} parent=11 // pred_region
        _
      $region32: #{_transformer_layer.1} parent=11 // pred_fallthru
        _
    $region12: #{_transformer_layer.1} parent=5 // pred_fallthru
      _
    %p199 = scmp.lt.s32.totalorder %s12, 2
    // Predicated region
    $region33: #{_transformer_layer.1} parent=5 // pred_check
      %p200 = pneg %p199
    $region34: #{_transformer_layer.1} parent=5 // pred_check_branch
      %202 = sbr.rel (%p200) target = $region36
    $region35: #{_transformer_layer.1} parent=5 // pred_region
      // Predicated region
      $region37: #{_transformer_layer.1} parent=35 // pred_check
        %p203 = pneg %p32
      $region38: #{_transformer_layer.1} parent=35 // pred_check_branch
        %205 = sbr.rel (%p203) target = $region40
      $region39: #{_transformer_layer.1} parent=35 // pred_region
        %p206 = scmp.lt.s32.totalorder %s12, 1
        %s207 = scalar_select %p206, %s12, 1
        %s208 = smul.addr %s207, 24
        %s209 = smul.addr %s208, 8
        %s210 = scalar_lea.vmem %s0, %s209
      $region40: #{_transformer_layer.1} parent=35 // pred_fallthru
        _
    $region36: #{_transformer_layer.1} parent=5 // pred_fallthru
      _
    %p211 = scmp.le.s32.totalorder 1, %s12
    %p212 = scmp.lt.s32.totalorder %s12, 3
    %p213 = pnand %p211, %p212
    %p214 = pneg %p213
    // Predicated region
    $region41: #{_transformer_layer.1} parent=5 // pred_check
      _
    $region42: #{_transformer_layer.1} parent=5 // pred_check_branch
      %216 = sbr.rel (%p213) target = $region44
    $region43: #{_transformer_layer.1} parent=5 // pred_region
      %s217 = ssub.s32 %s12, 1
      %p218 = scmp.lt.s32.totalorder %s17, 1
      %s219 = scalar_select %p218, %s17, 1
      %s220 = smul.addr %s219, 24
      %s221 = smul.addr %s220, 8
      %s222 = scalar_lea.vmem %s0, %s221
      %p223 = pneg %p38
      %p224 = pneg %p35
      %p225 = pneg %p59
      %p226 = pneg %p56
      %p227 = pneg %p80
      %p228 = pneg %p77
      %p229 = pneg %p101
      %p230 = pneg %p98
      %p231 = pneg %p122
      %p232 = pneg %p119
      %p233 = pneg %p143
      %p234 = pneg %p140
      %p235 = pneg %p169
      %p236 = pneg %p166
      %p237 = scmp.lt.s32.totalorder %s17, 1
      %s238 = scalar_select %p237, %s17, 1
      %s239 = smul.addr %s238, 24
      %s240 = smul.addr %s239, 8
      %s241 = scalar_lea.vmem %s6, %s240
      %p242 = scmp.lt.s32.totalorder %s17, 1
      %s243 = scalar_select %p242, %s17, 1
      %s244 = smul.addr %s243, 24
      %s245 = smul.addr %s244, 8
      %s246 = scalar_lea.vmem %s0, %s245
      %p247 = scmp.lt.s32.totalorder %s17, 1
      %s248 = scalar_select %p247, %s17, 1
      %s249 = smul.addr %s248, 24
      %s250 = smul.addr %s249, 8
      %s251 = scalar_lea.vmem %s6, %s250
      %v252 = vld [vmem:[%s246] sm:$0xff]
      %v253 = vld [vmem:[%s246 + $0x8] sm:$0xff]
      %v254 = vld [vmem:[%s246 + $0x10] sm:$0xff]
      %v255 = vld [vmem:[%s246 + $0x18] sm:$0xff]
      %v256 = vld [vmem:[%s246 + $0x20] sm:$0xff]
      %v257 = vld [vmem:[%s246 + $0x28] sm:$0xff]
      %v258 = vld [vmem:[%s246 + $0x30] sm:$0xff]
      %v259 = vld [vmem:[%s246 + $0x38] sm:$0xff]
      %v260 = vld [vmem:[%s246 + $0x40] sm:$0xff]
      %v261 = vld [vmem:[%s246 + $0x48] sm:$0xff]
      %v262 = vld [vmem:[%s246 + $0x50] sm:$0xff]
      %v263 = vld [vmem:[%s246 + $0x58] sm:$0xff]
      %v264 = vld [vmem:[%s246 + $0x60] sm:$0xff]
      %v265 = vld [vmem:[%s246 + $0x68] sm:$0xff]
      %v266 = vld [vmem:[%s246 + $0x70] sm:$0xff]
      %v267 = vld [vmem:[%s246 + $0x78] sm:$0xff]
      %v268 = vld [vmem:[%s246 + $0x80] sm:$0xff]
      %v269 = vld [vmem:[%s246 + $0x88] sm:$0xff]
      %v270 = vld [vmem:[%s246 + $0x90] sm:$0xff]
      %v271 = vld [vmem:[%s246 + $0x98] sm:$0xff]
      %v272 = vld [vmem:[%s246 + $0xa0] sm:$0xff]
      %v273 = vld [vmem:[%s246 + $0xa8] sm:$0xff]
      %v274 = vld [vmem:[%s246 + $0xb0] sm:$0xff]
      %v275 = vld [vmem:[%s246 + $0xb8] sm:$0xff]
      %v276 = vld [vmem:[%s1] sm:$0xff]
      %v277 = vld [vmem:[%s1 + $0x8] sm:$0xff]
      %v278 = vld [vmem:[%s1 + $0x10] sm:$0xff]
      %v279 = vld [vmem:[%s1 + $0x18] sm:$0xff]
      %v280 = vld [vmem:[%s1 + $0x20] sm:$0xff]
      %v281 = vld [vmem:[%s1 + $0x28] sm:$0xff]
      %v282 = vld [vmem:[%s1 + $0x30] sm:$0xff]
      %v283 = vld [vmem:[%s1 + $0x38] sm:$0xff]
      %v284 = vld [vmem:[%s1 + $0x40] sm:$0xff]
      %v285 = vld [vmem:[%s1 + $0x48] sm:$0xff]
      %v286 = vld [vmem:[%s1 + $0x50] sm:$0xff]
      %v287 = vld [vmem:[%s1 + $0x58] sm:$0xff]
      %v288 = vld [vmem:[%s1 + $0x60] sm:$0xff]
      %v289 = vld [vmem:[%s1 + $0x68] sm:$0xff]
      %v290 = vld [vmem:[%s1 + $0x70] sm:$0xff]
      %v291 = vld [vmem:[%s1 + $0x78] sm:$0xff]
      %v292 = vld [vmem:[%s1 + $0x80] sm:$0xff]
      %v293 = vld [vmem:[%s1 + $0x88] sm:$0xff]
      %v294 = vld [vmem:[%s1 + $0x90] sm:$0xff]
      %v295 = vld [vmem:[%s1 + $0x98] sm:$0xff]
      %v296 = vld [vmem:[%s1 + $0xa0] sm:$0xff]
      %v297 = vld [vmem:[%s1 + $0xa8] sm:$0xff]
      %v298 = vld [vmem:[%s1 + $0xb0] sm:$0xff]
      %v299 = vld [vmem:[%s1 + $0xb8] sm:$0xff]
      %v300 = vadd.f32 %v252, %v276
      %v301 = vadd.f32 %v253, %v277
      %v302 = vadd.f32 %v254, %v278
      %v303 = vadd.f32 %v255, %v279
      %v304 = vadd.f32 %v256, %v280
      %v305 = vadd.f32 %v257, %v281
      %v306 = vadd.f32 %v258, %v282
      %v307 = vadd.f32 %v259, %v283
      %v308 = vadd.f32 %v260, %v284
      %v309 = vadd.f32 %v261, %v285
      %v310 = vadd.f32 %v262, %v286
      %v311 = vadd.f32 %v263, %v287
      %v312 = vadd.f32 %v264, %v288
      %v313 = vadd.f32 %v265, %v289
      %v314 = vadd.f32 %v266, %v290
      %v315 = vadd.f32 %v267, %v291
      %v316 = vadd.f32 %v268, %v292
      %v317 = vadd.f32 %v269, %v293
      %v318 = vadd.f32 %v270, %v294
      %v319 = vadd.f32 %v271, %v295
      %v320 = vadd.f32 %v272, %v296
      %v321 = vadd.f32 %v273, %v297
      %v322 = vadd.f32 %v274, %v298
      %v323 = vadd.f32 %v275, %v299
      %v324 = vld [vmem:[%s2] sm:$0xff]
      %v325 = vld [vmem:[%s2 + $0x8] sm:$0xff]
      %v326 = vld [vmem:[%s2 + $0x10] sm:$0xff]
      %v327 = vld [vmem:[%s2 + $0x18] sm:$0xff]
      %v328 = vld [vmem:[%s3] sm:$0x1]
      %v330 = vperm.slane %v328, 0
      %vm332 = vcmask 261120
      %v334 = vsel %vm332, %v300, 0
      %v337 = vsel %vm332, %v301, 0
      %v340 = vsel %vm332, %v302, 0
      %v343 = vsel %vm332, %v303, 0
      %v346 = vsel %vm332, %v304, 0
      %v349 = vsel %vm332, %v305, 0
      %v352 = vsel %vm332, %v306, 0
      %v355 = vsel %vm332, %v307, 0
      %v358 = vsel %vm332, %v308, 0
      %v361 = vsel %vm332, %v309, 0
      %v364 = vsel %vm332, %v310, 0
      %v367 = vsel %vm332, %v311, 0
      %v370 = vsel %vm332, %v312, 0
      %v373 = vsel %vm332, %v313, 0
      %v376 = vsel %vm332, %v314, 0
      %v379 = vsel %vm332, %v315, 0
      %v382 = vsel %vm332, %v316, 0
      %v385 = vsel %vm332, %v317, 0
      %v388 = vsel %vm332, %v318, 0
      %v391 = vsel %vm332, %v319, 0
      %v394 = vsel %vm332, %v320, 0
      %v397 = vsel %vm332, %v321, 0
      %v400 = vsel %vm332, %v322, 0
      %v403 = vsel %vm332, %v323, 0
      %405 = vmatpush.msra.mxu0 0.0
      %406 = vmatpush.msra.mxu0 0.0
      %407 = vmatpush.msra.mxu0 0.0
      %408 = vmatpush.msra.mxu0 0.0
      %409 = vmatpush.msra.mxu0 0.0
      %410 = vmatpush.msra.mxu0 0.0
      %411 = vmatpush.msra.mxu0 0.0
      %412 = vmatpush.msra.mxu0 0.0
      %413 = vmatpush.msra.mxu0 0.0
      %414 = vmatpush.msra.mxu0 0.0
      %415 = vmatpush.msra.mxu0 0.0
      %416 = vmatpush.msra.mxu0 0.0
      %417 = vmatpush.msra.mxu0 %v327
      %418 = vmatpush.msra.mxu0 %v326
      %419 = vmatpush.msra.mxu0 %v325
      %420 = vmatpush.msra.mxu0 %v324
      %421 = vmatmul.f32.gmra.mxu0 %v334
      %v422 = vpop.f32.mrf.mxu0
      %v423 = vadd.f32 %v330, %v422
      %424 = vmatmul.f32.gmra.mxu0 %v337
      %v425 = vpop.f32.mrf.mxu0
      %v426 = vadd.f32 %v330, %v425
      %427 = vmatmul.f32.gmra.mxu0 %v340
      %v428 = vpop.f32.mrf.mxu0
      %v429 = vadd.f32 %v330, %v428
      %430 = vmatmul.f32.gmra.mxu0 %v343
      %v431 = vpop.f32.mrf.mxu0
      %v432 = vadd.f32 %v330, %v431
      %433 = vmatmul.f32.gmra.mxu0 %v346
      %v434 = vpop.f32.mrf.mxu0
      %v435 = vadd.f32 %v330, %v434
      %436 = vmatmul.f32.gmra.mxu0 %v349
      %v437 = vpop.f32.mrf.mxu0
      %v438 = vadd.f32 %v330, %v437
      %439 = vmatmul.f32.gmra.mxu0 %v352
      %v440 = vpop.f32.mrf.mxu0
      %v441 = vadd.f32 %v330, %v440
      %442 = vmatmul.f32.gmra.mxu0 %v355
      %v443 = vpop.f32.mrf.mxu0
      %v444 = vadd.f32 %v330, %v443
      %445 = vmatmul.f32.gmra.mxu0 %v358
      %v446 = vpop.f32.mrf.mxu0
      %v447 = vadd.f32 %v330, %v446
      %448 = vmatmul.f32.gmra.mxu0 %v361
      %v449 = vpop.f32.mrf.mxu0
      %v450 = vadd.f32 %v330, %v449
      %451 = vmatmul.f32.gmra.mxu0 %v364
      %v452 = vpop.f32.mrf.mxu0
      %v453 = vadd.f32 %v330, %v452
      %454 = vmatmul.f32.gmra.mxu0 %v367
      %v455 = vpop.f32.mrf.mxu0
      %v456 = vadd.f32 %v330, %v455
      %457 = vmatmul.f32.gmra.mxu0 %v370
      %v458 = vpop.f32.mrf.mxu0
      %v459 = vadd.f32 %v330, %v458
      %460 = vmatmul.f32.gmra.mxu0 %v373
      %v461 = vpop.f32.mrf.mxu0
      %v462 = vadd.f32 %v330, %v461
      %463 = vmatmul.f32.gmra.mxu0 %v376
      %v464 = vpop.f32.mrf.mxu0
      %v465 = vadd.f32 %v330, %v464
      %466 = vmatmul.f32.gmra.mxu0 %v379
      %v467 = vpop.f32.mrf.mxu0
      %v468 = vadd.f32 %v330, %v467
      %469 = vmatmul.f32.gmra.mxu0 %v382
      %v470 = vpop.f32.mrf.mxu0
      %v471 = vadd.f32 %v330, %v470
      %472 = vmatmul.f32.gmra.mxu0 %v385
      %v473 = vpop.f32.mrf.mxu0
      %v474 = vadd.f32 %v330, %v473
      %475 = vmatmul.f32.gmra.mxu0 %v388
      %v476 = vpop.f32.mrf.mxu0
      %v477 = vadd.f32 %v330, %v476
      %478 = vmatmul.f32.gmra.mxu0 %v391
      %v479 = vpop.f32.mrf.mxu0
      %v480 = vadd.f32 %v330, %v479
      %481 = vmatmul.f32.gmra.mxu0 %v394
      %v482 = vpop.f32.mrf.mxu0
      %v483 = vadd.f32 %v330, %v482
      %484 = vmatmul.f32.gmra.mxu0 %v397
      %v485 = vpop.f32.mrf.mxu0
      %v486 = vadd.f32 %v330, %v485
      %487 = vmatmul.f32.gmra.mxu0 %v400
      %v488 = vpop.f32.mrf.mxu0
      %v489 = vadd.f32 %v330, %v488
      %490 = vmatmul.f32.gmra.mxu0 %v403
      %v491 = vpop.f32.mrf.mxu0
      %v492 = vadd.f32 %v330, %v491
      %493 = vdwg.mxu0
      %v494 = vld [vmem:[%s4] sm:$0xff]
      %v495 = vld [vmem:[%s4 + $0x8] sm:$0xff]
      %v496 = vld [vmem:[%s5] sm:$0x1]
      %v497 = vld [vmem:[%s5 + $0x1] sm:$0x1]
      %v498 = vld [vmem:[%s5 + $0x2] sm:$0x1]
      %v499 = vlaneseq
      %v500 = vand.u32 %v499, 127
      %vm501 = vcmp.ge.s32.totalorder %v500, 22
      %v502 = vmax.f32 %v423, 0.0
      %v503 = vmax.f32 %v426, 0.0
      %v504 = vmax.f32 %v429, 0.0
      %508 = vrot.lane.b32.xlu0 %v502, 96
      %v509 = vpop.permute.xlu0 %508
      %510 = vrot.lane.b32.xlu0 %v503, 96
      %v511 = vpop.permute.xlu0 %510
      %512 = vrot.lane.b32.xlu0 %v504, 96
      %v513 = vpop.permute.xlu0 %512
      %vm514 = vcmask 64512
      %v515 = vsel %vm514, %v509, 0
      %v517 = vsel %vm514, %v511, 0
      %v519 = vsel %vm514, %v513, 0
      %521 = vmatpush.msra.mxu0 0.0
      %522 = vmatpush.msra.mxu0 0.0
      %523 = vmatpush.msra.mxu0 0.0
      %524 = vmatpush.msra.mxu0 0.0
      %525 = vmatpush.msra.mxu0 0.0
      %526 = vmatpush.msra.mxu0 0.0
      %527 = vmatpush.msra.mxu0 0.0
      %528 = vmatpush.msra.mxu0 0.0
      %529 = vmatpush.msra.mxu0 0.0
      %530 = vmatpush.msra.mxu0 0.0
      %531 = vmatpush.msra.mxu0 0.0
      %532 = vmatpush.msra.mxu0 0.0
      %533 = vmatpush.msra.mxu0 0.0
      %534 = vmatpush.msra.mxu0 0.0
      %535 = vmatpush.msra.mxu0 0.0
      %536 = vmatpush.msra.mxu0 %v494
      %537 = vmatmul.f32.gmra.mxu0 %v515
      %v538 = vpop.f32.mrf.mxu0
      %v539 = vadd.f32 0.0, %v538
      %540 = vmatmul.f32.gmra.mxu0 %v517
      %v541 = vpop.f32.mrf.mxu0
      %v542 = vadd.f32 0.0, %v541
      %543 = vmatmul.f32.gmra.mxu0 %v519
      %v544 = vpop.f32.mrf.mxu0
      %v545 = vadd.f32 0.0, %v544
      %546 = vdwg.mxu0
      %550 = vrot.lane.b32.xlu0 %v423, 112
      %v551 = vpop.permute.xlu0 %550
      %552 = vrot.lane.b32.xlu0 %v426, 112
      %v553 = vpop.permute.xlu0 %552
      %554 = vrot.lane.b32.xlu0 %v429, 112
      %v555 = vpop.permute.xlu0 %554
      %v556 = vsel %vm514, %v423, 0
      %v558 = vsel %vm514, %v426, 0
      %v560 = vsel %vm514, %v429, 0
      %v562 = vsel %vm514, %v551, 0
      %v564 = vsel %vm514, %v553, 0
      %v566 = vsel %vm514, %v555, 0
      %568 = vmatpush.xpose.msra.mxu0 0.0
      %569 = vmatpush.xpose.msra.mxu0 0.0
      %570 = vmatpush.xpose.msra.mxu0 0.0
      %571 = vmatpush.xpose.msra.mxu0 0.0
      %572 = vmatpush.xpose.msra.mxu0 0.0
      %573 = vmatpush.xpose.msra.mxu0 0.0
      %574 = vmatpush.xpose.msra.mxu0 0.0
      %575 = vmatpush.xpose.msra.mxu0 0.0
      %576 = vmatpush.xpose.msra.mxu0 0.0
      %577 = vmatpush.xpose.msra.mxu0 0.0
      %578 = vmatpush.xpose.msra.mxu0 0.0
      %579 = vmatpush.xpose.msra.mxu0 0.0
      %580 = vmatpush.xpose.msra.mxu0 0.0
      %581 = vmatpush.xpose.msra.mxu0 %v566
      %582 = vmatpush.xpose.msra.mxu0 %v564
      %583 = vmatpush.xpose.msra.mxu0 %v562
      %584 = vmatmul.f32.gmra.mxu0 %v556
      %v585 = vpop.f32.mrf.mxu0
      %v586 = vadd.f32 0.0, %v585
      %587 = vmatmul.f32.gmra.mxu0 %v558
      %v588 = vpop.f32.mrf.mxu0
      %v589 = vadd.f32 0.0, %v588
      %590 = vmatmul.f32.gmra.mxu0 %v560
      %v591 = vpop.f32.mrf.mxu0
      %v592 = vadd.f32 0.0, %v591
      %593 = vdwg.mxu0
      %v594 = vsel %vm501, -9e+15, %v586
      %v595 = vsel %vm501, -9e+15, %v589
      %v596 = vsel %vm501, -9e+15, %v592
      %vm597 = vcmask 195584
      %v598 = vsel %vm597, %v594, -inf
      %599 = vmax.xlane.f32.xlu0 %v598
      %v600 = vpop.xlane.xlu0 %599
      %v601 = vsel %vm597, %v595, -inf
      %602 = vmax.xlane.f32.xlu0 %v601
      %v603 = vpop.xlane.xlu0 %602
      %v604 = vsel %vm597, %v596, -inf
      %605 = vmax.xlane.f32.xlu0 %v604
      %v606 = vpop.xlane.xlu0 %605
      %v607 = vsub.f32 %v594, %v600
      %v608 = vsub.f32 %v595, %v603
      %v609 = vsub.f32 %v596, %v606
      %v610 = vmul.f32 %v607, 1.442695
      %v611 = vpow.pop %v610
      %v612 = vmul.f32 %v608, 1.442695
      %v613 = vpow.pop %v612
      %v614 = vmul.f32 %v609, 1.442695
      %v615 = vpow.pop %v614
      %v616 = vsel %vm597, %v611, 0.0
      %617 = vadd.xlane.f32.xlu0 %v616
      %v618 = vpop.xlane.xlu0 %617
      %v619 = vsel %vm597, %v613, 0.0
      %620 = vadd.xlane.f32.xlu0 %v619
      %v621 = vpop.xlane.xlu0 %620
      %v622 = vsel %vm597, %v615, 0.0
      %623 = vadd.xlane.f32.xlu0 %v622
      %v624 = vpop.xlane.xlu0 %623
      %v625 = vrcp.pop %v618
      %v626 = vmul.f32 %v618, %v625
      %v627 = vsub.f32 1.0, %v626
      %v628 = vmul.f32 %v625, %v627
      %v629 = vadd.f32 %v625, %v628
      %vm630 = vweird.f32 %v618
      %vm631 = vweird.f32 %v625
      %vm632 = vmor %vm630, %vm631
      %v633 = vsel %vm632, %v625, %v629
      %v634 = vand.u32 2147483647, %v618
      %vm635 = vcmp.eq.f32.partialorder %v634, 8.507059e+37
      %v636 = vand.u32 %v618, 2147483648
      %v637 = vor.u32 1.1754944e-38, %v636
      %v638 = vsel %vm635, %v637, %v633
      %v639 = vrcp.pop %v621
      %v640 = vmul.f32 %v621, %v639
      %v641 = vsub.f32 1.0, %v640
      %v642 = vmul.f32 %v639, %v641
      %v643 = vadd.f32 %v639, %v642
      %vm644 = vweird.f32 %v621
      %vm645 = vweird.f32 %v639
      %vm646 = vmor %vm644, %vm645
      %v647 = vsel %vm646, %v639, %v643
      %v648 = vand.u32 2147483647, %v621
      %vm649 = vcmp.eq.f32.partialorder %v648, 8.507059e+37
      %v650 = vand.u32 %v621, 2147483648
      %v651 = vor.u32 1.1754944e-38, %v650
      %v652 = vsel %vm649, %v651, %v647
      %v653 = vrcp.pop %v624
      %v654 = vmul.f32 %v624, %v653
      %v655 = vsub.f32 1.0, %v654
      %v656 = vmul.f32 %v653, %v655
      %v657 = vadd.f32 %v653, %v656
      %vm658 = vweird.f32 %v624
      %vm659 = vweird.f32 %v653
      %vm660 = vmor %vm658, %vm659
      %v661 = vsel %vm660, %v653, %v657
      %v662 = vand.u32 2147483647, %v624
      %vm663 = vcmp.eq.f32.partialorder %v662, 8.507059e+37
      %v664 = vand.u32 %v624, 2147483648
      %v665 = vor.u32 1.1754944e-38, %v664
      %v666 = vsel %vm663, %v665, %v661
      %v667 = vmul.f32 %v611, %v638
      %v668 = vmul.f32 %v613, %v652
      %v669 = vmul.f32 %v615, %v666
      %670 = vrot.lane.b32.xlu0 %v502, 88
      %v671 = vpop.permute.xlu0 %670
      %672 = vrot.lane.b32.xlu0 %v503, 88
      %v673 = vpop.permute.xlu0 %672
      %674 = vrot.lane.b32.xlu0 %v504, 88
      %v675 = vpop.permute.xlu0 %674
      %v676 = vsel %vm514, %v671, 0
      %v678 = vsel %vm514, %v673, 0
      %v680 = vsel %vm514, %v675, 0
      %682 = vmatpush.msra.mxu0 0.0
      %683 = vmatpush.msra.mxu0 0.0
      %684 = vmatpush.msra.mxu0 0.0
      %685 = vmatpush.msra.mxu0 0.0
      %686 = vmatpush.msra.mxu0 0.0
      %687 = vmatpush.msra.mxu0 0.0
      %688 = vmatpush.msra.mxu0 0.0
      %689 = vmatpush.msra.mxu0 0.0
      %690 = vmatpush.msra.mxu0 0.0
      %691 = vmatpush.msra.mxu0 0.0
      %692 = vmatpush.msra.mxu0 0.0
      %693 = vmatpush.msra.mxu0 0.0
      %694 = vmatpush.msra.mxu0 0.0
      %695 = vmatpush.msra.mxu0 0.0
      %696 = vmatpush.msra.mxu0 0.0
      %697 = vmatpush.msra.mxu0 %v495
      %698 = vmatmul.f32.gmra.mxu0 %v676
      %v699 = vpop.f32.mrf.mxu0
      %v700 = vadd.f32 0.0, %v699
      %701 = vmatmul.f32.gmra.mxu0 %v678
      %v702 = vpop.f32.mrf.mxu0
      %v703 = vadd.f32 0.0, %v702
      %704 = vmatmul.f32.gmra.mxu0 %v680
      %v705 = vpop.f32.mrf.mxu0
      %v706 = vadd.f32 0.0, %v705
      %707 = vdwg.mxu0
      %708 = vrot.lane.b32.xlu0 %v423, 120
      %v709 = vpop.permute.xlu0 %708
      %710 = vrot.lane.b32.xlu0 %v426, 120
      %v711 = vpop.permute.xlu0 %710
      %712 = vrot.lane.b32.xlu0 %v429, 120
      %v713 = vpop.permute.xlu0 %712
      %714 = vrot.lane.b32.xlu0 %v423, 104
      %v715 = vpop.permute.xlu0 %714
      %716 = vrot.lane.b32.xlu0 %v426, 104
      %v717 = vpop.permute.xlu0 %716
      %718 = vrot.lane.b32.xlu0 %v429, 104
      %v719 = vpop.permute.xlu0 %718
      %v720 = vsel %vm514, %v709, 0
      %v722 = vsel %vm514, %v711, 0
      %v724 = vsel %vm514, %v713, 0
      %v726 = vsel %vm514, %v715, 0
      %v728 = vsel %vm514, %v717, 0
      %v730 = vsel %vm514, %v719, 0
      %732 = vmatpush.xpose.msra.mxu0 0.0
      %733 = vmatpush.xpose.msra.mxu0 0.0
      %734 = vmatpush.xpose.msra.mxu0 0.0
      %735 = vmatpush.xpose.msra.mxu0 0.0
      %736 = vmatpush.xpose.msra.mxu0 0.0
      %737 = vmatpush.xpose.msra.mxu0 0.0
      %738 = vmatpush.xpose.msra.mxu0 0.0
      %739 = vmatpush.xpose.msra.mxu0 0.0
      %740 = vmatpush.xpose.msra.mxu0 0.0
      %741 = vmatpush.xpose.msra.mxu0 0.0
      %742 = vmatpush.xpose.msra.mxu0 0.0
      %743 = vmatpush.xpose.msra.mxu0 0.0
      %744 = vmatpush.xpose.msra.mxu0 0.0
      %745 = vmatpush.xpose.msra.mxu0 %v730
      %746 = vmatpush.xpose.msra.mxu0 %v728
      %747 = vmatpush.xpose.msra.mxu0 %v726
      %748 = vmatmul.f32.gmra.mxu0 %v720
      %v749 = vpop.f32.mrf.mxu0
      %v750 = vadd.f32 0.0, %v749
      %751 = vmatmul.f32.gmra.mxu0 %v722
      %v752 = vpop.f32.mrf.mxu0
      %v753 = vadd.f32 0.0, %v752
      %754 = vmatmul.f32.gmra.mxu0 %v724
      %v755 = vpop.f32.mrf.mxu0
      %v756 = vadd.f32 0.0, %v755
      %757 = vdwg.mxu0
      %v758 = vsel %vm501, -9e+15, %v750
      %v759 = vsel %vm501, -9e+15, %v753
      %v760 = vsel %vm501, -9e+15, %v756
      %v761 = vsel %vm597, %v758, -inf
      %762 = vmax.xlane.f32.xlu0 %v761
      %v763 = vpop.xlane.xlu0 %762
      %v764 = vsel %vm597, %v759, -inf
      %765 = vmax.xlane.f32.xlu0 %v764
      %v766 = vpop.xlane.xlu0 %765
      %v767 = vsel %vm597, %v760, -inf
      %768 = vmax.xlane.f32.xlu0 %v767
      %v769 = vpop.xlane.xlu0 %768
      %v770 = vsub.f32 %v758, %v763
      %v771 = vsub.f32 %v759, %v766
      %v772 = vsub.f32 %v760, %v769
      %v773 = vmul.f32 %v770, 1.442695
      %v774 = vpow.pop %v773
      %v775 = vmul.f32 %v771, 1.442695
      %v776 = vpow.pop %v775
      %v777 = vmul.f32 %v772, 1.442695
      %v778 = vpow.pop %v777
      %v779 = vsel %vm597, %v774, 0.0
      %780 = vadd.xlane.f32.xlu0 %v779
      %v781 = vpop.xlane.xlu0 %780
      %v782 = vsel %vm597, %v776, 0.0
      %783 = vadd.xlane.f32.xlu0 %v782
      %v784 = vpop.xlane.xlu0 %783
      %v785 = vsel %vm597, %v778, 0.0
      %786 = vadd.xlane.f32.xlu0 %v785
      %v787 = vpop.xlane.xlu0 %786
      %v788 = vrcp.pop %v781
      %v789 = vmul.f32 %v781, %v788
      %v790 = vsub.f32 1.0, %v789
      %v791 = vmul.f32 %v788, %v790
      %v792 = vadd.f32 %v788, %v791
      %vm793 = vweird.f32 %v781
      %vm794 = vweird.f32 %v788
      %vm795 = vmor %vm793, %vm794
      %v796 = vsel %vm795, %v788, %v792
      %v797 = vand.u32 2147483647, %v781
      %vm798 = vcmp.eq.f32.partialorder %v797, 8.507059e+37
      %v799 = vand.u32 %v781, 2147483648
      %v800 = vor.u32 1.1754944e-38, %v799
      %v801 = vsel %vm798, %v800, %v796
      %v802 = vrcp.pop %v784
      %v803 = vmul.f32 %v784, %v802
      %v804 = vsub.f32 1.0, %v803
      %v805 = vmul.f32 %v802, %v804
      %v806 = vadd.f32 %v802, %v805
      %vm807 = vweird.f32 %v784
      %vm808 = vweird.f32 %v802
      %vm809 = vmor %vm807, %vm808
      %v810 = vsel %vm809, %v802, %v806
      %v811 = vand.u32 2147483647, %v784
      %vm812 = vcmp.eq.f32.partialorder %v811, 8.507059e+37
      %v813 = vand.u32 %v784, 2147483648
      %v814 = vor.u32 1.1754944e-38, %v813
      %v815 = vsel %vm812, %v814, %v810
      %v816 = vrcp.pop %v787
      %v817 = vmul.f32 %v787, %v816
      %v818 = vsub.f32 1.0, %v817
      %v819 = vmul.f32 %v816, %v818
      %v820 = vadd.f32 %v816, %v819
      %vm821 = vweird.f32 %v787
      %vm822 = vweird.f32 %v816
      %vm823 = vmor %vm821, %vm822
      %v824 = vsel %vm823, %v816, %v820
      %v825 = vand.u32 2147483647, %v787
      %vm826 = vcmp.eq.f32.partialorder %v825, 8.507059e+37
      %v827 = vand.u32 %v787, 2147483648
      %v828 = vor.u32 1.1754944e-38, %v827
      %v829 = vsel %vm826, %v828, %v824
      %v830 = vmul.f32 %v774, %v801
      %v831 = vmul.f32 %v776, %v815
      %v832 = vmul.f32 %v778, %v829
      %v834 = vsel %vm597, %v830, 0
      %v837 = vsel %vm597, %v831, 0
      %v840 = vsel %vm597, %v832, 0
      %842 = vmatpush.msra.mxu0 0.0
      %843 = vmatpush.msra.mxu0 0.0
      %844 = vmatpush.msra.mxu0 0.0
      %845 = vmatpush.msra.mxu0 0.0
      %846 = vmatpush.msra.mxu0 0.0
      %847 = vmatpush.msra.mxu0 0.0
      %848 = vmatpush.msra.mxu0 0.0
      %849 = vmatpush.msra.mxu0 0.0
      %850 = vmatpush.msra.mxu0 0.0
      %851 = vmatpush.msra.mxu0 0.0
      %852 = vmatpush.msra.mxu0 0.0
      %853 = vmatpush.msra.mxu0 0.0
      %854 = vmatpush.msra.mxu0 0.0
      %855 = vmatpush.msra.mxu0 %v706
      %856 = vmatpush.msra.mxu0 %v703
      %857 = vmatpush.msra.mxu0 %v700
      %858 = vmatmul.f32.gmra.mxu0 %v834
      %v859 = vpop.f32.mrf.mxu0
      %v860 = vadd.f32 0.0, %v859
      %861 = vmatmul.f32.gmra.mxu0 %v837
      %v862 = vpop.f32.mrf.mxu0
      %v863 = vadd.f32 0.0, %v862
      %864 = vmatmul.f32.gmra.mxu0 %v840
      %v865 = vpop.f32.mrf.mxu0
      %v866 = vadd.f32 0.0, %v865
      %867 = vdwg.mxu0
      %v869 = vsel %vm597, %v667, 0
      %v872 = vsel %vm597, %v668, 0
      %v875 = vsel %vm597, %v669, 0
      %877 = vmatpush.msra.mxu0 0.0
      %878 = vmatpush.msra.mxu0 0.0
      %879 = vmatpush.msra.mxu0 0.0
      %880 = vmatpush.msra.mxu0 0.0
      %881 = vmatpush.msra.mxu0 0.0
      %882 = vmatpush.msra.mxu0 0.0
      %883 = vmatpush.msra.mxu0 0.0
      %884 = vmatpush.msra.mxu0 0.0
      %885 = vmatpush.msra.mxu0 0.0
      %886 = vmatpush.msra.mxu0 0.0
      %887 = vmatpush.msra.mxu0 0.0
      %888 = vmatpush.msra.mxu0 0.0
      %889 = vmatpush.msra.mxu0 0.0
      %890 = vmatpush.msra.mxu0 %v545
      %891 = vmatpush.msra.mxu0 %v542
      %892 = vmatpush.msra.mxu0 %v539
      %893 = vmatmul.f32.gmra.mxu0 %v869
      %v894 = vpop.f32.mrf.mxu0
      %v895 = vadd.f32 %v860, %v894
      %896 = vmatmul.f32.gmra.mxu0 %v872
      %v897 = vpop.f32.mrf.mxu0
      %v898 = vadd.f32 %v863, %v897
      %899 = vmatmul.f32.gmra.mxu0 %v875
      %v900 = vpop.f32.mrf.mxu0
      %v901 = vadd.f32 %v866, %v900
      %902 = vdwg.mxu0
      %v903 = vperm.slane %v496, 0
      %v904 = vadd.f32 %v895, %v903
      %v905 = vadd.f32 %v898, %v903
      %v906 = vadd.f32 %v901, %v903
      %v907 = vsel %vm332, %v904, 0.0
      %908 = vadd.xlane.f32.xlu0 %v907
      %v909 = vpop.xlane.xlu0 %908
      %v910 = vsel %vm332, %v905, 0.0
      %911 = vadd.xlane.f32.xlu0 %v910
      %v912 = vpop.xlane.xlu0 %911
      %v913 = vsel %vm332, %v906, 0.0
      %914 = vadd.xlane.f32.xlu0 %v913
      %v915 = vpop.xlane.xlu0 %914
      %v916 = vrcp.pop 32.0
      %v917 = vmul.f32 32.0, %v916
      %v918 = vsub.f32 1.0, %v917
      %v919 = vmul.f32 %v916, %v918
      %v920 = vadd.f32 %v916, %v919
      %vm921 = vweird.f32 %v916
      %v922 = vsel %vm921, %v916, %v920
      %v923 = vmul.f32 %v909, %v922
      %v924 = vmul.f32 %v912, %v922
      %v925 = vmul.f32 %v915, %v922
      %v926 = vsub.f32 %v904, %v923
      %v927 = vsub.f32 %v905, %v924
      %v928 = vsub.f32 %v906, %v925
      %v929 = vmul.f32 %v926, %v926
      %v930 = vmul.f32 %v927, %v927
      %v931 = vmul.f32 %v928, %v928
      %v932 = vsel %vm332, %v929, 0.0
      %933 = vadd.xlane.f32.xlu0 %v932
      %v934 = vpop.xlane.xlu0 %933
      %v935 = vsel %vm332, %v930, 0.0
      %936 = vadd.xlane.f32.xlu0 %v935
      %v937 = vpop.xlane.xlu0 %936
      %v938 = vsel %vm332, %v931, 0.0
      %939 = vadd.xlane.f32.xlu0 %v938
      %v940 = vpop.xlane.xlu0 %939
      %v941 = vmul.f32 %v934, 0.032258064
      %v942 = vmul.f32 %v937, 0.032258064
      %v943 = vmul.f32 %v940, 0.032258064
      %v944 = vrsqrt.pop %v941
      %v945 = vmul.f32 %v944, %v941
      %v946 = vmul.f32 %v945, %v944
      %v947 = vmul.f32 0.5, %v946
      %v948 = vsub.f32 1.5, %v947
      %v949 = vmul.f32 %v944, %v948
      %v950 = vmul.f32 %v941, %v949
      %vm951 = vcmp.eq.f32.partialorder %v941, inf
      %v952 = vsel %vm951, %v941, %v950
      %vm953 = vcmp.eq.f32.partialorder %v941, 0.0
      %v954 = vand.u32 %v941, 2147483648
      %v955 = vsel %vm953, %v954, %v952
      %v956 = vrsqrt.pop %v942
      %v957 = vmul.f32 %v956, %v942
      %v958 = vmul.f32 %v957, %v956
      %v959 = vmul.f32 0.5, %v958
      %v960 = vsub.f32 1.5, %v959
      %v961 = vmul.f32 %v956, %v960
      %v962 = vmul.f32 %v942, %v961
      %vm963 = vcmp.eq.f32.partialorder %v942, inf
      %v964 = vsel %vm963, %v942, %v962
      %vm965 = vcmp.eq.f32.partialorder %v942, 0.0
      %v966 = vand.u32 %v942, 2147483648
      %v967 = vsel %vm965, %v966, %v964
      %v968 = vrsqrt.pop %v943
      %v969 = vmul.f32 %v968, %v943
      %v970 = vmul.f32 %v969, %v968
      %v971 = vmul.f32 0.5, %v970
      %v972 = vsub.f32 1.5, %v971
      %v973 = vmul.f32 %v968, %v972
      %v974 = vmul.f32 %v943, %v973
      %vm975 = vcmp.eq.f32.partialorder %v943, inf
      %v976 = vsel %vm975, %v943, %v974
      %vm977 = vcmp.eq.f32.partialorder %v943, 0.0
      %v978 = vand.u32 %v943, 2147483648
      %v979 = vsel %vm977, %v978, %v976
      %v980 = vperm.slane %v497, 0
      %v981 = vmul.f32 %v980, %v926
      %v982 = vmul.f32 %v980, %v927
      %v983 = vmul.f32 %v980, %v928
      %v984 = vadd.f32 %v955, 1e-06
      %v985 = vadd.f32 %v967, 1e-06
      %v986 = vadd.f32 %v979, 1e-06
      %v987 = vrcp.pop %v984
      %v988 = vmul.f32 %v984, %v987
      %v989 = vsub.f32 1.0, %v988
      %v990 = vmul.f32 %v987, %v989
      %v991 = vadd.f32 %v987, %v990
      %vm992 = vweird.f32 %v984
      %vm993 = vweird.f32 %v987
      %vm994 = vmor %vm992, %vm993
      %v995 = vsel %vm994, %v987, %v991
      %v996 = vand.u32 2147483647, %v984
      %vm997 = vcmp.eq.f32.partialorder %v996, 8.507059e+37
      %v998 = vand.u32 %v984, 2147483648
      %v999 = vor.u32 1.1754944e-38, %v998
      %v1000 = vsel %vm997, %v999, %v995
      %v1001 = vmul.f32 %v981, %v1000
      %v1002 = vrcp.pop %v985
      %v1003 = vmul.f32 %v985, %v1002
      %v1004 = vsub.f32 1.0, %v1003
      %v1005 = vmul.f32 %v1002, %v1004
      %v1006 = vadd.f32 %v1002, %v1005
      %vm1007 = vweird.f32 %v985
      %vm1008 = vweird.f32 %v1002
      %vm1009 = vmor %vm1007, %vm1008
      %v1010 = vsel %vm1009, %v1002, %v1006
      %v1011 = vand.u32 2147483647, %v985
      %vm1012 = vcmp.eq.f32.partialorder %v1011, 8.507059e+37
      %v1013 = vand.u32 %v985, 2147483648
      %v1014 = vor.u32 1.1754944e-38, %v1013
      %v1015 = vsel %vm1012, %v1014, %v1010
      %v1016 = vmul.f32 %v982, %v1015
      %v1017 = vrcp.pop %v986
      %v1018 = vmul.f32 %v986, %v1017
      %v1019 = vsub.f32 1.0, %v1018
      %v1020 = vmul.f32 %v1017, %v1019
      %v1021 = vadd.f32 %v1017, %v1020
      %vm1022 = vweird.f32 %v986
      %vm1023 = vweird.f32 %v1017
      %vm1024 = vmor %vm1022, %vm1023
      %v1025 = vsel %vm1024, %v1017, %v1021
      %v1026 = vand.u32 2147483647, %v986
      %vm1027 = vcmp.eq.f32.partialorder %v1026, 8.507059e+37
      %v1028 = vand.u32 %v986, 2147483648
      %v1029 = vor.u32 1.1754944e-38, %v1028
      %v1030 = vsel %vm1027, %v1029, %v1025
      %v1031 = vmul.f32 %v983, %v1030
      %v1032 = vperm.slane %v498, 0
      %v1033 = vadd.f32 %v1001, %v1032
      %v1034 = vadd.f32 %v1016, %v1032
      %v1035 = vadd.f32 %v1031, %v1032
      %v1036 = vmax.f32 %v1033, 0.0
      %v1037 = vmax.f32 %v1034, 0.0
      %v1038 = vmax.f32 %v1035, 0.0
      %1039 = vst.msk [vmem:[%s251] sm:$0xff] %vm332, %v1036
      %1040 = vst.msk [vmem:[%s251 + $0x8] sm:$0xff] %vm332, %v1037
      %1041 = vst.msk [vmem:[%s251 + $0x10] sm:$0xff] %vm332, %v1038
      %v1042 = vmax.f32 %v432, 0.0
      %v1043 = vmax.f32 %v435, 0.0
      %v1044 = vmax.f32 %v438, 0.0
      %1048 = vrot.lane.b32.xlu0 %v1042, 96
      %v1049 = vpop.permute.xlu0 %1048
      %1050 = vrot.lane.b32.xlu0 %v1043, 96
      %v1051 = vpop.permute.xlu0 %1050
      %1052 = vrot.lane.b32.xlu0 %v1044, 96
      %v1053 = vpop.permute.xlu0 %1052
      %v1054 = vsel %vm514, %v1049, 0
      %v1056 = vsel %vm514, %v1051, 0
      %v1058 = vsel %vm514, %v1053, 0
      %1060 = vmatpush.msra.mxu0 0.0
      %1061 = vmatpush.msra.mxu0 0.0
      %1062 = vmatpush.msra.mxu0 0.0
      %1063 = vmatpush.msra.mxu0 0.0
      %1064 = vmatpush.msra.mxu0 0.0
      %1065 = vmatpush.msra.mxu0 0.0
      %1066 = vmatpush.msra.mxu0 0.0
      %1067 = vmatpush.msra.mxu0 0.0
      %1068 = vmatpush.msra.mxu0 0.0
      %1069 = vmatpush.msra.mxu0 0.0
      %1070 = vmatpush.msra.mxu0 0.0
      %1071 = vmatpush.msra.mxu0 0.0
      %1072 = vmatpush.msra.mxu0 0.0
      %1073 = vmatpush.msra.mxu0 0.0
      %1074 = vmatpush.msra.mxu0 0.0
      %1075 = vmatpush.msra.mxu0 %v494
      %1076 = vmatmul.f32.gmra.mxu0 %v1054
      %v1077 = vpop.f32.mrf.mxu0
      %v1078 = vadd.f32 0.0, %v1077
      %1079 = vmatmul.f32.gmra.mxu0 %v1056
      %v1080 = vpop.f32.mrf.mxu0
      %v1081 = vadd.f32 0.0, %v1080
      %1082 = vmatmul.f32.gmra.mxu0 %v1058
      %v1083 = vpop.f32.mrf.mxu0
      %v1084 = vadd.f32 0.0, %v1083
      %1085 = vdwg.mxu0
      %1089 = vrot.lane.b32.xlu0 %v432, 112
      %v1090 = vpop.permute.xlu0 %1089
      %1091 = vrot.lane.b32.xlu0 %v435, 112
      %v1092 = vpop.permute.xlu0 %1091
      %1093 = vrot.lane.b32.xlu0 %v438, 112
      %v1094 = vpop.permute.xlu0 %1093
      %v1095 = vsel %vm514, %v432, 0
      %v1097 = vsel %vm514, %v435, 0
      %v1099 = vsel %vm514, %v438, 0
      %v1101 = vsel %vm514, %v1090, 0
      %v1103 = vsel %vm514, %v1092, 0
      %v1105 = vsel %vm514, %v1094, 0
      %1107 = vmatpush.xpose.msra.mxu0 0.0
      %1108 = vmatpush.xpose.msra.mxu0 0.0
      %1109 = vmatpush.xpose.msra.mxu0 0.0
      %1110 = vmatpush.xpose.msra.mxu0 0.0
      %1111 = vmatpush.xpose.msra.mxu0 0.0
      %1112 = vmatpush.xpose.msra.mxu0 0.0
      %1113 = vmatpush.xpose.msra.mxu0 0.0
      %1114 = vmatpush.xpose.msra.mxu0 0.0
      %1115 = vmatpush.xpose.msra.mxu0 0.0
      %1116 = vmatpush.xpose.msra.mxu0 0.0
      %1117 = vmatpush.xpose.msra.mxu0 0.0
      %1118 = vmatpush.xpose.msra.mxu0 0.0
      %1119 = vmatpush.xpose.msra.mxu0 0.0
      %1120 = vmatpush.xpose.msra.mxu0 %v1105
      %1121 = vmatpush.xpose.msra.mxu0 %v1103
      %1122 = vmatpush.xpose.msra.mxu0 %v1101
      %1123 = vmatmul.f32.gmra.mxu0 %v1095
      %v1124 = vpop.f32.mrf.mxu0
      %v1125 = vadd.f32 0.0, %v1124
      %1126 = vmatmul.f32.gmra.mxu0 %v1097
      %v1127 = vpop.f32.mrf.mxu0
      %v1128 = vadd.f32 0.0, %v1127
      %1129 = vmatmul.f32.gmra.mxu0 %v1099
      %v1130 = vpop.f32.mrf.mxu0
      %v1131 = vadd.f32 0.0, %v1130
      %1132 = vdwg.mxu0
      %v1133 = vsel %vm501, -9e+15, %v1125
      %v1134 = vsel %vm501, -9e+15, %v1128
      %v1135 = vsel %vm501, -9e+15, %v1131
      %v1136 = vsel %vm597, %v1133, -inf
      %1137 = vmax.xlane.f32.xlu0 %v1136
      %v1138 = vpop.xlane.xlu0 %1137
      %v1139 = vsel %vm597, %v1134, -inf
      %1140 = vmax.xlane.f32.xlu0 %v1139
      %v1141 = vpop.xlane.xlu0 %1140
      %v1142 = vsel %vm597, %v1135, -inf
      %1143 = vmax.xlane.f32.xlu0 %v1142
      %v1144 = vpop.xlane.xlu0 %1143
      %v1145 = vsub.f32 %v1133, %v1138
      %v1146 = vsub.f32 %v1134, %v1141
      %v1147 = vsub.f32 %v1135, %v1144
      %v1148 = vmul.f32 %v1145, 1.442695
      %v1149 = vpow.pop %v1148
      %v1150 = vmul.f32 %v1146, 1.442695
      %v1151 = vpow.pop %v1150
      %v1152 = vmul.f32 %v1147, 1.442695
      %v1153 = vpow.pop %v1152
      %v1154 = vsel %vm597, %v1149, 0.0
      %1155 = vadd.xlane.f32.xlu0 %v1154
      %v1156 = vpop.xlane.xlu0 %1155
      %v1157 = vsel %vm597, %v1151, 0.0
      %1158 = vadd.xlane.f32.xlu0 %v1157
      %v1159 = vpop.xlane.xlu0 %1158
      %v1160 = vsel %vm597, %v1153, 0.0
      %1161 = vadd.xlane.f32.xlu0 %v1160
      %v1162 = vpop.xlane.xlu0 %1161
      %v1163 = vrcp.pop %v1156
      %v1164 = vmul.f32 %v1156, %v1163
      %v1165 = vsub.f32 1.0, %v1164
      %v1166 = vmul.f32 %v1163, %v1165
      %v1167 = vadd.f32 %v1163, %v1166
      %vm1168 = vweird.f32 %v1156
      %vm1169 = vweird.f32 %v1163
      %vm1170 = vmor %vm1168, %vm1169
      %v1171 = vsel %vm1170, %v1163, %v1167
      %v1172 = vand.u32 2147483647, %v1156
      %vm1173 = vcmp.eq.f32.partialorder %v1172, 8.507059e+37
      %v1174 = vand.u32 %v1156, 2147483648
      %v1175 = vor.u32 1.1754944e-38, %v1174
      %v1176 = vsel %vm1173, %v1175, %v1171
      %v1177 = vrcp.pop %v1159
      %v1178 = vmul.f32 %v1159, %v1177
      %v1179 = vsub.f32 1.0, %v1178
      %v1180 = vmul.f32 %v1177, %v1179
      %v1181 = vadd.f32 %v1177, %v1180
      %vm1182 = vweird.f32 %v1159
      %vm1183 = vweird.f32 %v1177
      %vm1184 = vmor %vm1182, %vm1183
      %v1185 = vsel %vm1184, %v1177, %v1181
      %v1186 = vand.u32 2147483647, %v1159
      %vm1187 = vcmp.eq.f32.partialorder %v1186, 8.507059e+37
      %v1188 = vand.u32 %v1159, 2147483648
      %v1189 = vor.u32 1.1754944e-38, %v1188
      %v1190 = vsel %vm1187, %v1189, %v1185
      %v1191 = vrcp.pop %v1162
      %v1192 = vmul.f32 %v1162, %v1191
      %v1193 = vsub.f32 1.0, %v1192
      %v1194 = vmul.f32 %v1191, %v1193
      %v1195 = vadd.f32 %v1191, %v1194
      %vm1196 = vweird.f32 %v1162
      %vm1197 = vweird.f32 %v1191
      %vm1198 = vmor %vm1196, %vm1197
      %v1199 = vsel %vm1198, %v1191, %v1195
      %v1200 = vand.u32 2147483647, %v1162
      %vm1201 = vcmp.eq.f32.partialorder %v1200, 8.507059e+37
      %v1202 = vand.u32 %v1162, 2147483648
      %v1203 = vor.u32 1.1754944e-38, %v1202
      %v1204 = vsel %vm1201, %v1203, %v1199
      %v1205 = vmul.f32 %v1149, %v1176
      %v1206 = vmul.f32 %v1151, %v1190
      %v1207 = vmul.f32 %v1153, %v1204
      %1208 = vrot.lane.b32.xlu0 %v1042, 88
      %v1209 = vpop.permute.xlu0 %1208
      %1210 = vrot.lane.b32.xlu0 %v1043, 88
      %v1211 = vpop.permute.xlu0 %1210
      %1212 = vrot.lane.b32.xlu0 %v1044, 88
      %v1213 = vpop.permute.xlu0 %1212
      %v1214 = vsel %vm514, %v1209, 0
      %v1216 = vsel %vm514, %v1211, 0
      %v1218 = vsel %vm514, %v1213, 0
      %1220 = vmatpush.msra.mxu0 0.0
      %1221 = vmatpush.msra.mxu0 0.0
      %1222 = vmatpush.msra.mxu0 0.0
      %1223 = vmatpush.msra.mxu0 0.0
      %1224 = vmatpush.msra.mxu0 0.0
      %1225 = vmatpush.msra.mxu0 0.0
      %1226 = vmatpush.msra.mxu0 0.0
      %1227 = vmatpush.msra.mxu0 0.0
      %1228 = vmatpush.msra.mxu0 0.0
      %1229 = vmatpush.msra.mxu0 0.0
      %1230 = vmatpush.msra.mxu0 0.0
      %1231 = vmatpush.msra.mxu0 0.0
      %1232 = vmatpush.msra.mxu0 0.0
      %1233 = vmatpush.msra.mxu0 0.0
      %1234 = vmatpush.msra.mxu0 0.0
      %1235 = vmatpush.msra.mxu0 %v495
      %1236 = vmatmul.f32.gmra.mxu0 %v1214
      %v1237 = vpop.f32.mrf.mxu0
      %v1238 = vadd.f32 0.0, %v1237
      %1239 = vmatmul.f32.gmra.mxu0 %v1216
      %v1240 = vpop.f32.mrf.mxu0
      %v1241 = vadd.f32 0.0, %v1240
      %1242 = vmatmul.f32.gmra.mxu0 %v1218
      %v1243 = vpop.f32.mrf.mxu0
      %v1244 = vadd.f32 0.0, %v1243
      %1245 = vdwg.mxu0
      %1246 = vrot.lane.b32.xlu0 %v432, 120
      %v1247 = vpop.permute.xlu0 %1246
      %1248 = vrot.lane.b32.xlu0 %v435, 120
      %v1249 = vpop.permute.xlu0 %1248
      %1250 = vrot.lane.b32.xlu0 %v438, 120
      %v1251 = vpop.permute.xlu0 %1250
      %1252 = vrot.lane.b32.xlu0 %v432, 104
      %v1253 = vpop.permute.xlu0 %1252
      %1254 = vrot.lane.b32.xlu0 %v435, 104
      %v1255 = vpop.permute.xlu0 %1254
      %1256 = vrot.lane.b32.xlu0 %v438, 104
      %v1257 = vpop.permute.xlu0 %1256
      %v1258 = vsel %vm514, %v1247, 0
      %v1260 = vsel %vm514, %v1249, 0
      %v1262 = vsel %vm514, %v1251, 0
      %v1264 = vsel %vm514, %v1253, 0
      %v1266 = vsel %vm514, %v1255, 0
      %v1268 = vsel %vm514, %v1257, 0
      %1270 = vmatpush.xpose.msra.mxu0 0.0
      %1271 = vmatpush.xpose.msra.mxu0 0.0
      %1272 = vmatpush.xpose.msra.mxu0 0.0
      %1273 = vmatpush.xpose.msra.mxu0 0.0
      %1274 = vmatpush.xpose.msra.mxu0 0.0
      %1275 = vmatpush.xpose.msra.mxu0 0.0
      %1276 = vmatpush.xpose.msra.mxu0 0.0
      %1277 = vmatpush.xpose.msra.mxu0 0.0
      %1278 = vmatpush.xpose.msra.mxu0 0.0
      %1279 = vmatpush.xpose.msra.mxu0 0.0
      %1280 = vmatpush.xpose.msra.mxu0 0.0
      %1281 = vmatpush.xpose.msra.mxu0 0.0
      %1282 = vmatpush.xpose.msra.mxu0 0.0
      %1283 = vmatpush.xpose.msra.mxu0 %v1268
      %1284 = vmatpush.xpose.msra.mxu0 %v1266
      %1285 = vmatpush.xpose.msra.mxu0 %v1264
      %1286 = vmatmul.f32.gmra.mxu0 %v1258
      %v1287 = vpop.f32.mrf.mxu0
      %v1288 = vadd.f32 0.0, %v1287
      %1289 = vmatmul.f32.gmra.mxu0 %v1260
      %v1290 = vpop.f32.mrf.mxu0
      %v1291 = vadd.f32 0.0, %v1290
      %1292 = vmatmul.f32.gmra.mxu0 %v1262
      %v1293 = vpop.f32.mrf.mxu0
      %v1294 = vadd.f32 0.0, %v1293
      %1295 = vdwg.mxu0
      %v1296 = vsel %vm501, -9e+15, %v1288
      %v1297 = vsel %vm501, -9e+15, %v1291
      %v1298 = vsel %vm501, -9e+15, %v1294
      %v1299 = vsel %vm597, %v1296, -inf
      %1300 = vmax.xlane.f32.xlu0 %v1299
      %v1301 = vpop.xlane.xlu0 %1300
      %v1302 = vsel %vm597, %v1297, -inf
      %1303 = vmax.xlane.f32.xlu0 %v1302
      %v1304 = vpop.xlane.xlu0 %1303
      %v1305 = vsel %vm597, %v1298, -inf
      %1306 = vmax.xlane.f32.xlu0 %v1305
      %v1307 = vpop.xlane.xlu0 %1306
      %v1308 = vsub.f32 %v1296, %v1301
      %v1309 = vsub.f32 %v1297, %v1304
      %v1310 = vsub.f32 %v1298, %v1307
      %v1311 = vmul.f32 %v1308, 1.442695
      %v1312 = vpow.pop %v1311
      %v1313 = vmul.f32 %v1309, 1.442695
      %v1314 = vpow.pop %v1313
      %v1315 = vmul.f32 %v1310, 1.442695
      %v1316 = vpow.pop %v1315
      %v1317 = vsel %vm597, %v1312, 0.0
      %1318 = vadd.xlane.f32.xlu0 %v1317
      %v1319 = vpop.xlane.xlu0 %1318
      %v1320 = vsel %vm597, %v1314, 0.0
      %1321 = vadd.xlane.f32.xlu0 %v1320
      %v1322 = vpop.xlane.xlu0 %1321
      %v1323 = vsel %vm597, %v1316, 0.0
      %1324 = vadd.xlane.f32.xlu0 %v1323
      %v1325 = vpop.xlane.xlu0 %1324
      %v1326 = vrcp.pop %v1319
      %v1327 = vmul.f32 %v1319, %v1326
      %v1328 = vsub.f32 1.0, %v1327
      %v1329 = vmul.f32 %v1326, %v1328
      %v1330 = vadd.f32 %v1326, %v1329
      %vm1331 = vweird.f32 %v1319
      %vm1332 = vweird.f32 %v1326
      %vm1333 = vmor %vm1331, %vm1332
      %v1334 = vsel %vm1333, %v1326, %v1330
      %v1335 = vand.u32 2147483647, %v1319
      %vm1336 = vcmp.eq.f32.partialorder %v1335, 8.507059e+37
      %v1337 = vand.u32 %v1319, 2147483648
      %v1338 = vor.u32 1.1754944e-38, %v1337
      %v1339 = vsel %vm1336, %v1338, %v1334
      %v1340 = vrcp.pop %v1322
      %v1341 = vmul.f32 %v1322, %v1340
      %v1342 = vsub.f32 1.0, %v1341
      %v1343 = vmul.f32 %v1340, %v1342
      %v1344 = vadd.f32 %v1340, %v1343
      %vm1345 = vweird.f32 %v1322
      %vm1346 = vweird.f32 %v1340
      %vm1347 = vmor %vm1345, %vm1346
      %v1348 = vsel %vm1347, %v1340, %v1344
      %v1349 = vand.u32 2147483647, %v1322
      %vm1350 = vcmp.eq.f32.partialorder %v1349, 8.507059e+37
      %v1351 = vand.u32 %v1322, 2147483648
      %v1352 = vor.u32 1.1754944e-38, %v1351
      %v1353 = vsel %vm1350, %v1352, %v1348
      %v1354 = vrcp.pop %v1325
      %v1355 = vmul.f32 %v1325, %v1354
      %v1356 = vsub.f32 1.0, %v1355
      %v1357 = vmul.f32 %v1354, %v1356
      %v1358 = vadd.f32 %v1354, %v1357
      %vm1359 = vweird.f32 %v1325
      %vm1360 = vweird.f32 %v1354
      %vm1361 = vmor %vm1359, %vm1360
      %v1362 = vsel %vm1361, %v1354, %v1358
      %v1363 = vand.u32 2147483647, %v1325
      %vm1364 = vcmp.eq.f32.partialorder %v1363, 8.507059e+37
      %v1365 = vand.u32 %v1325, 2147483648
      %v1366 = vor.u32 1.1754944e-38, %v1365
      %v1367 = vsel %vm1364, %v1366, %v1362
      %v1368 = vmul.f32 %v1312, %v1339
      %v1369 = vmul.f32 %v1314, %v1353
      %v1370 = vmul.f32 %v1316, %v1367
      %v1372 = vsel %vm597, %v1368, 0
      %v1375 = vsel %vm597, %v1369, 0
      %v1378 = vsel %vm597, %v1370, 0
      %1380 = vmatpush.msra.mxu0 0.0
      %1381 = vmatpush.msra.mxu0 0.0
      %1382 = vmatpush.msra.mxu0 0.0
      %1383 = vmatpush.msra.mxu0 0.0
      %1384 = vmatpush.msra.mxu0 0.0
      %1385 = vmatpush.msra.mxu0 0.0
      %1386 = vmatpush.msra.mxu0 0.0
      %1387 = vmatpush.msra.mxu0 0.0
      %1388 = vmatpush.msra.mxu0 0.0
      %1389 = vmatpush.msra.mxu0 0.0
      %1390 = vmatpush.msra.mxu0 0.0
      %1391 = vmatpush.msra.mxu0 0.0
      %1392 = vmatpush.msra.mxu0 0.0
      %1393 = vmatpush.msra.mxu0 %v1244
      %1394 = vmatpush.msra.mxu0 %v1241
      %1395 = vmatpush.msra.mxu0 %v1238
      %1396 = vmatmul.f32.gmra.mxu0 %v1372
      %v1397 = vpop.f32.mrf.mxu0
      %v1398 = vadd.f32 0.0, %v1397
      %1399 = vmatmul.f32.gmra.mxu0 %v1375
      %v1400 = vpop.f32.mrf.mxu0
      %v1401 = vadd.f32 0.0, %v1400
      %1402 = vmatmul.f32.gmra.mxu0 %v1378
      %v1403 = vpop.f32.mrf.mxu0
      %v1404 = vadd.f32 0.0, %v1403
      %1405 = vdwg.mxu0
      %v1407 = vsel %vm597, %v1205, 0
      %v1410 = vsel %vm597, %v1206, 0
      %v1413 = vsel %vm597, %v1207, 0
      %1415 = vmatpush.msra.mxu0 0.0
      %1416 = vmatpush.msra.mxu0 0.0
      %1417 = vmatpush.msra.mxu0 0.0
      %1418 = vmatpush.msra.mxu0 0.0
      %1419 = vmatpush.msra.mxu0 0.0
      %1420 = vmatpush.msra.mxu0 0.0
      %1421 = vmatpush.msra.mxu0 0.0
      %1422 = vmatpush.msra.mxu0 0.0
      %1423 = vmatpush.msra.mxu0 0.0
      %1424 = vmatpush.msra.mxu0 0.0
      %1425 = vmatpush.msra.mxu0 0.0
      %1426 = vmatpush.msra.mxu0 0.0
      %1427 = vmatpush.msra.mxu0 0.0
      %1428 = vmatpush.msra.mxu0 %v1084
      %1429 = vmatpush.msra.mxu0 %v1081
      %1430 = vmatpush.msra.mxu0 %v1078
      %1431 = vmatmul.f32.gmra.mxu0 %v1407
      %v1432 = vpop.f32.mrf.mxu0
      %v1433 = vadd.f32 %v1398, %v1432
      %1434 = vmatmul.f32.gmra.mxu0 %v1410
      %v1435 = vpop.f32.mrf.mxu0
      %v1436 = vadd.f32 %v1401, %v1435
      %1437 = vmatmul.f32.gmra.mxu0 %v1413
      %v1438 = vpop.f32.mrf.mxu0
      %v1439 = vadd.f32 %v1404, %v1438
      %1440 = vdwg.mxu0
      %v1441 = vadd.f32 %v1433, %v903
      %v1442 = vadd.f32 %v1436, %v903
      %v1443 = vadd.f32 %v1439, %v903
      %v1444 = vsel %vm332, %v1441, 0.0
      %1445 = vadd.xlane.f32.xlu0 %v1444
      %v1446 = vpop.xlane.xlu0 %1445
      %v1447 = vsel %vm332, %v1442, 0.0
      %1448 = vadd.xlane.f32.xlu0 %v1447
      %v1449 = vpop.xlane.xlu0 %1448
      %v1450 = vsel %vm332, %v1443, 0.0
      %1451 = vadd.xlane.f32.xlu0 %v1450
      %v1452 = vpop.xlane.xlu0 %1451
      %v1453 = vmul.f32 %v1446, %v922
      %v1454 = vmul.f32 %v1449, %v922
      %v1455 = vmul.f32 %v1452, %v922
      %v1456 = vsub.f32 %v1441, %v1453
      %v1457 = vsub.f32 %v1442, %v1454
      %v1458 = vsub.f32 %v1443, %v1455
      %v1459 = vmul.f32 %v1456, %v1456
      %v1460 = vmul.f32 %v1457, %v1457
      %v1461 = vmul.f32 %v1458, %v1458
      %v1462 = vsel %vm332, %v1459, 0.0
      %1463 = vadd.xlane.f32.xlu0 %v1462
      %v1464 = vpop.xlane.xlu0 %1463
      %v1465 = vsel %vm332, %v1460, 0.0
      %1466 = vadd.xlane.f32.xlu0 %v1465
      %v1467 = vpop.xlane.xlu0 %1466
      %v1468 = vsel %vm332, %v1461, 0.0
      %1469 = vadd.xlane.f32.xlu0 %v1468
      %v1470 = vpop.xlane.xlu0 %1469
      %v1471 = vmul.f32 %v1464, 0.032258064
      %v1472 = vmul.f32 %v1467, 0.032258064
      %v1473 = vmul.f32 %v1470, 0.032258064
      %v1474 = vrsqrt.pop %v1471
      %v1475 = vmul.f32 %v1474, %v1471
      %v1476 = vmul.f32 %v1475, %v1474
      %v1477 = vmul.f32 0.5, %v1476
      %v1478 = vsub.f32 1.5, %v1477
      %v1479 = vmul.f32 %v1474, %v1478
      %v1480 = vmul.f32 %v1471, %v1479
      %vm1481 = vcmp.eq.f32.partialorder %v1471, inf
      %v1482 = vsel %vm1481, %v1471, %v1480
      %vm1483 = vcmp.eq.f32.partialorder %v1471, 0.0
      %v1484 = vand.u32 %v1471, 2147483648
      %v1485 = vsel %vm1483, %v1484, %v1482
      %v1486 = vrsqrt.pop %v1472
      %v1487 = vmul.f32 %v1486, %v1472
      %v1488 = vmul.f32 %v1487, %v1486
      %v1489 = vmul.f32 0.5, %v1488
      %v1490 = vsub.f32 1.5, %v1489
      %v1491 = vmul.f32 %v1486, %v1490
      %v1492 = vmul.f32 %v1472, %v1491
      %vm1493 = vcmp.eq.f32.partialorder %v1472, inf
      %v1494 = vsel %vm1493, %v1472, %v1492
      %vm1495 = vcmp.eq.f32.partialorder %v1472, 0.0
      %v1496 = vand.u32 %v1472, 2147483648
      %v1497 = vsel %vm1495, %v1496, %v1494
      %v1498 = vrsqrt.pop %v1473
      %v1499 = vmul.f32 %v1498, %v1473
      %v1500 = vmul.f32 %v1499, %v1498
      %v1501 = vmul.f32 0.5, %v1500
      %v1502 = vsub.f32 1.5, %v1501
      %v1503 = vmul.f32 %v1498, %v1502
      %v1504 = vmul.f32 %v1473, %v1503
      %vm1505 = vcmp.eq.f32.partialorder %v1473, inf
      %v1506 = vsel %vm1505, %v1473, %v1504
      %vm1507 = vcmp.eq.f32.partialorder %v1473, 0.0
      %v1508 = vand.u32 %v1473, 2147483648
      %v1509 = vsel %vm1507, %v1508, %v1506
      %v1510 = vmul.f32 %v980, %v1456
      %v1511 = vmul.f32 %v980, %v1457
      %v1512 = vmul.f32 %v980, %v1458
      %v1513 = vadd.f32 %v1485, 1e-06
      %v1514 = vadd.f32 %v1497, 1e-06
      %v1515 = vadd.f32 %v1509, 1e-06
      %v1516 = vrcp.pop %v1513
      %v1517 = vmul.f32 %v1513, %v1516
      %v1518 = vsub.f32 1.0, %v1517
      %v1519 = vmul.f32 %v1516, %v1518
      %v1520 = vadd.f32 %v1516, %v1519
      %vm1521 = vweird.f32 %v1513
      %vm1522 = vweird.f32 %v1516
      %vm1523 = vmor %vm1521, %vm1522
      %v1524 = vsel %vm1523, %v1516, %v1520
      %v1525 = vand.u32 2147483647, %v1513
      %vm1526 = vcmp.eq.f32.partialorder %v1525, 8.507059e+37
      %v1527 = vand.u32 %v1513, 2147483648
      %v1528 = vor.u32 1.1754944e-38, %v1527
      %v1529 = vsel %vm1526, %v1528, %v1524
      %v1530 = vmul.f32 %v1510, %v1529
      %v1531 = vrcp.pop %v1514
      %v1532 = vmul.f32 %v1514, %v1531
      %v1533 = vsub.f32 1.0, %v1532
      %v1534 = vmul.f32 %v1531, %v1533
      %v1535 = vadd.f32 %v1531, %v1534
      %vm1536 = vweird.f32 %v1514
      %vm1537 = vweird.f32 %v1531
      %vm1538 = vmor %vm1536, %vm1537
      %v1539 = vsel %vm1538, %v1531, %v1535
      %v1540 = vand.u32 2147483647, %v1514
      %vm1541 = vcmp.eq.f32.partialorder %v1540, 8.507059e+37
      %v1542 = vand.u32 %v1514, 2147483648
      %v1543 = vor.u32 1.1754944e-38, %v1542
      %v1544 = vsel %vm1541, %v1543, %v1539
      %v1545 = vmul.f32 %v1511, %v1544
      %v1546 = vrcp.pop %v1515
      %v1547 = vmul.f32 %v1515, %v1546
      %v1548 = vsub.f32 1.0, %v1547
      %v1549 = vmul.f32 %v1546, %v1548
      %v1550 = vadd.f32 %v1546, %v1549
      %vm1551 = vweird.f32 %v1515
      %vm1552 = vweird.f32 %v1546
      %vm1553 = vmor %vm1551, %vm1552
      %v1554 = vsel %vm1553, %v1546, %v1550
      %v1555 = vand.u32 2147483647, %v1515
      %vm1556 = vcmp.eq.f32.partialorder %v1555, 8.507059e+37
      %v1557 = vand.u32 %v1515, 2147483648
      %v1558 = vor.u32 1.1754944e-38, %v1557
      %v1559 = vsel %vm1556, %v1558, %v1554
      %v1560 = vmul.f32 %v1512, %v1559
      %v1561 = vadd.f32 %v1530, %v1032
      %v1562 = vadd.f32 %v1545, %v1032
      %v1563 = vadd.f32 %v1560, %v1032
      %v1564 = vmax.f32 %v1561, 0.0
      %v1565 = vmax.f32 %v1562, 0.0
      %v1566 = vmax.f32 %v1563, 0.0
      %1567 = vst.msk [vmem:[%s251 + $0x18] sm:$0xff] %vm332, %v1564
      %1568 = vst.msk [vmem:[%s251 + $0x20] sm:$0xff] %vm332, %v1565
      %1569 = vst.msk [vmem:[%s251 + $0x28] sm:$0xff] %vm332, %v1566
      %v1570 = vmax.f32 %v441, 0.0
      %v1571 = vmax.f32 %v444, 0.0
      %v1572 = vmax.f32 %v447, 0.0
      %1576 = vrot.lane.b32.xlu0 %v1570, 96
      %v1577 = vpop.permute.xlu0 %1576
      %1578 = vrot.lane.b32.xlu0 %v1571, 96
      %v1579 = vpop.permute.xlu0 %1578
      %1580 = vrot.lane.b32.xlu0 %v1572, 96
      %v1581 = vpop.permute.xlu0 %1580
      %v1582 = vsel %vm514, %v1577, 0
      %v1584 = vsel %vm514, %v1579, 0
      %v1586 = vsel %vm514, %v1581, 0
      %1588 = vmatpush.msra.mxu0 0.0
      %1589 = vmatpush.msra.mxu0 0.0
      %1590 = vmatpush.msra.mxu0 0.0
      %1591 = vmatpush.msra.mxu0 0.0
      %1592 = vmatpush.msra.mxu0 0.0
      %1593 = vmatpush.msra.mxu0 0.0
      %1594 = vmatpush.msra.mxu0 0.0
      %1595 = vmatpush.msra.mxu0 0.0
      %1596 = vmatpush.msra.mxu0 0.0
      %1597 = vmatpush.msra.mxu0 0.0
      %1598 = vmatpush.msra.mxu0 0.0
      %1599 = vmatpush.msra.mxu0 0.0
      %1600 = vmatpush.msra.mxu0 0.0
      %1601 = vmatpush.msra.mxu0 0.0
      %1602 = vmatpush.msra.mxu0 0.0
      %1603 = vmatpush.msra.mxu0 %v494
      %1604 = vmatmul.f32.gmra.mxu0 %v1582
      %v1605 = vpop.f32.mrf.mxu0
      %v1606 = vadd.f32 0.0, %v1605
      %1607 = vmatmul.f32.gmra.mxu0 %v1584
      %v1608 = vpop.f32.mrf.mxu0
      %v1609 = vadd.f32 0.0, %v1608
      %1610 = vmatmul.f32.gmra.mxu0 %v1586
      %v1611 = vpop.f32.mrf.mxu0
      %v1612 = vadd.f32 0.0, %v1611
      %1613 = vdwg.mxu0
      %1617 = vrot.lane.b32.xlu0 %v441, 112
      %v1618 = vpop.permute.xlu0 %1617
      %1619 = vrot.lane.b32.xlu0 %v444, 112
      %v1620 = vpop.permute.xlu0 %1619
      %1621 = vrot.lane.b32.xlu0 %v447, 112
      %v1622 = vpop.permute.xlu0 %1621
      %v1623 = vsel %vm514, %v441, 0
      %v1625 = vsel %vm514, %v444, 0
      %v1627 = vsel %vm514, %v447, 0
      %v1629 = vsel %vm514, %v1618, 0
      %v1631 = vsel %vm514, %v1620, 0
      %v1633 = vsel %vm514, %v1622, 0
      %1635 = vmatpush.xpose.msra.mxu0 0.0
      %1636 = vmatpush.xpose.msra.mxu0 0.0
      %1637 = vmatpush.xpose.msra.mxu0 0.0
      %1638 = vmatpush.xpose.msra.mxu0 0.0
      %1639 = vmatpush.xpose.msra.mxu0 0.0
      %1640 = vmatpush.xpose.msra.mxu0 0.0
      %1641 = vmatpush.xpose.msra.mxu0 0.0
      %1642 = vmatpush.xpose.msra.mxu0 0.0
      %1643 = vmatpush.xpose.msra.mxu0 0.0
      %1644 = vmatpush.xpose.msra.mxu0 0.0
      %1645 = vmatpush.xpose.msra.mxu0 0.0
      %1646 = vmatpush.xpose.msra.mxu0 0.0
      %1647 = vmatpush.xpose.msra.mxu0 0.0
      %1648 = vmatpush.xpose.msra.mxu0 %v1633
      %1649 = vmatpush.xpose.msra.mxu0 %v1631
      %1650 = vmatpush.xpose.msra.mxu0 %v1629
      %1651 = vmatmul.f32.gmra.mxu0 %v1623
      %v1652 = vpop.f32.mrf.mxu0
      %v1653 = vadd.f32 0.0, %v1652
      %1654 = vmatmul.f32.gmra.mxu0 %v1625
      %v1655 = vpop.f32.mrf.mxu0
      %v1656 = vadd.f32 0.0, %v1655
      %1657 = vmatmul.f32.gmra.mxu0 %v1627
      %v1658 = vpop.f32.mrf.mxu0
      %v1659 = vadd.f32 0.0, %v1658
      %1660 = vdwg.mxu0
      %v1661 = vsel %vm501, -9e+15, %v1653
      %v1662 = vsel %vm501, -9e+15, %v1656
      %v1663 = vsel %vm501, -9e+15, %v1659
      %v1664 = vsel %vm597, %v1661, -inf
      %1665 = vmax.xlane.f32.xlu0 %v1664
      %v1666 = vpop.xlane.xlu0 %1665
      %v1667 = vsel %vm597, %v1662, -inf
      %1668 = vmax.xlane.f32.xlu0 %v1667
      %v1669 = vpop.xlane.xlu0 %1668
      %v1670 = vsel %vm597, %v1663, -inf
      %1671 = vmax.xlane.f32.xlu0 %v1670
      %v1672 = vpop.xlane.xlu0 %1671
      %v1673 = vsub.f32 %v1661, %v1666
      %v1674 = vsub.f32 %v1662, %v1669
      %v1675 = vsub.f32 %v1663, %v1672
      %v1676 = vmul.f32 %v1673, 1.442695
      %v1677 = vpow.pop %v1676
      %v1678 = vmul.f32 %v1674, 1.442695
      %v1679 = vpow.pop %v1678
      %v1680 = vmul.f32 %v1675, 1.442695
      %v1681 = vpow.pop %v1680
      %v1682 = vsel %vm597, %v1677, 0.0
      %1683 = vadd.xlane.f32.xlu0 %v1682
      %v1684 = vpop.xlane.xlu0 %1683
      %v1685 = vsel %vm597, %v1679, 0.0
      %1686 = vadd.xlane.f32.xlu0 %v1685
      %v1687 = vpop.xlane.xlu0 %1686
      %v1688 = vsel %vm597, %v1681, 0.0
      %1689 = vadd.xlane.f32.xlu0 %v1688
      %v1690 = vpop.xlane.xlu0 %1689
      %v1691 = vrcp.pop %v1684
      %v1692 = vmul.f32 %v1684, %v1691
      %v1693 = vsub.f32 1.0, %v1692
      %v1694 = vmul.f32 %v1691, %v1693
      %v1695 = vadd.f32 %v1691, %v1694
      %vm1696 = vweird.f32 %v1684
      %vm1697 = vweird.f32 %v1691
      %vm1698 = vmor %vm1696, %vm1697
      %v1699 = vsel %vm1698, %v1691, %v1695
      %v1700 = vand.u32 2147483647, %v1684
      %vm1701 = vcmp.eq.f32.partialorder %v1700, 8.507059e+37
      %v1702 = vand.u32 %v1684, 2147483648
      %v1703 = vor.u32 1.1754944e-38, %v1702
      %v1704 = vsel %vm1701, %v1703, %v1699
      %v1705 = vrcp.pop %v1687
      %v1706 = vmul.f32 %v1687, %v1705
      %v1707 = vsub.f32 1.0, %v1706
      %v1708 = vmul.f32 %v1705, %v1707
      %v1709 = vadd.f32 %v1705, %v1708
      %vm1710 = vweird.f32 %v1687
      %vm1711 = vweird.f32 %v1705
      %vm1712 = vmor %vm1710, %vm1711
      %v1713 = vsel %vm1712, %v1705, %v1709
      %v1714 = vand.u32 2147483647, %v1687
      %vm1715 = vcmp.eq.f32.partialorder %v1714, 8.507059e+37
      %v1716 = vand.u32 %v1687, 2147483648
      %v1717 = vor.u32 1.1754944e-38, %v1716
      %v1718 = vsel %vm1715, %v1717, %v1713
      %v1719 = vrcp.pop %v1690
      %v1720 = vmul.f32 %v1690, %v1719
      %v1721 = vsub.f32 1.0, %v1720
      %v1722 = vmul.f32 %v1719, %v1721
      %v1723 = vadd.f32 %v1719, %v1722
      %vm1724 = vweird.f32 %v1690
      %vm1725 = vweird.f32 %v1719
      %vm1726 = vmor %vm1724, %vm1725
      %v1727 = vsel %vm1726, %v1719, %v1723
      %v1728 = vand.u32 2147483647, %v1690
      %vm1729 = vcmp.eq.f32.partialorder %v1728, 8.507059e+37
      %v1730 = vand.u32 %v1690, 2147483648
      %v1731 = vor.u32 1.1754944e-38, %v1730
      %v1732 = vsel %vm1729, %v1731, %v1727
      %v1733 = vmul.f32 %v1677, %v1704
      %v1734 = vmul.f32 %v1679, %v1718
      %v1735 = vmul.f32 %v1681, %v1732
      %1736 = vrot.lane.b32.xlu0 %v1570, 88
      %v1737 = vpop.permute.xlu0 %1736
      %1738 = vrot.lane.b32.xlu0 %v1571, 88
      %v1739 = vpop.permute.xlu0 %1738
      %1740 = vrot.lane.b32.xlu0 %v1572, 88
      %v1741 = vpop.permute.xlu0 %1740
      %v1742 = vsel %vm514, %v1737, 0
      %v1744 = vsel %vm514, %v1739, 0
      %v1746 = vsel %vm514, %v1741, 0
      %1748 = vmatpush.msra.mxu0 0.0
      %1749 = vmatpush.msra.mxu0 0.0
      %1750 = vmatpush.msra.mxu0 0.0
      %1751 = vmatpush.msra.mxu0 0.0
      %1752 = vmatpush.msra.mxu0 0.0
      %1753 = vmatpush.msra.mxu0 0.0
      %1754 = vmatpush.msra.mxu0 0.0
      %1755 = vmatpush.msra.mxu0 0.0
      %1756 = vmatpush.msra.mxu0 0.0
      %1757 = vmatpush.msra.mxu0 0.0
      %1758 = vmatpush.msra.mxu0 0.0
      %1759 = vmatpush.msra.mxu0 0.0
      %1760 = vmatpush.msra.mxu0 0.0
      %1761 = vmatpush.msra.mxu0 0.0
      %1762 = vmatpush.msra.mxu0 0.0
      %1763 = vmatpush.msra.mxu0 %v495
      %1764 = vmatmul.f32.gmra.mxu0 %v1742
      %v1765 = vpop.f32.mrf.mxu0
      %v1766 = vadd.f32 0.0, %v1765
      %1767 = vmatmul.f32.gmra.mxu0 %v1744
      %v1768 = vpop.f32.mrf.mxu0
      %v1769 = vadd.f32 0.0, %v1768
      %1770 = vmatmul.f32.gmra.mxu0 %v1746
      %v1771 = vpop.f32.mrf.mxu0
      %v1772 = vadd.f32 0.0, %v1771
      %1773 = vdwg.mxu0
      %1774 = vrot.lane.b32.xlu0 %v441, 120
      %v1775 = vpop.permute.xlu0 %1774
      %1776 = vrot.lane.b32.xlu0 %v444, 120
      %v1777 = vpop.permute.xlu0 %1776
      %1778 = vrot.lane.b32.xlu0 %v447, 120
      %v1779 = vpop.permute.xlu0 %1778
      %1780 = vrot.lane.b32.xlu0 %v441, 104
      %v1781 = vpop.permute.xlu0 %1780
      %1782 = vrot.lane.b32.xlu0 %v444, 104
      %v1783 = vpop.permute.xlu0 %1782
      %1784 = vrot.lane.b32.xlu0 %v447, 104
      %v1785 = vpop.permute.xlu0 %1784
      %v1786 = vsel %vm514, %v1775, 0
      %v1788 = vsel %vm514, %v1777, 0
      %v1790 = vsel %vm514, %v1779, 0
      %v1792 = vsel %vm514, %v1781, 0
      %v1794 = vsel %vm514, %v1783, 0
      %v1796 = vsel %vm514, %v1785, 0
      %1798 = vmatpush.xpose.msra.mxu0 0.0
      %1799 = vmatpush.xpose.msra.mxu0 0.0
      %1800 = vmatpush.xpose.msra.mxu0 0.0
      %1801 = vmatpush.xpose.msra.mxu0 0.0
      %1802 = vmatpush.xpose.msra.mxu0 0.0
      %1803 = vmatpush.xpose.msra.mxu0 0.0
      %1804 = vmatpush.xpose.msra.mxu0 0.0
      %1805 = vmatpush.xpose.msra.mxu0 0.0
      %1806 = vmatpush.xpose.msra.mxu0 0.0
      %1807 = vmatpush.xpose.msra.mxu0 0.0
      %1808 = vmatpush.xpose.msra.mxu0 0.0
      %1809 = vmatpush.xpose.msra.mxu0 0.0
      %1810 = vmatpush.xpose.msra.mxu0 0.0
      %1811 = vmatpush.xpose.msra.mxu0 %v1796
      %1812 = vmatpush.xpose.msra.mxu0 %v1794
      %1813 = vmatpush.xpose.msra.mxu0 %v1792
      %1814 = vmatmul.f32.gmra.mxu0 %v1786
      %v1815 = vpop.f32.mrf.mxu0
      %v1816 = vadd.f32 0.0, %v1815
      %1817 = vmatmul.f32.gmra.mxu0 %v1788
      %v1818 = vpop.f32.mrf.mxu0
      %v1819 = vadd.f32 0.0, %v1818
      %1820 = vmatmul.f32.gmra.mxu0 %v1790
      %v1821 = vpop.f32.mrf.mxu0
      %v1822 = vadd.f32 0.0, %v1821
      %1823 = vdwg.mxu0
      %v1824 = vsel %vm501, -9e+15, %v1816
      %v1825 = vsel %vm501, -9e+15, %v1819
      %v1826 = vsel %vm501, -9e+15, %v1822
      %v1827 = vsel %vm597, %v1824, -inf
      %1828 = vmax.xlane.f32.xlu0 %v1827
      %v1829 = vpop.xlane.xlu0 %1828
      %v1830 = vsel %vm597, %v1825, -inf
      %1831 = vmax.xlane.f32.xlu0 %v1830
      %v1832 = vpop.xlane.xlu0 %1831
      %v1833 = vsel %vm597, %v1826, -inf
      %1834 = vmax.xlane.f32.xlu0 %v1833
      %v1835 = vpop.xlane.xlu0 %1834
      %v1836 = vsub.f32 %v1824, %v1829
      %v1837 = vsub.f32 %v1825, %v1832
      %v1838 = vsub.f32 %v1826, %v1835
      %v1839 = vmul.f32 %v1836, 1.442695
      %v1840 = vpow.pop %v1839
      %v1841 = vmul.f32 %v1837, 1.442695
      %v1842 = vpow.pop %v1841
      %v1843 = vmul.f32 %v1838, 1.442695
      %v1844 = vpow.pop %v1843
      %v1845 = vsel %vm597, %v1840, 0.0
      %1846 = vadd.xlane.f32.xlu0 %v1845
      %v1847 = vpop.xlane.xlu0 %1846
      %v1848 = vsel %vm597, %v1842, 0.0
      %1849 = vadd.xlane.f32.xlu0 %v1848
      %v1850 = vpop.xlane.xlu0 %1849
      %v1851 = vsel %vm597, %v1844, 0.0
      %1852 = vadd.xlane.f32.xlu0 %v1851
      %v1853 = vpop.xlane.xlu0 %1852
      %v1854 = vrcp.pop %v1847
      %v1855 = vmul.f32 %v1847, %v1854
      %v1856 = vsub.f32 1.0, %v1855
      %v1857 = vmul.f32 %v1854, %v1856
      %v1858 = vadd.f32 %v1854, %v1857
      %vm1859 = vweird.f32 %v1847
      %vm1860 = vweird.f32 %v1854
      %vm1861 = vmor %vm1859, %vm1860
      %v1862 = vsel %vm1861, %v1854, %v1858
      %v1863 = vand.u32 2147483647, %v1847
      %vm1864 = vcmp.eq.f32.partialorder %v1863, 8.507059e+37
      %v1865 = vand.u32 %v1847, 2147483648
      %v1866 = vor.u32 1.1754944e-38, %v1865
      %v1867 = vsel %vm1864, %v1866, %v1862
      %v1868 = vrcp.pop %v1850
      %v1869 = vmul.f32 %v1850, %v1868
      %v1870 = vsub.f32 1.0, %v1869
      %v1871 = vmul.f32 %v1868, %v1870
      %v1872 = vadd.f32 %v1868, %v1871
      %vm1873 = vweird.f32 %v1850
      %vm1874 = vweird.f32 %v1868
      %vm1875 = vmor %vm1873, %vm1874
      %v1876 = vsel %vm1875, %v1868, %v1872
      %v1877 = vand.u32 2147483647, %v1850
      %vm1878 = vcmp.eq.f32.partialorder %v1877, 8.507059e+37
      %v1879 = vand.u32 %v1850, 2147483648
      %v1880 = vor.u32 1.1754944e-38, %v1879
      %v1881 = vsel %vm1878, %v1880, %v1876
      %v1882 = vrcp.pop %v1853
      %v1883 = vmul.f32 %v1853, %v1882
      %v1884 = vsub.f32 1.0, %v1883
      %v1885 = vmul.f32 %v1882, %v1884
      %v1886 = vadd.f32 %v1882, %v1885
      %vm1887 = vweird.f32 %v1853
      %vm1888 = vweird.f32 %v1882
      %vm1889 = vmor %vm1887, %vm1888
      %v1890 = vsel %vm1889, %v1882, %v1886
      %v1891 = vand.u32 2147483647, %v1853
      %vm1892 = vcmp.eq.f32.partialorder %v1891, 8.507059e+37
      %v1893 = vand.u32 %v1853, 2147483648
      %v1894 = vor.u32 1.1754944e-38, %v1893
      %v1895 = vsel %vm1892, %v1894, %v1890
      %v1896 = vmul.f32 %v1840, %v1867
      %v1897 = vmul.f32 %v1842, %v1881
      %v1898 = vmul.f32 %v1844, %v1895
      %v1900 = vsel %vm597, %v1896, 0
      %v1903 = vsel %vm597, %v1897, 0
      %v1906 = vsel %vm597, %v1898, 0
      %1908 = vmatpush.msra.mxu0 0.0
      %1909 = vmatpush.msra.mxu0 0.0
      %1910 = vmatpush.msra.mxu0 0.0
      %1911 = vmatpush.msra.mxu0 0.0
      %1912 = vmatpush.msra.mxu0 0.0
      %1913 = vmatpush.msra.mxu0 0.0
      %1914 = vmatpush.msra.mxu0 0.0
      %1915 = vmatpush.msra.mxu0 0.0
      %1916 = vmatpush.msra.mxu0 0.0
      %1917 = vmatpush.msra.mxu0 0.0
      %1918 = vmatpush.msra.mxu0 0.0
      %1919 = vmatpush.msra.mxu0 0.0
      %1920 = vmatpush.msra.mxu0 0.0
      %1921 = vmatpush.msra.mxu0 %v1772
      %1922 = vmatpush.msra.mxu0 %v1769
      %1923 = vmatpush.msra.mxu0 %v1766
      %1924 = vmatmul.f32.gmra.mxu0 %v1900
      %v1925 = vpop.f32.mrf.mxu0
      %v1926 = vadd.f32 0.0, %v1925
      %1927 = vmatmul.f32.gmra.mxu0 %v1903
      %v1928 = vpop.f32.mrf.mxu0
      %v1929 = vadd.f32 0.0, %v1928
      %1930 = vmatmul.f32.gmra.mxu0 %v1906
      %v1931 = vpop.f32.mrf.mxu0
      %v1932 = vadd.f32 0.0, %v1931
      %1933 = vdwg.mxu0
      %v1935 = vsel %vm597, %v1733, 0
      %v1938 = vsel %vm597, %v1734, 0
      %v1941 = vsel %vm597, %v1735, 0
      %1943 = vmatpush.msra.mxu0 0.0
      %1944 = vmatpush.msra.mxu0 0.0
      %1945 = vmatpush.msra.mxu0 0.0
      %1946 = vmatpush.msra.mxu0 0.0
      %1947 = vmatpush.msra.mxu0 0.0
      %1948 = vmatpush.msra.mxu0 0.0
      %1949 = vmatpush.msra.mxu0 0.0
      %1950 = vmatpush.msra.mxu0 0.0
      %1951 = vmatpush.msra.mxu0 0.0
      %1952 = vmatpush.msra.mxu0 0.0
      %1953 = vmatpush.msra.mxu0 0.0
      %1954 = vmatpush.msra.mxu0 0.0
      %1955 = vmatpush.msra.mxu0 0.0
      %1956 = vmatpush.msra.mxu0 %v1612
      %1957 = vmatpush.msra.mxu0 %v1609
      %1958 = vmatpush.msra.mxu0 %v1606
      %1959 = vmatmul.f32.gmra.mxu0 %v1935
      %v1960 = vpop.f32.mrf.mxu0
      %v1961 = vadd.f32 %v1926, %v1960
      %1962 = vmatmul.f32.gmra.mxu0 %v1938
      %v1963 = vpop.f32.mrf.mxu0
      %v1964 = vadd.f32 %v1929, %v1963
      %1965 = vmatmul.f32.gmra.mxu0 %v1941
      %v1966 = vpop.f32.mrf.mxu0
      %v1967 = vadd.f32 %v1932, %v1966
      %1968 = vdwg.mxu0
      %v1969 = vadd.f32 %v1961, %v903
      %v1970 = vadd.f32 %v1964, %v903
      %v1971 = vadd.f32 %v1967, %v903
      %v1972 = vsel %vm332, %v1969, 0.0
      %1973 = vadd.xlane.f32.xlu0 %v1972
      %v1974 = vpop.xlane.xlu0 %1973
      %v1975 = vsel %vm332, %v1970, 0.0
      %1976 = vadd.xlane.f32.xlu0 %v1975
      %v1977 = vpop.xlane.xlu0 %1976
      %v1978 = vsel %vm332, %v1971, 0.0
      %1979 = vadd.xlane.f32.xlu0 %v1978
      %v1980 = vpop.xlane.xlu0 %1979
      %v1981 = vmul.f32 %v1974, %v922
      %v1982 = vmul.f32 %v1977, %v922
      %v1983 = vmul.f32 %v1980, %v922
      %v1984 = vsub.f32 %v1969, %v1981
      %v1985 = vsub.f32 %v1970, %v1982
      %v1986 = vsub.f32 %v1971, %v1983
      %v1987 = vmul.f32 %v1984, %v1984
      %v1988 = vmul.f32 %v1985, %v1985
      %v1989 = vmul.f32 %v1986, %v1986
      %v1990 = vsel %vm332, %v1987, 0.0
      %1991 = vadd.xlane.f32.xlu0 %v1990
      %v1992 = vpop.xlane.xlu0 %1991
      %v1993 = vsel %vm332, %v1988, 0.0
      %1994 = vadd.xlane.f32.xlu0 %v1993
      %v1995 = vpop.xlane.xlu0 %1994
      %v1996 = vsel %vm332, %v1989, 0.0
      %1997 = vadd.xlane.f32.xlu0 %v1996
      %v1998 = vpop.xlane.xlu0 %1997
      %v1999 = vmul.f32 %v1992, 0.032258064
      %v2000 = vmul.f32 %v1995, 0.032258064
      %v2001 = vmul.f32 %v1998, 0.032258064
      %v2002 = vrsqrt.pop %v1999
      %v2003 = vmul.f32 %v2002, %v1999
      %v2004 = vmul.f32 %v2003, %v2002
      %v2005 = vmul.f32 0.5, %v2004
      %v2006 = vsub.f32 1.5, %v2005
      %v2007 = vmul.f32 %v2002, %v2006
      %v2008 = vmul.f32 %v1999, %v2007
      %vm2009 = vcmp.eq.f32.partialorder %v1999, inf
      %v2010 = vsel %vm2009, %v1999, %v2008
      %vm2011 = vcmp.eq.f32.partialorder %v1999, 0.0
      %v2012 = vand.u32 %v1999, 2147483648
      %v2013 = vsel %vm2011, %v2012, %v2010
      %v2014 = vrsqrt.pop %v2000
      %v2015 = vmul.f32 %v2014, %v2000
      %v2016 = vmul.f32 %v2015, %v2014
      %v2017 = vmul.f32 0.5, %v2016
      %v2018 = vsub.f32 1.5, %v2017
      %v2019 = vmul.f32 %v2014, %v2018
      %v2020 = vmul.f32 %v2000, %v2019
      %vm2021 = vcmp.eq.f32.partialorder %v2000, inf
      %v2022 = vsel %vm2021, %v2000, %v2020
      %vm2023 = vcmp.eq.f32.partialorder %v2000, 0.0
      %v2024 = vand.u32 %v2000, 2147483648
      %v2025 = vsel %vm2023, %v2024, %v2022
      %v2026 = vrsqrt.pop %v2001
      %v2027 = vmul.f32 %v2026, %v2001
      %v2028 = vmul.f32 %v2027, %v2026
      %v2029 = vmul.f32 0.5, %v2028
      %v2030 = vsub.f32 1.5, %v2029
      %v2031 = vmul.f32 %v2026, %v2030
      %v2032 = vmul.f32 %v2001, %v2031
      %vm2033 = vcmp.eq.f32.partialorder %v2001, inf
      %v2034 = vsel %vm2033, %v2001, %v2032
      %vm2035 = vcmp.eq.f32.partialorder %v2001, 0.0
      %v2036 = vand.u32 %v2001, 2147483648
      %v2037 = vsel %vm2035, %v2036, %v2034
      %v2038 = vmul.f32 %v980, %v1984
      %v2039 = vmul.f32 %v980, %v1985
      %v2040 = vmul.f32 %v980, %v1986
      %v2041 = vadd.f32 %v2013, 1e-06
      %v2042 = vadd.f32 %v2025, 1e-06
      %v2043 = vadd.f32 %v2037, 1e-06
      %v2044 = vrcp.pop %v2041
      %v2045 = vmul.f32 %v2041, %v2044
      %v2046 = vsub.f32 1.0, %v2045
      %v2047 = vmul.f32 %v2044, %v2046
      %v2048 = vadd.f32 %v2044, %v2047
      %vm2049 = vweird.f32 %v2041
      %vm2050 = vweird.f32 %v2044
      %vm2051 = vmor %vm2049, %vm2050
      %v2052 = vsel %vm2051, %v2044, %v2048
      %v2053 = vand.u32 2147483647, %v2041
      %vm2054 = vcmp.eq.f32.partialorder %v2053, 8.507059e+37
      %v2055 = vand.u32 %v2041, 2147483648
      %v2056 = vor.u32 1.1754944e-38, %v2055
      %v2057 = vsel %vm2054, %v2056, %v2052
      %v2058 = vmul.f32 %v2038, %v2057
      %v2059 = vrcp.pop %v2042
      %v2060 = vmul.f32 %v2042, %v2059
      %v2061 = vsub.f32 1.0, %v2060
      %v2062 = vmul.f32 %v2059, %v2061
      %v2063 = vadd.f32 %v2059, %v2062
      %vm2064 = vweird.f32 %v2042
      %vm2065 = vweird.f32 %v2059
      %vm2066 = vmor %vm2064, %vm2065
      %v2067 = vsel %vm2066, %v2059, %v2063
      %v2068 = vand.u32 2147483647, %v2042
      %vm2069 = vcmp.eq.f32.partialorder %v2068, 8.507059e+37
      %v2070 = vand.u32 %v2042, 2147483648
      %v2071 = vor.u32 1.1754944e-38, %v2070
      %v2072 = vsel %vm2069, %v2071, %v2067
      %v2073 = vmul.f32 %v2039, %v2072
      %v2074 = vrcp.pop %v2043
      %v2075 = vmul.f32 %v2043, %v2074
      %v2076 = vsub.f32 1.0, %v2075
      %v2077 = vmul.f32 %v2074, %v2076
      %v2078 = vadd.f32 %v2074, %v2077
      %vm2079 = vweird.f32 %v2043
      %vm2080 = vweird.f32 %v2074
      %vm2081 = vmor %vm2079, %vm2080
      %v2082 = vsel %vm2081, %v2074, %v2078
      %v2083 = vand.u32 2147483647, %v2043
      %vm2084 = vcmp.eq.f32.partialorder %v2083, 8.507059e+37
      %v2085 = vand.u32 %v2043, 2147483648
      %v2086 = vor.u32 1.1754944e-38, %v2085
      %v2087 = vsel %vm2084, %v2086, %v2082
      %v2088 = vmul.f32 %v2040, %v2087
      %v2089 = vadd.f32 %v2058, %v1032
      %v2090 = vadd.f32 %v2073, %v1032
      %v2091 = vadd.f32 %v2088, %v1032
      %v2092 = vmax.f32 %v2089, 0.0
      %v2093 = vmax.f32 %v2090, 0.0
      %v2094 = vmax.f32 %v2091, 0.0
      %2095 = vst.msk [vmem:[%s251 + $0x30] sm:$0xff] %vm332, %v2092
      %2096 = vst.msk [vmem:[%s251 + $0x38] sm:$0xff] %vm332, %v2093
      %2097 = vst.msk [vmem:[%s251 + $0x40] sm:$0xff] %vm332, %v2094
      %v2098 = vmax.f32 %v450, 0.0
      %v2099 = vmax.f32 %v453, 0.0
      %v2100 = vmax.f32 %v456, 0.0
      %2104 = vrot.lane.b32.xlu0 %v2098, 96
      %v2105 = vpop.permute.xlu0 %2104
      %2106 = vrot.lane.b32.xlu0 %v2099, 96
      %v2107 = vpop.permute.xlu0 %2106
      %2108 = vrot.lane.b32.xlu0 %v2100, 96
      %v2109 = vpop.permute.xlu0 %2108
      %v2110 = vsel %vm514, %v2105, 0
      %v2112 = vsel %vm514, %v2107, 0
      %v2114 = vsel %vm514, %v2109, 0
      %2116 = vmatpush.msra.mxu0 0.0
      %2117 = vmatpush.msra.mxu0 0.0
      %2118 = vmatpush.msra.mxu0 0.0
      %2119 = vmatpush.msra.mxu0 0.0
      %2120 = vmatpush.msra.mxu0 0.0
      %2121 = vmatpush.msra.mxu0 0.0
      %2122 = vmatpush.msra.mxu0 0.0
      %2123 = vmatpush.msra.mxu0 0.0
      %2124 = vmatpush.msra.mxu0 0.0
      %2125 = vmatpush.msra.mxu0 0.0
      %2126 = vmatpush.msra.mxu0 0.0
      %2127 = vmatpush.msra.mxu0 0.0
      %2128 = vmatpush.msra.mxu0 0.0
      %2129 = vmatpush.msra.mxu0 0.0
      %2130 = vmatpush.msra.mxu0 0.0
      %2131 = vmatpush.msra.mxu0 %v494
      %2132 = vmatmul.f32.gmra.mxu0 %v2110
      %v2133 = vpop.f32.mrf.mxu0
      %v2134 = vadd.f32 0.0, %v2133
      %2135 = vmatmul.f32.gmra.mxu0 %v2112
      %v2136 = vpop.f32.mrf.mxu0
      %v2137 = vadd.f32 0.0, %v2136
      %2138 = vmatmul.f32.gmra.mxu0 %v2114
      %v2139 = vpop.f32.mrf.mxu0
      %v2140 = vadd.f32 0.0, %v2139
      %2141 = vdwg.mxu0
      %2145 = vrot.lane.b32.xlu0 %v450, 112
      %v2146 = vpop.permute.xlu0 %2145
      %2147 = vrot.lane.b32.xlu0 %v453, 112
      %v2148 = vpop.permute.xlu0 %2147
      %2149 = vrot.lane.b32.xlu0 %v456, 112
      %v2150 = vpop.permute.xlu0 %2149
      %v2151 = vsel %vm514, %v450, 0
      %v2153 = vsel %vm514, %v453, 0
      %v2155 = vsel %vm514, %v456, 0
      %v2157 = vsel %vm514, %v2146, 0
      %v2159 = vsel %vm514, %v2148, 0
      %v2161 = vsel %vm514, %v2150, 0
      %2163 = vmatpush.xpose.msra.mxu0 0.0
      %2164 = vmatpush.xpose.msra.mxu0 0.0
      %2165 = vmatpush.xpose.msra.mxu0 0.0
      %2166 = vmatpush.xpose.msra.mxu0 0.0
      %2167 = vmatpush.xpose.msra.mxu0 0.0
      %2168 = vmatpush.xpose.msra.mxu0 0.0
      %2169 = vmatpush.xpose.msra.mxu0 0.0
      %2170 = vmatpush.xpose.msra.mxu0 0.0
      %2171 = vmatpush.xpose.msra.mxu0 0.0
      %2172 = vmatpush.xpose.msra.mxu0 0.0
      %2173 = vmatpush.xpose.msra.mxu0 0.0
      %2174 = vmatpush.xpose.msra.mxu0 0.0
      %2175 = vmatpush.xpose.msra.mxu0 0.0
      %2176 = vmatpush.xpose.msra.mxu0 %v2161
      %2177 = vmatpush.xpose.msra.mxu0 %v2159
      %2178 = vmatpush.xpose.msra.mxu0 %v2157
      %2179 = vmatmul.f32.gmra.mxu0 %v2151
      %v2180 = vpop.f32.mrf.mxu0
      %v2181 = vadd.f32 0.0, %v2180
      %2182 = vmatmul.f32.gmra.mxu0 %v2153
      %v2183 = vpop.f32.mrf.mxu0
      %v2184 = vadd.f32 0.0, %v2183
      %2185 = vmatmul.f32.gmra.mxu0 %v2155
      %v2186 = vpop.f32.mrf.mxu0
      %v2187 = vadd.f32 0.0, %v2186
      %2188 = vdwg.mxu0
      %v2189 = vsel %vm501, -9e+15, %v2181
      %v2190 = vsel %vm501, -9e+15, %v2184
      %v2191 = vsel %vm501, -9e+15, %v2187
      %v2192 = vsel %vm597, %v2189, -inf
      %2193 = vmax.xlane.f32.xlu0 %v2192
      %v2194 = vpop.xlane.xlu0 %2193
      %v2195 = vsel %vm597, %v2190, -inf
      %2196 = vmax.xlane.f32.xlu0 %v2195
      %v2197 = vpop.xlane.xlu0 %2196
      %v2198 = vsel %vm597, %v2191, -inf
      %2199 = vmax.xlane.f32.xlu0 %v2198
      %v2200 = vpop.xlane.xlu0 %2199
      %v2201 = vsub.f32 %v2189, %v2194
      %v2202 = vsub.f32 %v2190, %v2197
      %v2203 = vsub.f32 %v2191, %v2200
      %v2204 = vmul.f32 %v2201, 1.442695
      %v2205 = vpow.pop %v2204
      %v2206 = vmul.f32 %v2202, 1.442695
      %v2207 = vpow.pop %v2206
      %v2208 = vmul.f32 %v2203, 1.442695
      %v2209 = vpow.pop %v2208
      %v2210 = vsel %vm597, %v2205, 0.0
      %2211 = vadd.xlane.f32.xlu0 %v2210
      %v2212 = vpop.xlane.xlu0 %2211
      %v2213 = vsel %vm597, %v2207, 0.0
      %2214 = vadd.xlane.f32.xlu0 %v2213
      %v2215 = vpop.xlane.xlu0 %2214
      %v2216 = vsel %vm597, %v2209, 0.0
      %2217 = vadd.xlane.f32.xlu0 %v2216
      %v2218 = vpop.xlane.xlu0 %2217
      %v2219 = vrcp.pop %v2212
      %v2220 = vmul.f32 %v2212, %v2219
      %v2221 = vsub.f32 1.0, %v2220
      %v2222 = vmul.f32 %v2219, %v2221
      %v2223 = vadd.f32 %v2219, %v2222
      %vm2224 = vweird.f32 %v2212
      %vm2225 = vweird.f32 %v2219
      %vm2226 = vmor %vm2224, %vm2225
      %v2227 = vsel %vm2226, %v2219, %v2223
      %v2228 = vand.u32 2147483647, %v2212
      %vm2229 = vcmp.eq.f32.partialorder %v2228, 8.507059e+37
      %v2230 = vand.u32 %v2212, 2147483648
      %v2231 = vor.u32 1.1754944e-38, %v2230
      %v2232 = vsel %vm2229, %v2231, %v2227
      %v2233 = vrcp.pop %v2215
      %v2234 = vmul.f32 %v2215, %v2233
      %v2235 = vsub.f32 1.0, %v2234
      %v2236 = vmul.f32 %v2233, %v2235
      %v2237 = vadd.f32 %v2233, %v2236
      %vm2238 = vweird.f32 %v2215
      %vm2239 = vweird.f32 %v2233
      %vm2240 = vmor %vm2238, %vm2239
      %v2241 = vsel %vm2240, %v2233, %v2237
      %v2242 = vand.u32 2147483647, %v2215
      %vm2243 = vcmp.eq.f32.partialorder %v2242, 8.507059e+37
      %v2244 = vand.u32 %v2215, 2147483648
      %v2245 = vor.u32 1.1754944e-38, %v2244
      %v2246 = vsel %vm2243, %v2245, %v2241
      %v2247 = vrcp.pop %v2218
      %v2248 = vmul.f32 %v2218, %v2247
      %v2249 = vsub.f32 1.0, %v2248
      %v2250 = vmul.f32 %v2247, %v2249
      %v2251 = vadd.f32 %v2247, %v2250
      %vm2252 = vweird.f32 %v2218
      %vm2253 = vweird.f32 %v2247
      %vm2254 = vmor %vm2252, %vm2253
      %v2255 = vsel %vm2254, %v2247, %v2251
      %v2256 = vand.u32 2147483647, %v2218
      %vm2257 = vcmp.eq.f32.partialorder %v2256, 8.507059e+37
      %v2258 = vand.u32 %v2218, 2147483648
      %v2259 = vor.u32 1.1754944e-38, %v2258
      %v2260 = vsel %vm2257, %v2259, %v2255
      %v2261 = vmul.f32 %v2205, %v2232
      %v2262 = vmul.f32 %v2207, %v2246
      %v2263 = vmul.f32 %v2209, %v2260
      %2264 = vrot.lane.b32.xlu0 %v2098, 88
      %v2265 = vpop.permute.xlu0 %2264
      %2266 = vrot.lane.b32.xlu0 %v2099, 88
      %v2267 = vpop.permute.xlu0 %2266
      %2268 = vrot.lane.b32.xlu0 %v2100, 88
      %v2269 = vpop.permute.xlu0 %2268
      %v2270 = vsel %vm514, %v2265, 0
      %v2272 = vsel %vm514, %v2267, 0
      %v2274 = vsel %vm514, %v2269, 0
      %2276 = vmatpush.msra.mxu0 0.0
      %2277 = vmatpush.msra.mxu0 0.0
      %2278 = vmatpush.msra.mxu0 0.0
      %2279 = vmatpush.msra.mxu0 0.0
      %2280 = vmatpush.msra.mxu0 0.0
      %2281 = vmatpush.msra.mxu0 0.0
      %2282 = vmatpush.msra.mxu0 0.0
      %2283 = vmatpush.msra.mxu0 0.0
      %2284 = vmatpush.msra.mxu0 0.0
      %2285 = vmatpush.msra.mxu0 0.0
      %2286 = vmatpush.msra.mxu0 0.0
      %2287 = vmatpush.msra.mxu0 0.0
      %2288 = vmatpush.msra.mxu0 0.0
      %2289 = vmatpush.msra.mxu0 0.0
      %2290 = vmatpush.msra.mxu0 0.0
      %2291 = vmatpush.msra.mxu0 %v495
      %2292 = vmatmul.f32.gmra.mxu0 %v2270
      %v2293 = vpop.f32.mrf.mxu0
      %v2294 = vadd.f32 0.0, %v2293
      %2295 = vmatmul.f32.gmra.mxu0 %v2272
      %v2296 = vpop.f32.mrf.mxu0
      %v2297 = vadd.f32 0.0, %v2296
      %2298 = vmatmul.f32.gmra.mxu0 %v2274
      %v2299 = vpop.f32.mrf.mxu0
      %v2300 = vadd.f32 0.0, %v2299
      %2301 = vdwg.mxu0
      %2302 = vrot.lane.b32.xlu0 %v450, 120
      %v2303 = vpop.permute.xlu0 %2302
      %2304 = vrot.lane.b32.xlu0 %v453, 120
      %v2305 = vpop.permute.xlu0 %2304
      %2306 = vrot.lane.b32.xlu0 %v456, 120
      %v2307 = vpop.permute.xlu0 %2306
      %2308 = vrot.lane.b32.xlu0 %v450, 104
      %v2309 = vpop.permute.xlu0 %2308
      %2310 = vrot.lane.b32.xlu0 %v453, 104
      %v2311 = vpop.permute.xlu0 %2310
      %2312 = vrot.lane.b32.xlu0 %v456, 104
      %v2313 = vpop.permute.xlu0 %2312
      %v2314 = vsel %vm514, %v2303, 0
      %v2316 = vsel %vm514, %v2305, 0
      %v2318 = vsel %vm514, %v2307, 0
      %v2320 = vsel %vm514, %v2309, 0
      %v2322 = vsel %vm514, %v2311, 0
      %v2324 = vsel %vm514, %v2313, 0
      %2326 = vmatpush.xpose.msra.mxu0 0.0
      %2327 = vmatpush.xpose.msra.mxu0 0.0
      %2328 = vmatpush.xpose.msra.mxu0 0.0
      %2329 = vmatpush.xpose.msra.mxu0 0.0
      %2330 = vmatpush.xpose.msra.mxu0 0.0
      %2331 = vmatpush.xpose.msra.mxu0 0.0
      %2332 = vmatpush.xpose.msra.mxu0 0.0
      %2333 = vmatpush.xpose.msra.mxu0 0.0
      %2334 = vmatpush.xpose.msra.mxu0 0.0
      %2335 = vmatpush.xpose.msra.mxu0 0.0
      %2336 = vmatpush.xpose.msra.mxu0 0.0
      %2337 = vmatpush.xpose.msra.mxu0 0.0
      %2338 = vmatpush.xpose.msra.mxu0 0.0
      %2339 = vmatpush.xpose.msra.mxu0 %v2324
      %2340 = vmatpush.xpose.msra.mxu0 %v2322
      %2341 = vmatpush.xpose.msra.mxu0 %v2320
      %2342 = vmatmul.f32.gmra.mxu0 %v2314
      %v2343 = vpop.f32.mrf.mxu0
      %v2344 = vadd.f32 0.0, %v2343
      %2345 = vmatmul.f32.gmra.mxu0 %v2316
      %v2346 = vpop.f32.mrf.mxu0
      %v2347 = vadd.f32 0.0, %v2346
      %2348 = vmatmul.f32.gmra.mxu0 %v2318
      %v2349 = vpop.f32.mrf.mxu0
      %v2350 = vadd.f32 0.0, %v2349
      %2351 = vdwg.mxu0
      %v2352 = vsel %vm501, -9e+15, %v2344
      %v2353 = vsel %vm501, -9e+15, %v2347
      %v2354 = vsel %vm501, -9e+15, %v2350
      %v2355 = vsel %vm597, %v2352, -inf
      %2356 = vmax.xlane.f32.xlu0 %v2355
      %v2357 = vpop.xlane.xlu0 %2356
      %v2358 = vsel %vm597, %v2353, -inf
      %2359 = vmax.xlane.f32.xlu0 %v2358
      %v2360 = vpop.xlane.xlu0 %2359
      %v2361 = vsel %vm597, %v2354, -inf
      %2362 = vmax.xlane.f32.xlu0 %v2361
      %v2363 = vpop.xlane.xlu0 %2362
      %v2364 = vsub.f32 %v2352, %v2357
      %v2365 = vsub.f32 %v2353, %v2360
      %v2366 = vsub.f32 %v2354, %v2363
      %v2367 = vmul.f32 %v2364, 1.442695
      %v2368 = vpow.pop %v2367
      %v2369 = vmul.f32 %v2365, 1.442695
      %v2370 = vpow.pop %v2369
      %v2371 = vmul.f32 %v2366, 1.442695
      %v2372 = vpow.pop %v2371
      %v2373 = vsel %vm597, %v2368, 0.0
      %2374 = vadd.xlane.f32.xlu0 %v2373
      %v2375 = vpop.xlane.xlu0 %2374
      %v2376 = vsel %vm597, %v2370, 0.0
      %2377 = vadd.xlane.f32.xlu0 %v2376
      %v2378 = vpop.xlane.xlu0 %2377
      %v2379 = vsel %vm597, %v2372, 0.0
      %2380 = vadd.xlane.f32.xlu0 %v2379
      %v2381 = vpop.xlane.xlu0 %2380
      %v2382 = vrcp.pop %v2375
      %v2383 = vmul.f32 %v2375, %v2382
      %v2384 = vsub.f32 1.0, %v2383
      %v2385 = vmul.f32 %v2382, %v2384
      %v2386 = vadd.f32 %v2382, %v2385
      %vm2387 = vweird.f32 %v2375
      %vm2388 = vweird.f32 %v2382
      %vm2389 = vmor %vm2387, %vm2388
      %v2390 = vsel %vm2389, %v2382, %v2386
      %v2391 = vand.u32 2147483647, %v2375
      %vm2392 = vcmp.eq.f32.partialorder %v2391, 8.507059e+37
      %v2393 = vand.u32 %v2375, 2147483648
      %v2394 = vor.u32 1.1754944e-38, %v2393
      %v2395 = vsel %vm2392, %v2394, %v2390
      %v2396 = vrcp.pop %v2378
      %v2397 = vmul.f32 %v2378, %v2396
      %v2398 = vsub.f32 1.0, %v2397
      %v2399 = vmul.f32 %v2396, %v2398
      %v2400 = vadd.f32 %v2396, %v2399
      %vm2401 = vweird.f32 %v2378
      %vm2402 = vweird.f32 %v2396
      %vm2403 = vmor %vm2401, %vm2402
      %v2404 = vsel %vm2403, %v2396, %v2400
      %v2405 = vand.u32 2147483647, %v2378
      %vm2406 = vcmp.eq.f32.partialorder %v2405, 8.507059e+37
      %v2407 = vand.u32 %v2378, 2147483648
      %v2408 = vor.u32 1.1754944e-38, %v2407
      %v2409 = vsel %vm2406, %v2408, %v2404
      %v2410 = vrcp.pop %v2381
      %v2411 = vmul.f32 %v2381, %v2410
      %v2412 = vsub.f32 1.0, %v2411
      %v2413 = vmul.f32 %v2410, %v2412
      %v2414 = vadd.f32 %v2410, %v2413
      %vm2415 = vweird.f32 %v2381
      %vm2416 = vweird.f32 %v2410
      %vm2417 = vmor %vm2415, %vm2416
      %v2418 = vsel %vm2417, %v2410, %v2414
      %v2419 = vand.u32 2147483647, %v2381
      %vm2420 = vcmp.eq.f32.partialorder %v2419, 8.507059e+37
      %v2421 = vand.u32 %v2381, 2147483648
      %v2422 = vor.u32 1.1754944e-38, %v2421
      %v2423 = vsel %vm2420, %v2422, %v2418
      %v2424 = vmul.f32 %v2368, %v2395
      %v2425 = vmul.f32 %v2370, %v2409
      %v2426 = vmul.f32 %v2372, %v2423
      %v2428 = vsel %vm597, %v2424, 0
      %v2431 = vsel %vm597, %v2425, 0
      %v2434 = vsel %vm597, %v2426, 0
      %2436 = vmatpush.msra.mxu0 0.0
      %2437 = vmatpush.msra.mxu0 0.0
      %2438 = vmatpush.msra.mxu0 0.0
      %2439 = vmatpush.msra.mxu0 0.0
      %2440 = vmatpush.msra.mxu0 0.0
      %2441 = vmatpush.msra.mxu0 0.0
      %2442 = vmatpush.msra.mxu0 0.0
      %2443 = vmatpush.msra.mxu0 0.0
      %2444 = vmatpush.msra.mxu0 0.0
      %2445 = vmatpush.msra.mxu0 0.0
      %2446 = vmatpush.msra.mxu0 0.0
      %2447 = vmatpush.msra.mxu0 0.0
      %2448 = vmatpush.msra.mxu0 0.0
      %2449 = vmatpush.msra.mxu0 %v2300
      %2450 = vmatpush.msra.mxu0 %v2297
      %2451 = vmatpush.msra.mxu0 %v2294
      %2452 = vmatmul.f32.gmra.mxu0 %v2428
      %v2453 = vpop.f32.mrf.mxu0
      %v2454 = vadd.f32 0.0, %v2453
      %2455 = vmatmul.f32.gmra.mxu0 %v2431
      %v2456 = vpop.f32.mrf.mxu0
      %v2457 = vadd.f32 0.0, %v2456
      %2458 = vmatmul.f32.gmra.mxu0 %v2434
      %v2459 = vpop.f32.mrf.mxu0
      %v2460 = vadd.f32 0.0, %v2459
      %2461 = vdwg.mxu0
      %v2463 = vsel %vm597, %v2261, 0
      %v2466 = vsel %vm597, %v2262, 0
      %v2469 = vsel %vm597, %v2263, 0
      %2471 = vmatpush.msra.mxu0 0.0
      %2472 = vmatpush.msra.mxu0 0.0
      %2473 = vmatpush.msra.mxu0 0.0
      %2474 = vmatpush.msra.mxu0 0.0
      %2475 = vmatpush.msra.mxu0 0.0
      %2476 = vmatpush.msra.mxu0 0.0
      %2477 = vmatpush.msra.mxu0 0.0
      %2478 = vmatpush.msra.mxu0 0.0
      %2479 = vmatpush.msra.mxu0 0.0
      %2480 = vmatpush.msra.mxu0 0.0
      %2481 = vmatpush.msra.mxu0 0.0
      %2482 = vmatpush.msra.mxu0 0.0
      %2483 = vmatpush.msra.mxu0 0.0
      %2484 = vmatpush.msra.mxu0 %v2140
      %2485 = vmatpush.msra.mxu0 %v2137
      %2486 = vmatpush.msra.mxu0 %v2134
      %2487 = vmatmul.f32.gmra.mxu0 %v2463
      %v2488 = vpop.f32.mrf.mxu0
      %v2489 = vadd.f32 %v2454, %v2488
      %2490 = vmatmul.f32.gmra.mxu0 %v2466
      %v2491 = vpop.f32.mrf.mxu0
      %v2492 = vadd.f32 %v2457, %v2491
      %2493 = vmatmul.f32.gmra.mxu0 %v2469
      %v2494 = vpop.f32.mrf.mxu0
      %v2495 = vadd.f32 %v2460, %v2494
      %2496 = vdwg.mxu0
      %v2497 = vadd.f32 %v2489, %v903
      %v2498 = vadd.f32 %v2492, %v903
      %v2499 = vadd.f32 %v2495, %v903
      %v2500 = vsel %vm332, %v2497, 0.0
      %2501 = vadd.xlane.f32.xlu0 %v2500
      %v2502 = vpop.xlane.xlu0 %2501
      %v2503 = vsel %vm332, %v2498, 0.0
      %2504 = vadd.xlane.f32.xlu0 %v2503
      %v2505 = vpop.xlane.xlu0 %2504
      %v2506 = vsel %vm332, %v2499, 0.0
      %2507 = vadd.xlane.f32.xlu0 %v2506
      %v2508 = vpop.xlane.xlu0 %2507
      %v2509 = vmul.f32 %v2502, %v922
      %v2510 = vmul.f32 %v2505, %v922
      %v2511 = vmul.f32 %v2508, %v922
      %v2512 = vsub.f32 %v2497, %v2509
      %v2513 = vsub.f32 %v2498, %v2510
      %v2514 = vsub.f32 %v2499, %v2511
      %v2515 = vmul.f32 %v2512, %v2512
      %v2516 = vmul.f32 %v2513, %v2513
      %v2517 = vmul.f32 %v2514, %v2514
      %v2518 = vsel %vm332, %v2515, 0.0
      %2519 = vadd.xlane.f32.xlu0 %v2518
      %v2520 = vpop.xlane.xlu0 %2519
      %v2521 = vsel %vm332, %v2516, 0.0
      %2522 = vadd.xlane.f32.xlu0 %v2521
      %v2523 = vpop.xlane.xlu0 %2522
      %v2524 = vsel %vm332, %v2517, 0.0
      %2525 = vadd.xlane.f32.xlu0 %v2524
      %v2526 = vpop.xlane.xlu0 %2525
      %v2527 = vmul.f32 %v2520, 0.032258064
      %v2528 = vmul.f32 %v2523, 0.032258064
      %v2529 = vmul.f32 %v2526, 0.032258064
      %v2530 = vrsqrt.pop %v2527
      %v2531 = vmul.f32 %v2530, %v2527
      %v2532 = vmul.f32 %v2531, %v2530
      %v2533 = vmul.f32 0.5, %v2532
      %v2534 = vsub.f32 1.5, %v2533
      %v2535 = vmul.f32 %v2530, %v2534
      %v2536 = vmul.f32 %v2527, %v2535
      %vm2537 = vcmp.eq.f32.partialorder %v2527, inf
      %v2538 = vsel %vm2537, %v2527, %v2536
      %vm2539 = vcmp.eq.f32.partialorder %v2527, 0.0
      %v2540 = vand.u32 %v2527, 2147483648
      %v2541 = vsel %vm2539, %v2540, %v2538
      %v2542 = vrsqrt.pop %v2528
      %v2543 = vmul.f32 %v2542, %v2528
      %v2544 = vmul.f32 %v2543, %v2542
      %v2545 = vmul.f32 0.5, %v2544
      %v2546 = vsub.f32 1.5, %v2545
      %v2547 = vmul.f32 %v2542, %v2546
      %v2548 = vmul.f32 %v2528, %v2547
      %vm2549 = vcmp.eq.f32.partialorder %v2528, inf
      %v2550 = vsel %vm2549, %v2528, %v2548
      %vm2551 = vcmp.eq.f32.partialorder %v2528, 0.0
      %v2552 = vand.u32 %v2528, 2147483648
      %v2553 = vsel %vm2551, %v2552, %v2550
      %v2554 = vrsqrt.pop %v2529
      %v2555 = vmul.f32 %v2554, %v2529
      %v2556 = vmul.f32 %v2555, %v2554
      %v2557 = vmul.f32 0.5, %v2556
      %v2558 = vsub.f32 1.5, %v2557
      %v2559 = vmul.f32 %v2554, %v2558
      %v2560 = vmul.f32 %v2529, %v2559
      %vm2561 = vcmp.eq.f32.partialorder %v2529, inf
      %v2562 = vsel %vm2561, %v2529, %v2560
      %vm2563 = vcmp.eq.f32.partialorder %v2529, 0.0
      %v2564 = vand.u32 %v2529, 2147483648
      %v2565 = vsel %vm2563, %v2564, %v2562
      %v2566 = vmul.f32 %v980, %v2512
      %v2567 = vmul.f32 %v980, %v2513
      %v2568 = vmul.f32 %v980, %v2514
      %v2569 = vadd.f32 %v2541, 1e-06
      %v2570 = vadd.f32 %v2553, 1e-06
      %v2571 = vadd.f32 %v2565, 1e-06
      %v2572 = vrcp.pop %v2569
      %v2573 = vmul.f32 %v2569, %v2572
      %v2574 = vsub.f32 1.0, %v2573
      %v2575 = vmul.f32 %v2572, %v2574
      %v2576 = vadd.f32 %v2572, %v2575
      %vm2577 = vweird.f32 %v2569
      %vm2578 = vweird.f32 %v2572
      %vm2579 = vmor %vm2577, %vm2578
      %v2580 = vsel %vm2579, %v2572, %v2576
      %v2581 = vand.u32 2147483647, %v2569
      %vm2582 = vcmp.eq.f32.partialorder %v2581, 8.507059e+37
      %v2583 = vand.u32 %v2569, 2147483648
      %v2584 = vor.u32 1.1754944e-38, %v2583
      %v2585 = vsel %vm2582, %v2584, %v2580
      %v2586 = vmul.f32 %v2566, %v2585
      %v2587 = vrcp.pop %v2570
      %v2588 = vmul.f32 %v2570, %v2587
      %v2589 = vsub.f32 1.0, %v2588
      %v2590 = vmul.f32 %v2587, %v2589
      %v2591 = vadd.f32 %v2587, %v2590
      %vm2592 = vweird.f32 %v2570
      %vm2593 = vweird.f32 %v2587
      %vm2594 = vmor %vm2592, %vm2593
      %v2595 = vsel %vm2594, %v2587, %v2591
      %v2596 = vand.u32 2147483647, %v2570
      %vm2597 = vcmp.eq.f32.partialorder %v2596, 8.507059e+37
      %v2598 = vand.u32 %v2570, 2147483648
      %v2599 = vor.u32 1.1754944e-38, %v2598
      %v2600 = vsel %vm2597, %v2599, %v2595
      %v2601 = vmul.f32 %v2567, %v2600
      %v2602 = vrcp.pop %v2571
      %v2603 = vmul.f32 %v2571, %v2602
      %v2604 = vsub.f32 1.0, %v2603
      %v2605 = vmul.f32 %v2602, %v2604
      %v2606 = vadd.f32 %v2602, %v2605
      %vm2607 = vweird.f32 %v2571
      %vm2608 = vweird.f32 %v2602
      %vm2609 = vmor %vm2607, %vm2608
      %v2610 = vsel %vm2609, %v2602, %v2606
      %v2611 = vand.u32 2147483647, %v2571
      %vm2612 = vcmp.eq.f32.partialorder %v2611, 8.507059e+37
      %v2613 = vand.u32 %v2571, 2147483648
      %v2614 = vor.u32 1.1754944e-38, %v2613
      %v2615 = vsel %vm2612, %v2614, %v2610
      %v2616 = vmul.f32 %v2568, %v2615
      %v2617 = vadd.f32 %v2586, %v1032
      %v2618 = vadd.f32 %v2601, %v1032
      %v2619 = vadd.f32 %v2616, %v1032
      %v2620 = vmax.f32 %v2617, 0.0
      %v2621 = vmax.f32 %v2618, 0.0
      %v2622 = vmax.f32 %v2619, 0.0
      %2623 = vst.msk [vmem:[%s251 + $0x48] sm:$0xff] %vm332, %v2620
      %2624 = vst.msk [vmem:[%s251 + $0x50] sm:$0xff] %vm332, %v2621
      %2625 = vst.msk [vmem:[%s251 + $0x58] sm:$0xff] %vm332, %v2622
      %v2626 = vmax.f32 %v459, 0.0
      %v2627 = vmax.f32 %v462, 0.0
      %v2628 = vmax.f32 %v465, 0.0
      %2632 = vrot.lane.b32.xlu0 %v2626, 96
      %v2633 = vpop.permute.xlu0 %2632
      %2634 = vrot.lane.b32.xlu0 %v2627, 96
      %v2635 = vpop.permute.xlu0 %2634
      %2636 = vrot.lane.b32.xlu0 %v2628, 96
      %v2637 = vpop.permute.xlu0 %2636
      %v2638 = vsel %vm514, %v2633, 0
      %v2640 = vsel %vm514, %v2635, 0
      %v2642 = vsel %vm514, %v2637, 0
      %2644 = vmatpush.msra.mxu0 0.0
      %2645 = vmatpush.msra.mxu0 0.0
      %2646 = vmatpush.msra.mxu0 0.0
      %2647 = vmatpush.msra.mxu0 0.0
      %2648 = vmatpush.msra.mxu0 0.0
      %2649 = vmatpush.msra.mxu0 0.0
      %2650 = vmatpush.msra.mxu0 0.0
      %2651 = vmatpush.msra.mxu0 0.0
      %2652 = vmatpush.msra.mxu0 0.0
      %2653 = vmatpush.msra.mxu0 0.0
      %2654 = vmatpush.msra.mxu0 0.0
      %2655 = vmatpush.msra.mxu0 0.0
      %2656 = vmatpush.msra.mxu0 0.0
      %2657 = vmatpush.msra.mxu0 0.0
      %2658 = vmatpush.msra.mxu0 0.0
      %2659 = vmatpush.msra.mxu0 %v494
      %2660 = vmatmul.f32.gmra.mxu0 %v2638
      %v2661 = vpop.f32.mrf.mxu0
      %v2662 = vadd.f32 0.0, %v2661
      %2663 = vmatmul.f32.gmra.mxu0 %v2640
      %v2664 = vpop.f32.mrf.mxu0
      %v2665 = vadd.f32 0.0, %v2664
      %2666 = vmatmul.f32.gmra.mxu0 %v2642
      %v2667 = vpop.f32.mrf.mxu0
      %v2668 = vadd.f32 0.0, %v2667
      %2669 = vdwg.mxu0
      %2673 = vrot.lane.b32.xlu0 %v459, 112
      %v2674 = vpop.permute.xlu0 %2673
      %2675 = vrot.lane.b32.xlu0 %v462, 112
      %v2676 = vpop.permute.xlu0 %2675
      %2677 = vrot.lane.b32.xlu0 %v465, 112
      %v2678 = vpop.permute.xlu0 %2677
      %v2679 = vsel %vm514, %v459, 0
      %v2681 = vsel %vm514, %v462, 0
      %v2683 = vsel %vm514, %v465, 0
      %v2685 = vsel %vm514, %v2674, 0
      %v2687 = vsel %vm514, %v2676, 0
      %v2689 = vsel %vm514, %v2678, 0
      %2691 = vmatpush.xpose.msra.mxu0 0.0
      %2692 = vmatpush.xpose.msra.mxu0 0.0
      %2693 = vmatpush.xpose.msra.mxu0 0.0
      %2694 = vmatpush.xpose.msra.mxu0 0.0
      %2695 = vmatpush.xpose.msra.mxu0 0.0
      %2696 = vmatpush.xpose.msra.mxu0 0.0
      %2697 = vmatpush.xpose.msra.mxu0 0.0
      %2698 = vmatpush.xpose.msra.mxu0 0.0
      %2699 = vmatpush.xpose.msra.mxu0 0.0
      %2700 = vmatpush.xpose.msra.mxu0 0.0
      %2701 = vmatpush.xpose.msra.mxu0 0.0
      %2702 = vmatpush.xpose.msra.mxu0 0.0
      %2703 = vmatpush.xpose.msra.mxu0 0.0
      %2704 = vmatpush.xpose.msra.mxu0 %v2689
      %2705 = vmatpush.xpose.msra.mxu0 %v2687
      %2706 = vmatpush.xpose.msra.mxu0 %v2685
      %2707 = vmatmul.f32.gmra.mxu0 %v2679
      %v2708 = vpop.f32.mrf.mxu0
      %v2709 = vadd.f32 0.0, %v2708
      %2710 = vmatmul.f32.gmra.mxu0 %v2681
      %v2711 = vpop.f32.mrf.mxu0
      %v2712 = vadd.f32 0.0, %v2711
      %2713 = vmatmul.f32.gmra.mxu0 %v2683
      %v2714 = vpop.f32.mrf.mxu0
      %v2715 = vadd.f32 0.0, %v2714
      %2716 = vdwg.mxu0
      %v2717 = vsel %vm501, -9e+15, %v2709
      %v2718 = vsel %vm501, -9e+15, %v2712
      %v2719 = vsel %vm501, -9e+15, %v2715
      %v2720 = vsel %vm597, %v2717, -inf
      %2721 = vmax.xlane.f32.xlu0 %v2720
      %v2722 = vpop.xlane.xlu0 %2721
      %v2723 = vsel %vm597, %v2718, -inf
      %2724 = vmax.xlane.f32.xlu0 %v2723
      %v2725 = vpop.xlane.xlu0 %2724
      %v2726 = vsel %vm597, %v2719, -inf
      %2727 = vmax.xlane.f32.xlu0 %v2726
      %v2728 = vpop.xlane.xlu0 %2727
      %v2729 = vsub.f32 %v2717, %v2722
      %v2730 = vsub.f32 %v2718, %v2725
      %v2731 = vsub.f32 %v2719, %v2728
      %v2732 = vmul.f32 %v2729, 1.442695
      %v2733 = vpow.pop %v2732
      %v2734 = vmul.f32 %v2730, 1.442695
      %v2735 = vpow.pop %v2734
      %v2736 = vmul.f32 %v2731, 1.442695
      %v2737 = vpow.pop %v2736
      %v2738 = vsel %vm597, %v2733, 0.0
      %2739 = vadd.xlane.f32.xlu0 %v2738
      %v2740 = vpop.xlane.xlu0 %2739
      %v2741 = vsel %vm597, %v2735, 0.0
      %2742 = vadd.xlane.f32.xlu0 %v2741
      %v2743 = vpop.xlane.xlu0 %2742
      %v2744 = vsel %vm597, %v2737, 0.0
      %2745 = vadd.xlane.f32.xlu0 %v2744
      %v2746 = vpop.xlane.xlu0 %2745
      %v2747 = vrcp.pop %v2740
      %v2748 = vmul.f32 %v2740, %v2747
      %v2749 = vsub.f32 1.0, %v2748
      %v2750 = vmul.f32 %v2747, %v2749
      %v2751 = vadd.f32 %v2747, %v2750
      %vm2752 = vweird.f32 %v2740
      %vm2753 = vweird.f32 %v2747
      %vm2754 = vmor %vm2752, %vm2753
      %v2755 = vsel %vm2754, %v2747, %v2751
      %v2756 = vand.u32 2147483647, %v2740
      %vm2757 = vcmp.eq.f32.partialorder %v2756, 8.507059e+37
      %v2758 = vand.u32 %v2740, 2147483648
      %v2759 = vor.u32 1.1754944e-38, %v2758
      %v2760 = vsel %vm2757, %v2759, %v2755
      %v2761 = vrcp.pop %v2743
      %v2762 = vmul.f32 %v2743, %v2761
      %v2763 = vsub.f32 1.0, %v2762
      %v2764 = vmul.f32 %v2761, %v2763
      %v2765 = vadd.f32 %v2761, %v2764
      %vm2766 = vweird.f32 %v2743
      %vm2767 = vweird.f32 %v2761
      %vm2768 = vmor %vm2766, %vm2767
      %v2769 = vsel %vm2768, %v2761, %v2765
      %v2770 = vand.u32 2147483647, %v2743
      %vm2771 = vcmp.eq.f32.partialorder %v2770, 8.507059e+37
      %v2772 = vand.u32 %v2743, 2147483648
      %v2773 = vor.u32 1.1754944e-38, %v2772
      %v2774 = vsel %vm2771, %v2773, %v2769
      %v2775 = vrcp.pop %v2746
      %v2776 = vmul.f32 %v2746, %v2775
      %v2777 = vsub.f32 1.0, %v2776
      %v2778 = vmul.f32 %v2775, %v2777
      %v2779 = vadd.f32 %v2775, %v2778
      %vm2780 = vweird.f32 %v2746
      %vm2781 = vweird.f32 %v2775
      %vm2782 = vmor %vm2780, %vm2781
      %v2783 = vsel %vm2782, %v2775, %v2779
      %v2784 = vand.u32 2147483647, %v2746
      %vm2785 = vcmp.eq.f32.partialorder %v2784, 8.507059e+37
      %v2786 = vand.u32 %v2746, 2147483648
      %v2787 = vor.u32 1.1754944e-38, %v2786
      %v2788 = vsel %vm2785, %v2787, %v2783
      %v2789 = vmul.f32 %v2733, %v2760
      %v2790 = vmul.f32 %v2735, %v2774
      %v2791 = vmul.f32 %v2737, %v2788
      %2792 = vrot.lane.b32.xlu0 %v2626, 88
      %v2793 = vpop.permute.xlu0 %2792
      %2794 = vrot.lane.b32.xlu0 %v2627, 88
      %v2795 = vpop.permute.xlu0 %2794
      %2796 = vrot.lane.b32.xlu0 %v2628, 88
      %v2797 = vpop.permute.xlu0 %2796
      %v2798 = vsel %vm514, %v2793, 0
      %v2800 = vsel %vm514, %v2795, 0
      %v2802 = vsel %vm514, %v2797, 0
      %2804 = vmatpush.msra.mxu0 0.0
      %2805 = vmatpush.msra.mxu0 0.0
      %2806 = vmatpush.msra.mxu0 0.0
      %2807 = vmatpush.msra.mxu0 0.0
      %2808 = vmatpush.msra.mxu0 0.0
      %2809 = vmatpush.msra.mxu0 0.0
      %2810 = vmatpush.msra.mxu0 0.0
      %2811 = vmatpush.msra.mxu0 0.0
      %2812 = vmatpush.msra.mxu0 0.0
      %2813 = vmatpush.msra.mxu0 0.0
      %2814 = vmatpush.msra.mxu0 0.0
      %2815 = vmatpush.msra.mxu0 0.0
      %2816 = vmatpush.msra.mxu0 0.0
      %2817 = vmatpush.msra.mxu0 0.0
      %2818 = vmatpush.msra.mxu0 0.0
      %2819 = vmatpush.msra.mxu0 %v495
      %2820 = vmatmul.f32.gmra.mxu0 %v2798
      %v2821 = vpop.f32.mrf.mxu0
      %v2822 = vadd.f32 0.0, %v2821
      %2823 = vmatmul.f32.gmra.mxu0 %v2800
      %v2824 = vpop.f32.mrf.mxu0
      %v2825 = vadd.f32 0.0, %v2824
      %2826 = vmatmul.f32.gmra.mxu0 %v2802
      %v2827 = vpop.f32.mrf.mxu0
      %v2828 = vadd.f32 0.0, %v2827
      %2829 = vdwg.mxu0
      %2830 = vrot.lane.b32.xlu0 %v459, 120
      %v2831 = vpop.permute.xlu0 %2830
      %2832 = vrot.lane.b32.xlu0 %v462, 120
      %v2833 = vpop.permute.xlu0 %2832
      %2834 = vrot.lane.b32.xlu0 %v465, 120
      %v2835 = vpop.permute.xlu0 %2834
      %2836 = vrot.lane.b32.xlu0 %v459, 104
      %v2837 = vpop.permute.xlu0 %2836
      %2838 = vrot.lane.b32.xlu0 %v462, 104
      %v2839 = vpop.permute.xlu0 %2838
      %2840 = vrot.lane.b32.xlu0 %v465, 104
      %v2841 = vpop.permute.xlu0 %2840
      %v2842 = vsel %vm514, %v2831, 0
      %v2844 = vsel %vm514, %v2833, 0
      %v2846 = vsel %vm514, %v2835, 0
      %v2848 = vsel %vm514, %v2837, 0
      %v2850 = vsel %vm514, %v2839, 0
      %v2852 = vsel %vm514, %v2841, 0
      %2854 = vmatpush.xpose.msra.mxu0 0.0
      %2855 = vmatpush.xpose.msra.mxu0 0.0
      %2856 = vmatpush.xpose.msra.mxu0 0.0
      %2857 = vmatpush.xpose.msra.mxu0 0.0
      %2858 = vmatpush.xpose.msra.mxu0 0.0
      %2859 = vmatpush.xpose.msra.mxu0 0.0
      %2860 = vmatpush.xpose.msra.mxu0 0.0
      %2861 = vmatpush.xpose.msra.mxu0 0.0
      %2862 = vmatpush.xpose.msra.mxu0 0.0
      %2863 = vmatpush.xpose.msra.mxu0 0.0
      %2864 = vmatpush.xpose.msra.mxu0 0.0
      %2865 = vmatpush.xpose.msra.mxu0 0.0
      %2866 = vmatpush.xpose.msra.mxu0 0.0
      %2867 = vmatpush.xpose.msra.mxu0 %v2852
      %2868 = vmatpush.xpose.msra.mxu0 %v2850
      %2869 = vmatpush.xpose.msra.mxu0 %v2848
      %2870 = vmatmul.f32.gmra.mxu0 %v2842
      %v2871 = vpop.f32.mrf.mxu0
      %v2872 = vadd.f32 0.0, %v2871
      %2873 = vmatmul.f32.gmra.mxu0 %v2844
      %v2874 = vpop.f32.mrf.mxu0
      %v2875 = vadd.f32 0.0, %v2874
      %2876 = vmatmul.f32.gmra.mxu0 %v2846
      %v2877 = vpop.f32.mrf.mxu0
      %v2878 = vadd.f32 0.0, %v2877
      %2879 = vdwg.mxu0
      %v2880 = vsel %vm501, -9e+15, %v2872
      %v2881 = vsel %vm501, -9e+15, %v2875
      %v2882 = vsel %vm501, -9e+15, %v2878
      %v2883 = vsel %vm597, %v2880, -inf
      %2884 = vmax.xlane.f32.xlu0 %v2883
      %v2885 = vpop.xlane.xlu0 %2884
      %v2886 = vsel %vm597, %v2881, -inf
      %2887 = vmax.xlane.f32.xlu0 %v2886
      %v2888 = vpop.xlane.xlu0 %2887
      %v2889 = vsel %vm597, %v2882, -inf
      %2890 = vmax.xlane.f32.xlu0 %v2889
      %v2891 = vpop.xlane.xlu0 %2890
      %v2892 = vsub.f32 %v2880, %v2885
      %v2893 = vsub.f32 %v2881, %v2888
      %v2894 = vsub.f32 %v2882, %v2891
      %v2895 = vmul.f32 %v2892, 1.442695
      %v2896 = vpow.pop %v2895
      %v2897 = vmul.f32 %v2893, 1.442695
      %v2898 = vpow.pop %v2897
      %v2899 = vmul.f32 %v2894, 1.442695
      %v2900 = vpow.pop %v2899
      %v2901 = vsel %vm597, %v2896, 0.0
      %2902 = vadd.xlane.f32.xlu0 %v2901
      %v2903 = vpop.xlane.xlu0 %2902
      %v2904 = vsel %vm597, %v2898, 0.0
      %2905 = vadd.xlane.f32.xlu0 %v2904
      %v2906 = vpop.xlane.xlu0 %2905
      %v2907 = vsel %vm597, %v2900, 0.0
      %2908 = vadd.xlane.f32.xlu0 %v2907
      %v2909 = vpop.xlane.xlu0 %2908
      %v2910 = vrcp.pop %v2903
      %v2911 = vmul.f32 %v2903, %v2910
      %v2912 = vsub.f32 1.0, %v2911
      %v2913 = vmul.f32 %v2910, %v2912
      %v2914 = vadd.f32 %v2910, %v2913
      %vm2915 = vweird.f32 %v2903
      %vm2916 = vweird.f32 %v2910
      %vm2917 = vmor %vm2915, %vm2916
      %v2918 = vsel %vm2917, %v2910, %v2914
      %v2919 = vand.u32 2147483647, %v2903
      %vm2920 = vcmp.eq.f32.partialorder %v2919, 8.507059e+37
      %v2921 = vand.u32 %v2903, 2147483648
      %v2922 = vor.u32 1.1754944e-38, %v2921
      %v2923 = vsel %vm2920, %v2922, %v2918
      %v2924 = vrcp.pop %v2906
      %v2925 = vmul.f32 %v2906, %v2924
      %v2926 = vsub.f32 1.0, %v2925
      %v2927 = vmul.f32 %v2924, %v2926
      %v2928 = vadd.f32 %v2924, %v2927
      %vm2929 = vweird.f32 %v2906
      %vm2930 = vweird.f32 %v2924
      %vm2931 = vmor %vm2929, %vm2930
      %v2932 = vsel %vm2931, %v2924, %v2928
      %v2933 = vand.u32 2147483647, %v2906
      %vm2934 = vcmp.eq.f32.partialorder %v2933, 8.507059e+37
      %v2935 = vand.u32 %v2906, 2147483648
      %v2936 = vor.u32 1.1754944e-38, %v2935
      %v2937 = vsel %vm2934, %v2936, %v2932
      %v2938 = vrcp.pop %v2909
      %v2939 = vmul.f32 %v2909, %v2938
      %v2940 = vsub.f32 1.0, %v2939
      %v2941 = vmul.f32 %v2938, %v2940
      %v2942 = vadd.f32 %v2938, %v2941
      %vm2943 = vweird.f32 %v2909
      %vm2944 = vweird.f32 %v2938
      %vm2945 = vmor %vm2943, %vm2944
      %v2946 = vsel %vm2945, %v2938, %v2942
      %v2947 = vand.u32 2147483647, %v2909
      %vm2948 = vcmp.eq.f32.partialorder %v2947, 8.507059e+37
      %v2949 = vand.u32 %v2909, 2147483648
      %v2950 = vor.u32 1.1754944e-38, %v2949
      %v2951 = vsel %vm2948, %v2950, %v2946
      %v2952 = vmul.f32 %v2896, %v2923
      %v2953 = vmul.f32 %v2898, %v2937
      %v2954 = vmul.f32 %v2900, %v2951
      %v2956 = vsel %vm597, %v2952, 0
      %v2959 = vsel %vm597, %v2953, 0
      %v2962 = vsel %vm597, %v2954, 0
      %2964 = vmatpush.msra.mxu0 0.0
      %2965 = vmatpush.msra.mxu0 0.0
      %2966 = vmatpush.msra.mxu0 0.0
      %2967 = vmatpush.msra.mxu0 0.0
      %2968 = vmatpush.msra.mxu0 0.0
      %2969 = vmatpush.msra.mxu0 0.0
      %2970 = vmatpush.msra.mxu0 0.0
      %2971 = vmatpush.msra.mxu0 0.0
      %2972 = vmatpush.msra.mxu0 0.0
      %2973 = vmatpush.msra.mxu0 0.0
      %2974 = vmatpush.msra.mxu0 0.0
      %2975 = vmatpush.msra.mxu0 0.0
      %2976 = vmatpush.msra.mxu0 0.0
      %2977 = vmatpush.msra.mxu0 %v2828
      %2978 = vmatpush.msra.mxu0 %v2825
      %2979 = vmatpush.msra.mxu0 %v2822
      %2980 = vmatmul.f32.gmra.mxu0 %v2956
      %v2981 = vpop.f32.mrf.mxu0
      %v2982 = vadd.f32 0.0, %v2981
      %2983 = vmatmul.f32.gmra.mxu0 %v2959
      %v2984 = vpop.f32.mrf.mxu0
      %v2985 = vadd.f32 0.0, %v2984
      %2986 = vmatmul.f32.gmra.mxu0 %v2962
      %v2987 = vpop.f32.mrf.mxu0
      %v2988 = vadd.f32 0.0, %v2987
      %2989 = vdwg.mxu0
      %v2991 = vsel %vm597, %v2789, 0
      %v2994 = vsel %vm597, %v2790, 0
      %v2997 = vsel %vm597, %v2791, 0
      %2999 = vmatpush.msra.mxu0 0.0
      %3000 = vmatpush.msra.mxu0 0.0
      %3001 = vmatpush.msra.mxu0 0.0
      %3002 = vmatpush.msra.mxu0 0.0
      %3003 = vmatpush.msra.mxu0 0.0
      %3004 = vmatpush.msra.mxu0 0.0
      %3005 = vmatpush.msra.mxu0 0.0
      %3006 = vmatpush.msra.mxu0 0.0
      %3007 = vmatpush.msra.mxu0 0.0
      %3008 = vmatpush.msra.mxu0 0.0
      %3009 = vmatpush.msra.mxu0 0.0
      %3010 = vmatpush.msra.mxu0 0.0
      %3011 = vmatpush.msra.mxu0 0.0
      %3012 = vmatpush.msra.mxu0 %v2668
      %3013 = vmatpush.msra.mxu0 %v2665
      %3014 = vmatpush.msra.mxu0 %v2662
      %3015 = vmatmul.f32.gmra.mxu0 %v2991
      %v3016 = vpop.f32.mrf.mxu0
      %v3017 = vadd.f32 %v2982, %v3016
      %3018 = vmatmul.f32.gmra.mxu0 %v2994
      %v3019 = vpop.f32.mrf.mxu0
      %v3020 = vadd.f32 %v2985, %v3019
      %3021 = vmatmul.f32.gmra.mxu0 %v2997
      %v3022 = vpop.f32.mrf.mxu0
      %v3023 = vadd.f32 %v2988, %v3022
      %3024 = vdwg.mxu0
      %v3025 = vadd.f32 %v3017, %v903
      %v3026 = vadd.f32 %v3020, %v903
      %v3027 = vadd.f32 %v3023, %v903
      %v3028 = vsel %vm332, %v3025, 0.0
      %3029 = vadd.xlane.f32.xlu0 %v3028
      %v3030 = vpop.xlane.xlu0 %3029
      %v3031 = vsel %vm332, %v3026, 0.0
      %3032 = vadd.xlane.f32.xlu0 %v3031
      %v3033 = vpop.xlane.xlu0 %3032
      %v3034 = vsel %vm332, %v3027, 0.0
      %3035 = vadd.xlane.f32.xlu0 %v3034
      %v3036 = vpop.xlane.xlu0 %3035
      %v3037 = vmul.f32 %v3030, %v922
      %v3038 = vmul.f32 %v3033, %v922
      %v3039 = vmul.f32 %v3036, %v922
      %v3040 = vsub.f32 %v3025, %v3037
      %v3041 = vsub.f32 %v3026, %v3038
      %v3042 = vsub.f32 %v3027, %v3039
      %v3043 = vmul.f32 %v3040, %v3040
      %v3044 = vmul.f32 %v3041, %v3041
      %v3045 = vmul.f32 %v3042, %v3042
      %v3046 = vsel %vm332, %v3043, 0.0
      %3047 = vadd.xlane.f32.xlu0 %v3046
      %v3048 = vpop.xlane.xlu0 %3047
      %v3049 = vsel %vm332, %v3044, 0.0
      %3050 = vadd.xlane.f32.xlu0 %v3049
      %v3051 = vpop.xlane.xlu0 %3050
      %v3052 = vsel %vm332, %v3045, 0.0
      %3053 = vadd.xlane.f32.xlu0 %v3052
      %v3054 = vpop.xlane.xlu0 %3053
      %v3055 = vmul.f32 %v3048, 0.032258064
      %v3056 = vmul.f32 %v3051, 0.032258064
      %v3057 = vmul.f32 %v3054, 0.032258064
      %v3058 = vrsqrt.pop %v3055
      %v3059 = vmul.f32 %v3058, %v3055
      %v3060 = vmul.f32 %v3059, %v3058
      %v3061 = vmul.f32 0.5, %v3060
      %v3062 = vsub.f32 1.5, %v3061
      %v3063 = vmul.f32 %v3058, %v3062
      %v3064 = vmul.f32 %v3055, %v3063
      %vm3065 = vcmp.eq.f32.partialorder %v3055, inf
      %v3066 = vsel %vm3065, %v3055, %v3064
      %vm3067 = vcmp.eq.f32.partialorder %v3055, 0.0
      %v3068 = vand.u32 %v3055, 2147483648
      %v3069 = vsel %vm3067, %v3068, %v3066
      %v3070 = vrsqrt.pop %v3056
      %v3071 = vmul.f32 %v3070, %v3056
      %v3072 = vmul.f32 %v3071, %v3070
      %v3073 = vmul.f32 0.5, %v3072
      %v3074 = vsub.f32 1.5, %v3073
      %v3075 = vmul.f32 %v3070, %v3074
      %v3076 = vmul.f32 %v3056, %v3075
      %vm3077 = vcmp.eq.f32.partialorder %v3056, inf
      %v3078 = vsel %vm3077, %v3056, %v3076
      %vm3079 = vcmp.eq.f32.partialorder %v3056, 0.0
      %v3080 = vand.u32 %v3056, 2147483648
      %v3081 = vsel %vm3079, %v3080, %v3078
      %v3082 = vrsqrt.pop %v3057
      %v3083 = vmul.f32 %v3082, %v3057
      %v3084 = vmul.f32 %v3083, %v3082
      %v3085 = vmul.f32 0.5, %v3084
      %v3086 = vsub.f32 1.5, %v3085
      %v3087 = vmul.f32 %v3082, %v3086
      %v3088 = vmul.f32 %v3057, %v3087
      %vm3089 = vcmp.eq.f32.partialorder %v3057, inf
      %v3090 = vsel %vm3089, %v3057, %v3088
      %vm3091 = vcmp.eq.f32.partialorder %v3057, 0.0
      %v3092 = vand.u32 %v3057, 2147483648
      %v3093 = vsel %vm3091, %v3092, %v3090
      %v3094 = vmul.f32 %v980, %v3040
      %v3095 = vmul.f32 %v980, %v3041
      %v3096 = vmul.f32 %v980, %v3042
      %v3097 = vadd.f32 %v3069, 1e-06
      %v3098 = vadd.f32 %v3081, 1e-06
      %v3099 = vadd.f32 %v3093, 1e-06
      %v3100 = vrcp.pop %v3097
      %v3101 = vmul.f32 %v3097, %v3100
      %v3102 = vsub.f32 1.0, %v3101
      %v3103 = vmul.f32 %v3100, %v3102
      %v3104 = vadd.f32 %v3100, %v3103
      %vm3105 = vweird.f32 %v3097
      %vm3106 = vweird.f32 %v3100
      %vm3107 = vmor %vm3105, %vm3106
      %v3108 = vsel %vm3107, %v3100, %v3104
      %v3109 = vand.u32 2147483647, %v3097
      %vm3110 = vcmp.eq.f32.partialorder %v3109, 8.507059e+37
      %v3111 = vand.u32 %v3097, 2147483648
      %v3112 = vor.u32 1.1754944e-38, %v3111
      %v3113 = vsel %vm3110, %v3112, %v3108
      %v3114 = vmul.f32 %v3094, %v3113
      %v3115 = vrcp.pop %v3098
      %v3116 = vmul.f32 %v3098, %v3115
      %v3117 = vsub.f32 1.0, %v3116
      %v3118 = vmul.f32 %v3115, %v3117
      %v3119 = vadd.f32 %v3115, %v3118
      %vm3120 = vweird.f32 %v3098
      %vm3121 = vweird.f32 %v3115
      %vm3122 = vmor %vm3120, %vm3121
      %v3123 = vsel %vm3122, %v3115, %v3119
      %v3124 = vand.u32 2147483647, %v3098
      %vm3125 = vcmp.eq.f32.partialorder %v3124, 8.507059e+37
      %v3126 = vand.u32 %v3098, 2147483648
      %v3127 = vor.u32 1.1754944e-38, %v3126
      %v3128 = vsel %vm3125, %v3127, %v3123
      %v3129 = vmul.f32 %v3095, %v3128
      %v3130 = vrcp.pop %v3099
      %v3131 = vmul.f32 %v3099, %v3130
      %v3132 = vsub.f32 1.0, %v3131
      %v3133 = vmul.f32 %v3130, %v3132
      %v3134 = vadd.f32 %v3130, %v3133
      %vm3135 = vweird.f32 %v3099
      %vm3136 = vweird.f32 %v3130
      %vm3137 = vmor %vm3135, %vm3136
      %v3138 = vsel %vm3137, %v3130, %v3134
      %v3139 = vand.u32 2147483647, %v3099
      %vm3140 = vcmp.eq.f32.partialorder %v3139, 8.507059e+37
      %v3141 = vand.u32 %v3099, 2147483648
      %v3142 = vor.u32 1.1754944e-38, %v3141
      %v3143 = vsel %vm3140, %v3142, %v3138
      %v3144 = vmul.f32 %v3096, %v3143
      %v3145 = vadd.f32 %v3114, %v1032
      %v3146 = vadd.f32 %v3129, %v1032
      %v3147 = vadd.f32 %v3144, %v1032
      %v3148 = vmax.f32 %v3145, 0.0
      %v3149 = vmax.f32 %v3146, 0.0
      %v3150 = vmax.f32 %v3147, 0.0
      %3151 = vst.msk [vmem:[%s251 + $0x60] sm:$0xff] %vm332, %v3148
      %3152 = vst.msk [vmem:[%s251 + $0x68] sm:$0xff] %vm332, %v3149
      %3153 = vst.msk [vmem:[%s251 + $0x70] sm:$0xff] %vm332, %v3150
      %v3154 = vmax.f32 %v468, 0.0
      %v3155 = vmax.f32 %v471, 0.0
      %v3156 = vmax.f32 %v474, 0.0
      %3160 = vrot.lane.b32.xlu0 %v3154, 96
      %v3161 = vpop.permute.xlu0 %3160
      %3162 = vrot.lane.b32.xlu0 %v3155, 96
      %v3163 = vpop.permute.xlu0 %3162
      %3164 = vrot.lane.b32.xlu0 %v3156, 96
      %v3165 = vpop.permute.xlu0 %3164
      %v3166 = vsel %vm514, %v3161, 0
      %v3168 = vsel %vm514, %v3163, 0
      %v3170 = vsel %vm514, %v3165, 0
      %3172 = vmatpush.msra.mxu0 0.0
      %3173 = vmatpush.msra.mxu0 0.0
      %3174 = vmatpush.msra.mxu0 0.0
      %3175 = vmatpush.msra.mxu0 0.0
      %3176 = vmatpush.msra.mxu0 0.0
      %3177 = vmatpush.msra.mxu0 0.0
      %3178 = vmatpush.msra.mxu0 0.0
      %3179 = vmatpush.msra.mxu0 0.0
      %3180 = vmatpush.msra.mxu0 0.0
      %3181 = vmatpush.msra.mxu0 0.0
      %3182 = vmatpush.msra.mxu0 0.0
      %3183 = vmatpush.msra.mxu0 0.0
      %3184 = vmatpush.msra.mxu0 0.0
      %3185 = vmatpush.msra.mxu0 0.0
      %3186 = vmatpush.msra.mxu0 0.0
      %3187 = vmatpush.msra.mxu0 %v494
      %3188 = vmatmul.f32.gmra.mxu0 %v3166
      %v3189 = vpop.f32.mrf.mxu0
      %v3190 = vadd.f32 0.0, %v3189
      %3191 = vmatmul.f32.gmra.mxu0 %v3168
      %v3192 = vpop.f32.mrf.mxu0
      %v3193 = vadd.f32 0.0, %v3192
      %3194 = vmatmul.f32.gmra.mxu0 %v3170
      %v3195 = vpop.f32.mrf.mxu0
      %v3196 = vadd.f32 0.0, %v3195
      %3197 = vdwg.mxu0
      %3201 = vrot.lane.b32.xlu0 %v468, 112
      %v3202 = vpop.permute.xlu0 %3201
      %3203 = vrot.lane.b32.xlu0 %v471, 112
      %v3204 = vpop.permute.xlu0 %3203
      %3205 = vrot.lane.b32.xlu0 %v474, 112
      %v3206 = vpop.permute.xlu0 %3205
      %v3207 = vsel %vm514, %v468, 0
      %v3209 = vsel %vm514, %v471, 0
      %v3211 = vsel %vm514, %v474, 0
      %v3213 = vsel %vm514, %v3202, 0
      %v3215 = vsel %vm514, %v3204, 0
      %v3217 = vsel %vm514, %v3206, 0
      %3219 = vmatpush.xpose.msra.mxu0 0.0
      %3220 = vmatpush.xpose.msra.mxu0 0.0
      %3221 = vmatpush.xpose.msra.mxu0 0.0
      %3222 = vmatpush.xpose.msra.mxu0 0.0
      %3223 = vmatpush.xpose.msra.mxu0 0.0
      %3224 = vmatpush.xpose.msra.mxu0 0.0
      %3225 = vmatpush.xpose.msra.mxu0 0.0
      %3226 = vmatpush.xpose.msra.mxu0 0.0
      %3227 = vmatpush.xpose.msra.mxu0 0.0
      %3228 = vmatpush.xpose.msra.mxu0 0.0
      %3229 = vmatpush.xpose.msra.mxu0 0.0
      %3230 = vmatpush.xpose.msra.mxu0 0.0
      %3231 = vmatpush.xpose.msra.mxu0 0.0
      %3232 = vmatpush.xpose.msra.mxu0 %v3217
      %3233 = vmatpush.xpose.msra.mxu0 %v3215
      %3234 = vmatpush.xpose.msra.mxu0 %v3213
      %3235 = vmatmul.f32.gmra.mxu0 %v3207
      %v3236 = vpop.f32.mrf.mxu0
      %v3237 = vadd.f32 0.0, %v3236
      %3238 = vmatmul.f32.gmra.mxu0 %v3209
      %v3239 = vpop.f32.mrf.mxu0
      %v3240 = vadd.f32 0.0, %v3239
      %3241 = vmatmul.f32.gmra.mxu0 %v3211
      %v3242 = vpop.f32.mrf.mxu0
      %v3243 = vadd.f32 0.0, %v3242
      %3244 = vdwg.mxu0
      %v3245 = vsel %vm501, -9e+15, %v3237
      %v3246 = vsel %vm501, -9e+15, %v3240
      %v3247 = vsel %vm501, -9e+15, %v3243
      %v3248 = vsel %vm597, %v3245, -inf
      %3249 = vmax.xlane.f32.xlu0 %v3248
      %v3250 = vpop.xlane.xlu0 %3249
      %v3251 = vsel %vm597, %v3246, -inf
      %3252 = vmax.xlane.f32.xlu0 %v3251
      %v3253 = vpop.xlane.xlu0 %3252
      %v3254 = vsel %vm597, %v3247, -inf
      %3255 = vmax.xlane.f32.xlu0 %v3254
      %v3256 = vpop.xlane.xlu0 %3255
      %v3257 = vsub.f32 %v3245, %v3250
      %v3258 = vsub.f32 %v3246, %v3253
      %v3259 = vsub.f32 %v3247, %v3256
      %v3260 = vmul.f32 %v3257, 1.442695
      %v3261 = vpow.pop %v3260
      %v3262 = vmul.f32 %v3258, 1.442695
      %v3263 = vpow.pop %v3262
      %v3264 = vmul.f32 %v3259, 1.442695
      %v3265 = vpow.pop %v3264
      %v3266 = vsel %vm597, %v3261, 0.0
      %3267 = vadd.xlane.f32.xlu0 %v3266
      %v3268 = vpop.xlane.xlu0 %3267
      %v3269 = vsel %vm597, %v3263, 0.0
      %3270 = vadd.xlane.f32.xlu0 %v3269
      %v3271 = vpop.xlane.xlu0 %3270
      %v3272 = vsel %vm597, %v3265, 0.0
      %3273 = vadd.xlane.f32.xlu0 %v3272
      %v3274 = vpop.xlane.xlu0 %3273
      %v3275 = vrcp.pop %v3268
      %v3276 = vmul.f32 %v3268, %v3275
      %v3277 = vsub.f32 1.0, %v3276
      %v3278 = vmul.f32 %v3275, %v3277
      %v3279 = vadd.f32 %v3275, %v3278
      %vm3280 = vweird.f32 %v3268
      %vm3281 = vweird.f32 %v3275
      %vm3282 = vmor %vm3280, %vm3281
      %v3283 = vsel %vm3282, %v3275, %v3279
      %v3284 = vand.u32 2147483647, %v3268
      %vm3285 = vcmp.eq.f32.partialorder %v3284, 8.507059e+37
      %v3286 = vand.u32 %v3268, 2147483648
      %v3287 = vor.u32 1.1754944e-38, %v3286
      %v3288 = vsel %vm3285, %v3287, %v3283
      %v3289 = vrcp.pop %v3271
      %v3290 = vmul.f32 %v3271, %v3289
      %v3291 = vsub.f32 1.0, %v3290
      %v3292 = vmul.f32 %v3289, %v3291
      %v3293 = vadd.f32 %v3289, %v3292
      %vm3294 = vweird.f32 %v3271
      %vm3295 = vweird.f32 %v3289
      %vm3296 = vmor %vm3294, %vm3295
      %v3297 = vsel %vm3296, %v3289, %v3293
      %v3298 = vand.u32 2147483647, %v3271
      %vm3299 = vcmp.eq.f32.partialorder %v3298, 8.507059e+37
      %v3300 = vand.u32 %v3271, 2147483648
      %v3301 = vor.u32 1.1754944e-38, %v3300
      %v3302 = vsel %vm3299, %v3301, %v3297
      %v3303 = vrcp.pop %v3274
      %v3304 = vmul.f32 %v3274, %v3303
      %v3305 = vsub.f32 1.0, %v3304
      %v3306 = vmul.f32 %v3303, %v3305
      %v3307 = vadd.f32 %v3303, %v3306
      %vm3308 = vweird.f32 %v3274
      %vm3309 = vweird.f32 %v3303
      %vm3310 = vmor %vm3308, %vm3309
      %v3311 = vsel %vm3310, %v3303, %v3307
      %v3312 = vand.u32 2147483647, %v3274
      %vm3313 = vcmp.eq.f32.partialorder %v3312, 8.507059e+37
      %v3314 = vand.u32 %v3274, 2147483648
      %v3315 = vor.u32 1.1754944e-38, %v3314
      %v3316 = vsel %vm3313, %v3315, %v3311
      %v3317 = vmul.f32 %v3261, %v3288
      %v3318 = vmul.f32 %v3263, %v3302
      %v3319 = vmul.f32 %v3265, %v3316
      %3320 = vrot.lane.b32.xlu0 %v3154, 88
      %v3321 = vpop.permute.xlu0 %3320
      %3322 = vrot.lane.b32.xlu0 %v3155, 88
      %v3323 = vpop.permute.xlu0 %3322
      %3324 = vrot.lane.b32.xlu0 %v3156, 88
      %v3325 = vpop.permute.xlu0 %3324
      %v3326 = vsel %vm514, %v3321, 0
      %v3328 = vsel %vm514, %v3323, 0
      %v3330 = vsel %vm514, %v3325, 0
      %3332 = vmatpush.msra.mxu0 0.0
      %3333 = vmatpush.msra.mxu0 0.0
      %3334 = vmatpush.msra.mxu0 0.0
      %3335 = vmatpush.msra.mxu0 0.0
      %3336 = vmatpush.msra.mxu0 0.0
      %3337 = vmatpush.msra.mxu0 0.0
      %3338 = vmatpush.msra.mxu0 0.0
      %3339 = vmatpush.msra.mxu0 0.0
      %3340 = vmatpush.msra.mxu0 0.0
      %3341 = vmatpush.msra.mxu0 0.0
      %3342 = vmatpush.msra.mxu0 0.0
      %3343 = vmatpush.msra.mxu0 0.0
      %3344 = vmatpush.msra.mxu0 0.0
      %3345 = vmatpush.msra.mxu0 0.0
      %3346 = vmatpush.msra.mxu0 0.0
      %3347 = vmatpush.msra.mxu0 %v495
      %3348 = vmatmul.f32.gmra.mxu0 %v3326
      %v3349 = vpop.f32.mrf.mxu0
      %v3350 = vadd.f32 0.0, %v3349
      %3351 = vmatmul.f32.gmra.mxu0 %v3328
      %v3352 = vpop.f32.mrf.mxu0
      %v3353 = vadd.f32 0.0, %v3352
      %3354 = vmatmul.f32.gmra.mxu0 %v3330
      %v3355 = vpop.f32.mrf.mxu0
      %v3356 = vadd.f32 0.0, %v3355
      %3357 = vdwg.mxu0
      %3358 = vrot.lane.b32.xlu0 %v468, 120
      %v3359 = vpop.permute.xlu0 %3358
      %3360 = vrot.lane.b32.xlu0 %v471, 120
      %v3361 = vpop.permute.xlu0 %3360
      %3362 = vrot.lane.b32.xlu0 %v474, 120
      %v3363 = vpop.permute.xlu0 %3362
      %3364 = vrot.lane.b32.xlu0 %v468, 104
      %v3365 = vpop.permute.xlu0 %3364
      %3366 = vrot.lane.b32.xlu0 %v471, 104
      %v3367 = vpop.permute.xlu0 %3366
      %3368 = vrot.lane.b32.xlu0 %v474, 104
      %v3369 = vpop.permute.xlu0 %3368
      %v3370 = vsel %vm514, %v3359, 0
      %v3372 = vsel %vm514, %v3361, 0
      %v3374 = vsel %vm514, %v3363, 0
      %v3376 = vsel %vm514, %v3365, 0
      %v3378 = vsel %vm514, %v3367, 0
      %v3380 = vsel %vm514, %v3369, 0
      %3382 = vmatpush.xpose.msra.mxu0 0.0
      %3383 = vmatpush.xpose.msra.mxu0 0.0
      %3384 = vmatpush.xpose.msra.mxu0 0.0
      %3385 = vmatpush.xpose.msra.mxu0 0.0
      %3386 = vmatpush.xpose.msra.mxu0 0.0
      %3387 = vmatpush.xpose.msra.mxu0 0.0
      %3388 = vmatpush.xpose.msra.mxu0 0.0
      %3389 = vmatpush.xpose.msra.mxu0 0.0
      %3390 = vmatpush.xpose.msra.mxu0 0.0
      %3391 = vmatpush.xpose.msra.mxu0 0.0
      %3392 = vmatpush.xpose.msra.mxu0 0.0
      %3393 = vmatpush.xpose.msra.mxu0 0.0
      %3394 = vmatpush.xpose.msra.mxu0 0.0
      %3395 = vmatpush.xpose.msra.mxu0 %v3380
      %3396 = vmatpush.xpose.msra.mxu0 %v3378
      %3397 = vmatpush.xpose.msra.mxu0 %v3376
      %3398 = vmatmul.f32.gmra.mxu0 %v3370
      %v3399 = vpop.f32.mrf.mxu0
      %v3400 = vadd.f32 0.0, %v3399
      %3401 = vmatmul.f32.gmra.mxu0 %v3372
      %v3402 = vpop.f32.mrf.mxu0
      %v3403 = vadd.f32 0.0, %v3402
      %3404 = vmatmul.f32.gmra.mxu0 %v3374
      %v3405 = vpop.f32.mrf.mxu0
      %v3406 = vadd.f32 0.0, %v3405
      %3407 = vdwg.mxu0
      %v3408 = vsel %vm501, -9e+15, %v3400
      %v3409 = vsel %vm501, -9e+15, %v3403
      %v3410 = vsel %vm501, -9e+15, %v3406
      %v3411 = vsel %vm597, %v3408, -inf
      %3412 = vmax.xlane.f32.xlu0 %v3411
      %v3413 = vpop.xlane.xlu0 %3412
      %v3414 = vsel %vm597, %v3409, -inf
      %3415 = vmax.xlane.f32.xlu0 %v3414
      %v3416 = vpop.xlane.xlu0 %3415
      %v3417 = vsel %vm597, %v3410, -inf
      %3418 = vmax.xlane.f32.xlu0 %v3417
      %v3419 = vpop.xlane.xlu0 %3418
      %v3420 = vsub.f32 %v3408, %v3413
      %v3421 = vsub.f32 %v3409, %v3416
      %v3422 = vsub.f32 %v3410, %v3419
      %v3423 = vmul.f32 %v3420, 1.442695
      %v3424 = vpow.pop %v3423
      %v3425 = vmul.f32 %v3421, 1.442695
      %v3426 = vpow.pop %v3425
      %v3427 = vmul.f32 %v3422, 1.442695
      %v3428 = vpow.pop %v3427
      %v3429 = vsel %vm597, %v3424, 0.0
      %3430 = vadd.xlane.f32.xlu0 %v3429
      %v3431 = vpop.xlane.xlu0 %3430
      %v3432 = vsel %vm597, %v3426, 0.0
      %3433 = vadd.xlane.f32.xlu0 %v3432
      %v3434 = vpop.xlane.xlu0 %3433
      %v3435 = vsel %vm597, %v3428, 0.0
      %3436 = vadd.xlane.f32.xlu0 %v3435
      %v3437 = vpop.xlane.xlu0 %3436
      %v3438 = vrcp.pop %v3431
      %v3439 = vmul.f32 %v3431, %v3438
      %v3440 = vsub.f32 1.0, %v3439
      %v3441 = vmul.f32 %v3438, %v3440
      %v3442 = vadd.f32 %v3438, %v3441
      %vm3443 = vweird.f32 %v3431
      %vm3444 = vweird.f32 %v3438
      %vm3445 = vmor %vm3443, %vm3444
      %v3446 = vsel %vm3445, %v3438, %v3442
      %v3447 = vand.u32 2147483647, %v3431
      %vm3448 = vcmp.eq.f32.partialorder %v3447, 8.507059e+37
      %v3449 = vand.u32 %v3431, 2147483648
      %v3450 = vor.u32 1.1754944e-38, %v3449
      %v3451 = vsel %vm3448, %v3450, %v3446
      %v3452 = vrcp.pop %v3434
      %v3453 = vmul.f32 %v3434, %v3452
      %v3454 = vsub.f32 1.0, %v3453
      %v3455 = vmul.f32 %v3452, %v3454
      %v3456 = vadd.f32 %v3452, %v3455
      %vm3457 = vweird.f32 %v3434
      %vm3458 = vweird.f32 %v3452
      %vm3459 = vmor %vm3457, %vm3458
      %v3460 = vsel %vm3459, %v3452, %v3456
      %v3461 = vand.u32 2147483647, %v3434
      %vm3462 = vcmp.eq.f32.partialorder %v3461, 8.507059e+37
      %v3463 = vand.u32 %v3434, 2147483648
      %v3464 = vor.u32 1.1754944e-38, %v3463
      %v3465 = vsel %vm3462, %v3464, %v3460
      %v3466 = vrcp.pop %v3437
      %v3467 = vmul.f32 %v3437, %v3466
      %v3468 = vsub.f32 1.0, %v3467
      %v3469 = vmul.f32 %v3466, %v3468
      %v3470 = vadd.f32 %v3466, %v3469
      %vm3471 = vweird.f32 %v3437
      %vm3472 = vweird.f32 %v3466
      %vm3473 = vmor %vm3471, %vm3472
      %v3474 = vsel %vm3473, %v3466, %v3470
      %v3475 = vand.u32 2147483647, %v3437
      %vm3476 = vcmp.eq.f32.partialorder %v3475, 8.507059e+37
      %v3477 = vand.u32 %v3437, 2147483648
      %v3478 = vor.u32 1.1754944e-38, %v3477
      %v3479 = vsel %vm3476, %v3478, %v3474
      %v3480 = vmul.f32 %v3424, %v3451
      %v3481 = vmul.f32 %v3426, %v3465
      %v3482 = vmul.f32 %v3428, %v3479
      %v3484 = vsel %vm597, %v3480, 0
      %v3487 = vsel %vm597, %v3481, 0
      %v3490 = vsel %vm597, %v3482, 0
      %3492 = vmatpush.msra.mxu0 0.0
      %3493 = vmatpush.msra.mxu0 0.0
      %3494 = vmatpush.msra.mxu0 0.0
      %3495 = vmatpush.msra.mxu0 0.0
      %3496 = vmatpush.msra.mxu0 0.0
      %3497 = vmatpush.msra.mxu0 0.0
      %3498 = vmatpush.msra.mxu0 0.0
      %3499 = vmatpush.msra.mxu0 0.0
      %3500 = vmatpush.msra.mxu0 0.0
      %3501 = vmatpush.msra.mxu0 0.0
      %3502 = vmatpush.msra.mxu0 0.0
      %3503 = vmatpush.msra.mxu0 0.0
      %3504 = vmatpush.msra.mxu0 0.0
      %3505 = vmatpush.msra.mxu0 %v3356
      %3506 = vmatpush.msra.mxu0 %v3353
      %3507 = vmatpush.msra.mxu0 %v3350
      %3508 = vmatmul.f32.gmra.mxu0 %v3484
      %v3509 = vpop.f32.mrf.mxu0
      %v3510 = vadd.f32 0.0, %v3509
      %3511 = vmatmul.f32.gmra.mxu0 %v3487
      %v3512 = vpop.f32.mrf.mxu0
      %v3513 = vadd.f32 0.0, %v3512
      %3514 = vmatmul.f32.gmra.mxu0 %v3490
      %v3515 = vpop.f32.mrf.mxu0
      %v3516 = vadd.f32 0.0, %v3515
      %3517 = vdwg.mxu0
      %v3519 = vsel %vm597, %v3317, 0
      %v3522 = vsel %vm597, %v3318, 0
      %v3525 = vsel %vm597, %v3319, 0
      %3527 = vmatpush.msra.mxu0 0.0
      %3528 = vmatpush.msra.mxu0 0.0
      %3529 = vmatpush.msra.mxu0 0.0
      %3530 = vmatpush.msra.mxu0 0.0
      %3531 = vmatpush.msra.mxu0 0.0
      %3532 = vmatpush.msra.mxu0 0.0
      %3533 = vmatpush.msra.mxu0 0.0
      %3534 = vmatpush.msra.mxu0 0.0
      %3535 = vmatpush.msra.mxu0 0.0
      %3536 = vmatpush.msra.mxu0 0.0
      %3537 = vmatpush.msra.mxu0 0.0
      %3538 = vmatpush.msra.mxu0 0.0
      %3539 = vmatpush.msra.mxu0 0.0
      %3540 = vmatpush.msra.mxu0 %v3196
      %3541 = vmatpush.msra.mxu0 %v3193
      %3542 = vmatpush.msra.mxu0 %v3190
      %3543 = vmatmul.f32.gmra.mxu0 %v3519
      %v3544 = vpop.f32.mrf.mxu0
      %v3545 = vadd.f32 %v3510, %v3544
      %3546 = vmatmul.f32.gmra.mxu0 %v3522
      %v3547 = vpop.f32.mrf.mxu0
      %v3548 = vadd.f32 %v3513, %v3547
      %3549 = vmatmul.f32.gmra.mxu0 %v3525
      %v3550 = vpop.f32.mrf.mxu0
      %v3551 = vadd.f32 %v3516, %v3550
      %3552 = vdwg.mxu0
      %v3553 = vadd.f32 %v3545, %v903
      %v3554 = vadd.f32 %v3548, %v903
      %v3555 = vadd.f32 %v3551, %v903
      %v3556 = vsel %vm332, %v3553, 0.0
      %3557 = vadd.xlane.f32.xlu0 %v3556
      %v3558 = vpop.xlane.xlu0 %3557
      %v3559 = vsel %vm332, %v3554, 0.0
      %3560 = vadd.xlane.f32.xlu0 %v3559
      %v3561 = vpop.xlane.xlu0 %3560
      %v3562 = vsel %vm332, %v3555, 0.0
      %3563 = vadd.xlane.f32.xlu0 %v3562
      %v3564 = vpop.xlane.xlu0 %3563
      %v3565 = vmul.f32 %v3558, %v922
      %v3566 = vmul.f32 %v3561, %v922
      %v3567 = vmul.f32 %v3564, %v922
      %v3568 = vsub.f32 %v3553, %v3565
      %v3569 = vsub.f32 %v3554, %v3566
      %v3570 = vsub.f32 %v3555, %v3567
      %v3571 = vmul.f32 %v3568, %v3568
      %v3572 = vmul.f32 %v3569, %v3569
      %v3573 = vmul.f32 %v3570, %v3570
      %v3574 = vsel %vm332, %v3571, 0.0
      %3575 = vadd.xlane.f32.xlu0 %v3574
      %v3576 = vpop.xlane.xlu0 %3575
      %v3577 = vsel %vm332, %v3572, 0.0
      %3578 = vadd.xlane.f32.xlu0 %v3577
      %v3579 = vpop.xlane.xlu0 %3578
      %v3580 = vsel %vm332, %v3573, 0.0
      %3581 = vadd.xlane.f32.xlu0 %v3580
      %v3582 = vpop.xlane.xlu0 %3581
      %v3583 = vmul.f32 %v3576, 0.032258064
      %v3584 = vmul.f32 %v3579, 0.032258064
      %v3585 = vmul.f32 %v3582, 0.032258064
      %v3586 = vrsqrt.pop %v3583
      %v3587 = vmul.f32 %v3586, %v3583
      %v3588 = vmul.f32 %v3587, %v3586
      %v3589 = vmul.f32 0.5, %v3588
      %v3590 = vsub.f32 1.5, %v3589
      %v3591 = vmul.f32 %v3586, %v3590
      %v3592 = vmul.f32 %v3583, %v3591
      %vm3593 = vcmp.eq.f32.partialorder %v3583, inf
      %v3594 = vsel %vm3593, %v3583, %v3592
      %vm3595 = vcmp.eq.f32.partialorder %v3583, 0.0
      %v3596 = vand.u32 %v3583, 2147483648
      %v3597 = vsel %vm3595, %v3596, %v3594
      %v3598 = vrsqrt.pop %v3584
      %v3599 = vmul.f32 %v3598, %v3584
      %v3600 = vmul.f32 %v3599, %v3598
      %v3601 = vmul.f32 0.5, %v3600
      %v3602 = vsub.f32 1.5, %v3601
      %v3603 = vmul.f32 %v3598, %v3602
      %v3604 = vmul.f32 %v3584, %v3603
      %vm3605 = vcmp.eq.f32.partialorder %v3584, inf
      %v3606 = vsel %vm3605, %v3584, %v3604
      %vm3607 = vcmp.eq.f32.partialorder %v3584, 0.0
      %v3608 = vand.u32 %v3584, 2147483648
      %v3609 = vsel %vm3607, %v3608, %v3606
      %v3610 = vrsqrt.pop %v3585
      %v3611 = vmul.f32 %v3610, %v3585
      %v3612 = vmul.f32 %v3611, %v3610
      %v3613 = vmul.f32 0.5, %v3612
      %v3614 = vsub.f32 1.5, %v3613
      %v3615 = vmul.f32 %v3610, %v3614
      %v3616 = vmul.f32 %v3585, %v3615
      %vm3617 = vcmp.eq.f32.partialorder %v3585, inf
      %v3618 = vsel %vm3617, %v3585, %v3616
      %vm3619 = vcmp.eq.f32.partialorder %v3585, 0.0
      %v3620 = vand.u32 %v3585, 2147483648
      %v3621 = vsel %vm3619, %v3620, %v3618
      %v3622 = vmul.f32 %v980, %v3568
      %v3623 = vmul.f32 %v980, %v3569
      %v3624 = vmul.f32 %v980, %v3570
      %v3625 = vadd.f32 %v3597, 1e-06
      %v3626 = vadd.f32 %v3609, 1e-06
      %v3627 = vadd.f32 %v3621, 1e-06
      %v3628 = vrcp.pop %v3625
      %v3629 = vmul.f32 %v3625, %v3628
      %v3630 = vsub.f32 1.0, %v3629
      %v3631 = vmul.f32 %v3628, %v3630
      %v3632 = vadd.f32 %v3628, %v3631
      %vm3633 = vweird.f32 %v3625
      %vm3634 = vweird.f32 %v3628
      %vm3635 = vmor %vm3633, %vm3634
      %v3636 = vsel %vm3635, %v3628, %v3632
      %v3637 = vand.u32 2147483647, %v3625
      %vm3638 = vcmp.eq.f32.partialorder %v3637, 8.507059e+37
      %v3639 = vand.u32 %v3625, 2147483648
      %v3640 = vor.u32 1.1754944e-38, %v3639
      %v3641 = vsel %vm3638, %v3640, %v3636
      %v3642 = vmul.f32 %v3622, %v3641
      %v3643 = vrcp.pop %v3626
      %v3644 = vmul.f32 %v3626, %v3643
      %v3645 = vsub.f32 1.0, %v3644
      %v3646 = vmul.f32 %v3643, %v3645
      %v3647 = vadd.f32 %v3643, %v3646
      %vm3648 = vweird.f32 %v3626
      %vm3649 = vweird.f32 %v3643
      %vm3650 = vmor %vm3648, %vm3649
      %v3651 = vsel %vm3650, %v3643, %v3647
      %v3652 = vand.u32 2147483647, %v3626
      %vm3653 = vcmp.eq.f32.partialorder %v3652, 8.507059e+37
      %v3654 = vand.u32 %v3626, 2147483648
      %v3655 = vor.u32 1.1754944e-38, %v3654
      %v3656 = vsel %vm3653, %v3655, %v3651
      %v3657 = vmul.f32 %v3623, %v3656
      %v3658 = vrcp.pop %v3627
      %v3659 = vmul.f32 %v3627, %v3658
      %v3660 = vsub.f32 1.0, %v3659
      %v3661 = vmul.f32 %v3658, %v3660
      %v3662 = vadd.f32 %v3658, %v3661
      %vm3663 = vweird.f32 %v3627
      %vm3664 = vweird.f32 %v3658
      %vm3665 = vmor %vm3663, %vm3664
      %v3666 = vsel %vm3665, %v3658, %v3662
      %v3667 = vand.u32 2147483647, %v3627
      %vm3668 = vcmp.eq.f32.partialorder %v3667, 8.507059e+37
      %v3669 = vand.u32 %v3627, 2147483648
      %v3670 = vor.u32 1.1754944e-38, %v3669
      %v3671 = vsel %vm3668, %v3670, %v3666
      %v3672 = vmul.f32 %v3624, %v3671
      %v3673 = vadd.f32 %v3642, %v1032
      %v3674 = vadd.f32 %v3657, %v1032
      %v3675 = vadd.f32 %v3672, %v1032
      %v3676 = vmax.f32 %v3673, 0.0
      %v3677 = vmax.f32 %v3674, 0.0
      %v3678 = vmax.f32 %v3675, 0.0
      %3679 = vst.msk [vmem:[%s251 + $0x78] sm:$0xff] %vm332, %v3676
      %3680 = vst.msk [vmem:[%s251 + $0x80] sm:$0xff] %vm332, %v3677
      %3681 = vst.msk [vmem:[%s251 + $0x88] sm:$0xff] %vm332, %v3678
      %v3682 = vmax.f32 %v477, 0.0
      %v3683 = vmax.f32 %v480, 0.0
      %v3684 = vmax.f32 %v483, 0.0
      %3688 = vrot.lane.b32.xlu0 %v3682, 96
      %v3689 = vpop.permute.xlu0 %3688
      %3690 = vrot.lane.b32.xlu0 %v3683, 96
      %v3691 = vpop.permute.xlu0 %3690
      %3692 = vrot.lane.b32.xlu0 %v3684, 96
      %v3693 = vpop.permute.xlu0 %3692
      %v3694 = vsel %vm514, %v3689, 0
      %v3696 = vsel %vm514, %v3691, 0
      %v3698 = vsel %vm514, %v3693, 0
      %3700 = vmatpush.msra.mxu0 0.0
      %3701 = vmatpush.msra.mxu0 0.0
      %3702 = vmatpush.msra.mxu0 0.0
      %3703 = vmatpush.msra.mxu0 0.0
      %3704 = vmatpush.msra.mxu0 0.0
      %3705 = vmatpush.msra.mxu0 0.0
      %3706 = vmatpush.msra.mxu0 0.0
      %3707 = vmatpush.msra.mxu0 0.0
      %3708 = vmatpush.msra.mxu0 0.0
      %3709 = vmatpush.msra.mxu0 0.0
      %3710 = vmatpush.msra.mxu0 0.0
      %3711 = vmatpush.msra.mxu0 0.0
      %3712 = vmatpush.msra.mxu0 0.0
      %3713 = vmatpush.msra.mxu0 0.0
      %3714 = vmatpush.msra.mxu0 0.0
      %3715 = vmatpush.msra.mxu0 %v494
      %3716 = vmatmul.f32.gmra.mxu0 %v3694
      %v3717 = vpop.f32.mrf.mxu0
      %v3718 = vadd.f32 0.0, %v3717
      %3719 = vmatmul.f32.gmra.mxu0 %v3696
      %v3720 = vpop.f32.mrf.mxu0
      %v3721 = vadd.f32 0.0, %v3720
      %3722 = vmatmul.f32.gmra.mxu0 %v3698
      %v3723 = vpop.f32.mrf.mxu0
      %v3724 = vadd.f32 0.0, %v3723
      %3725 = vdwg.mxu0
      %3729 = vrot.lane.b32.xlu0 %v477, 112
      %v3730 = vpop.permute.xlu0 %3729
      %3731 = vrot.lane.b32.xlu0 %v480, 112
      %v3732 = vpop.permute.xlu0 %3731
      %3733 = vrot.lane.b32.xlu0 %v483, 112
      %v3734 = vpop.permute.xlu0 %3733
      %v3735 = vsel %vm514, %v477, 0
      %v3737 = vsel %vm514, %v480, 0
      %v3739 = vsel %vm514, %v483, 0
      %v3741 = vsel %vm514, %v3730, 0
      %v3743 = vsel %vm514, %v3732, 0
      %v3745 = vsel %vm514, %v3734, 0
      %3747 = vmatpush.xpose.msra.mxu0 0.0
      %3748 = vmatpush.xpose.msra.mxu0 0.0
      %3749 = vmatpush.xpose.msra.mxu0 0.0
      %3750 = vmatpush.xpose.msra.mxu0 0.0
      %3751 = vmatpush.xpose.msra.mxu0 0.0
      %3752 = vmatpush.xpose.msra.mxu0 0.0
      %3753 = vmatpush.xpose.msra.mxu0 0.0
      %3754 = vmatpush.xpose.msra.mxu0 0.0
      %3755 = vmatpush.xpose.msra.mxu0 0.0
      %3756 = vmatpush.xpose.msra.mxu0 0.0
      %3757 = vmatpush.xpose.msra.mxu0 0.0
      %3758 = vmatpush.xpose.msra.mxu0 0.0
      %3759 = vmatpush.xpose.msra.mxu0 0.0
      %3760 = vmatpush.xpose.msra.mxu0 %v3745
      %3761 = vmatpush.xpose.msra.mxu0 %v3743
      %3762 = vmatpush.xpose.msra.mxu0 %v3741
      %3763 = vmatmul.f32.gmra.mxu0 %v3735
      %v3764 = vpop.f32.mrf.mxu0
      %v3765 = vadd.f32 0.0, %v3764
      %3766 = vmatmul.f32.gmra.mxu0 %v3737
      %v3767 = vpop.f32.mrf.mxu0
      %v3768 = vadd.f32 0.0, %v3767
      %3769 = vmatmul.f32.gmra.mxu0 %v3739
      %v3770 = vpop.f32.mrf.mxu0
      %v3771 = vadd.f32 0.0, %v3770
      %3772 = vdwg.mxu0
      %v3773 = vsel %vm501, -9e+15, %v3765
      %v3774 = vsel %vm501, -9e+15, %v3768
      %v3775 = vsel %vm501, -9e+15, %v3771
      %v3776 = vsel %vm597, %v3773, -inf
      %3777 = vmax.xlane.f32.xlu0 %v3776
      %v3778 = vpop.xlane.xlu0 %3777
      %v3779 = vsel %vm597, %v3774, -inf
      %3780 = vmax.xlane.f32.xlu0 %v3779
      %v3781 = vpop.xlane.xlu0 %3780
      %v3782 = vsel %vm597, %v3775, -inf
      %3783 = vmax.xlane.f32.xlu0 %v3782
      %v3784 = vpop.xlane.xlu0 %3783
      %v3785 = vsub.f32 %v3773, %v3778
      %v3786 = vsub.f32 %v3774, %v3781
      %v3787 = vsub.f32 %v3775, %v3784
      %v3788 = vmul.f32 %v3785, 1.442695
      %v3789 = vpow.pop %v3788
      %v3790 = vmul.f32 %v3786, 1.442695
      %v3791 = vpow.pop %v3790
      %v3792 = vmul.f32 %v3787, 1.442695
      %v3793 = vpow.pop %v3792
      %v3794 = vsel %vm597, %v3789, 0.0
      %3795 = vadd.xlane.f32.xlu0 %v3794
      %v3796 = vpop.xlane.xlu0 %3795
      %v3797 = vsel %vm597, %v3791, 0.0
      %3798 = vadd.xlane.f32.xlu0 %v3797
      %v3799 = vpop.xlane.xlu0 %3798
      %v3800 = vsel %vm597, %v3793, 0.0
      %3801 = vadd.xlane.f32.xlu0 %v3800
      %v3802 = vpop.xlane.xlu0 %3801
      %v3803 = vrcp.pop %v3796
      %v3804 = vmul.f32 %v3796, %v3803
      %v3805 = vsub.f32 1.0, %v3804
      %v3806 = vmul.f32 %v3803, %v3805
      %v3807 = vadd.f32 %v3803, %v3806
      %vm3808 = vweird.f32 %v3796
      %vm3809 = vweird.f32 %v3803
      %vm3810 = vmor %vm3808, %vm3809
      %v3811 = vsel %vm3810, %v3803, %v3807
      %v3812 = vand.u32 2147483647, %v3796
      %vm3813 = vcmp.eq.f32.partialorder %v3812, 8.507059e+37
      %v3814 = vand.u32 %v3796, 2147483648
      %v3815 = vor.u32 1.1754944e-38, %v3814
      %v3816 = vsel %vm3813, %v3815, %v3811
      %v3817 = vrcp.pop %v3799
      %v3818 = vmul.f32 %v3799, %v3817
      %v3819 = vsub.f32 1.0, %v3818
      %v3820 = vmul.f32 %v3817, %v3819
      %v3821 = vadd.f32 %v3817, %v3820
      %vm3822 = vweird.f32 %v3799
      %vm3823 = vweird.f32 %v3817
      %vm3824 = vmor %vm3822, %vm3823
      %v3825 = vsel %vm3824, %v3817, %v3821
      %v3826 = vand.u32 2147483647, %v3799
      %vm3827 = vcmp.eq.f32.partialorder %v3826, 8.507059e+37
      %v3828 = vand.u32 %v3799, 2147483648
      %v3829 = vor.u32 1.1754944e-38, %v3828
      %v3830 = vsel %vm3827, %v3829, %v3825
      %v3831 = vrcp.pop %v3802
      %v3832 = vmul.f32 %v3802, %v3831
      %v3833 = vsub.f32 1.0, %v3832
      %v3834 = vmul.f32 %v3831, %v3833
      %v3835 = vadd.f32 %v3831, %v3834
      %vm3836 = vweird.f32 %v3802
      %vm3837 = vweird.f32 %v3831
      %vm3838 = vmor %vm3836, %vm3837
      %v3839 = vsel %vm3838, %v3831, %v3835
      %v3840 = vand.u32 2147483647, %v3802
      %vm3841 = vcmp.eq.f32.partialorder %v3840, 8.507059e+37
      %v3842 = vand.u32 %v3802, 2147483648
      %v3843 = vor.u32 1.1754944e-38, %v3842
      %v3844 = vsel %vm3841, %v3843, %v3839
      %v3845 = vmul.f32 %v3789, %v3816
      %v3846 = vmul.f32 %v3791, %v3830
      %v3847 = vmul.f32 %v3793, %v3844
      %3848 = vrot.lane.b32.xlu0 %v3682, 88
      %v3849 = vpop.permute.xlu0 %3848
      %3850 = vrot.lane.b32.xlu0 %v3683, 88
      %v3851 = vpop.permute.xlu0 %3850
      %3852 = vrot.lane.b32.xlu0 %v3684, 88
      %v3853 = vpop.permute.xlu0 %3852
      %v3854 = vsel %vm514, %v3849, 0
      %v3856 = vsel %vm514, %v3851, 0
      %v3858 = vsel %vm514, %v3853, 0
      %3860 = vmatpush.msra.mxu0 0.0
      %3861 = vmatpush.msra.mxu0 0.0
      %3862 = vmatpush.msra.mxu0 0.0
      %3863 = vmatpush.msra.mxu0 0.0
      %3864 = vmatpush.msra.mxu0 0.0
      %3865 = vmatpush.msra.mxu0 0.0
      %3866 = vmatpush.msra.mxu0 0.0
      %3867 = vmatpush.msra.mxu0 0.0
      %3868 = vmatpush.msra.mxu0 0.0
      %3869 = vmatpush.msra.mxu0 0.0
      %3870 = vmatpush.msra.mxu0 0.0
      %3871 = vmatpush.msra.mxu0 0.0
      %3872 = vmatpush.msra.mxu0 0.0
      %3873 = vmatpush.msra.mxu0 0.0
      %3874 = vmatpush.msra.mxu0 0.0
      %3875 = vmatpush.msra.mxu0 %v495
      %3876 = vmatmul.f32.gmra.mxu0 %v3854
      %v3877 = vpop.f32.mrf.mxu0
      %v3878 = vadd.f32 0.0, %v3877
      %3879 = vmatmul.f32.gmra.mxu0 %v3856
      %v3880 = vpop.f32.mrf.mxu0
      %v3881 = vadd.f32 0.0, %v3880
      %3882 = vmatmul.f32.gmra.mxu0 %v3858
      %v3883 = vpop.f32.mrf.mxu0
      %v3884 = vadd.f32 0.0, %v3883
      %3885 = vdwg.mxu0
      %3886 = vrot.lane.b32.xlu0 %v477, 120
      %v3887 = vpop.permute.xlu0 %3886
      %3888 = vrot.lane.b32.xlu0 %v480, 120
      %v3889 = vpop.permute.xlu0 %3888
      %3890 = vrot.lane.b32.xlu0 %v483, 120
      %v3891 = vpop.permute.xlu0 %3890
      %3892 = vrot.lane.b32.xlu0 %v477, 104
      %v3893 = vpop.permute.xlu0 %3892
      %3894 = vrot.lane.b32.xlu0 %v480, 104
      %v3895 = vpop.permute.xlu0 %3894
      %3896 = vrot.lane.b32.xlu0 %v483, 104
      %v3897 = vpop.permute.xlu0 %3896
      %v3898 = vsel %vm514, %v3887, 0
      %v3900 = vsel %vm514, %v3889, 0
      %v3902 = vsel %vm514, %v3891, 0
      %v3904 = vsel %vm514, %v3893, 0
      %v3906 = vsel %vm514, %v3895, 0
      %v3908 = vsel %vm514, %v3897, 0
      %3910 = vmatpush.xpose.msra.mxu0 0.0
      %3911 = vmatpush.xpose.msra.mxu0 0.0
      %3912 = vmatpush.xpose.msra.mxu0 0.0
      %3913 = vmatpush.xpose.msra.mxu0 0.0
      %3914 = vmatpush.xpose.msra.mxu0 0.0
      %3915 = vmatpush.xpose.msra.mxu0 0.0
      %3916 = vmatpush.xpose.msra.mxu0 0.0
      %3917 = vmatpush.xpose.msra.mxu0 0.0
      %3918 = vmatpush.xpose.msra.mxu0 0.0
      %3919 = vmatpush.xpose.msra.mxu0 0.0
      %3920 = vmatpush.xpose.msra.mxu0 0.0
      %3921 = vmatpush.xpose.msra.mxu0 0.0
      %3922 = vmatpush.xpose.msra.mxu0 0.0
      %3923 = vmatpush.xpose.msra.mxu0 %v3908
      %3924 = vmatpush.xpose.msra.mxu0 %v3906
      %3925 = vmatpush.xpose.msra.mxu0 %v3904
      %3926 = vmatmul.f32.gmra.mxu0 %v3898
      %v3927 = vpop.f32.mrf.mxu0
      %v3928 = vadd.f32 0.0, %v3927
      %3929 = vmatmul.f32.gmra.mxu0 %v3900
      %v3930 = vpop.f32.mrf.mxu0
      %v3931 = vadd.f32 0.0, %v3930
      %3932 = vmatmul.f32.gmra.mxu0 %v3902
      %v3933 = vpop.f32.mrf.mxu0
      %v3934 = vadd.f32 0.0, %v3933
      %3935 = vdwg.mxu0
      %v3936 = vsel %vm501, -9e+15, %v3928
      %v3937 = vsel %vm501, -9e+15, %v3931
      %v3938 = vsel %vm501, -9e+15, %v3934
      %v3939 = vsel %vm597, %v3936, -inf
      %3940 = vmax.xlane.f32.xlu0 %v3939
      %v3941 = vpop.xlane.xlu0 %3940
      %v3942 = vsel %vm597, %v3937, -inf
      %3943 = vmax.xlane.f32.xlu0 %v3942
      %v3944 = vpop.xlane.xlu0 %3943
      %v3945 = vsel %vm597, %v3938, -inf
      %3946 = vmax.xlane.f32.xlu0 %v3945
      %v3947 = vpop.xlane.xlu0 %3946
      %v3948 = vsub.f32 %v3936, %v3941
      %v3949 = vsub.f32 %v3937, %v3944
      %v3950 = vsub.f32 %v3938, %v3947
      %v3951 = vmul.f32 %v3948, 1.442695
      %v3952 = vpow.pop %v3951
      %v3953 = vmul.f32 %v3949, 1.442695
      %v3954 = vpow.pop %v3953
      %v3955 = vmul.f32 %v3950, 1.442695
      %v3956 = vpow.pop %v3955
      %v3957 = vsel %vm597, %v3952, 0.0
      %3958 = vadd.xlane.f32.xlu0 %v3957
      %v3959 = vpop.xlane.xlu0 %3958
      %v3960 = vsel %vm597, %v3954, 0.0
      %3961 = vadd.xlane.f32.xlu0 %v3960
      %v3962 = vpop.xlane.xlu0 %3961
      %v3963 = vsel %vm597, %v3956, 0.0
      %3964 = vadd.xlane.f32.xlu0 %v3963
      %v3965 = vpop.xlane.xlu0 %3964
      %v3966 = vrcp.pop %v3959
      %v3967 = vmul.f32 %v3959, %v3966
      %v3968 = vsub.f32 1.0, %v3967
      %v3969 = vmul.f32 %v3966, %v3968
      %v3970 = vadd.f32 %v3966, %v3969
      %vm3971 = vweird.f32 %v3959
      %vm3972 = vweird.f32 %v3966
      %vm3973 = vmor %vm3971, %vm3972
      %v3974 = vsel %vm3973, %v3966, %v3970
      %v3975 = vand.u32 2147483647, %v3959
      %vm3976 = vcmp.eq.f32.partialorder %v3975, 8.507059e+37
      %v3977 = vand.u32 %v3959, 2147483648
      %v3978 = vor.u32 1.1754944e-38, %v3977
      %v3979 = vsel %vm3976, %v3978, %v3974
      %v3980 = vrcp.pop %v3962
      %v3981 = vmul.f32 %v3962, %v3980
      %v3982 = vsub.f32 1.0, %v3981
      %v3983 = vmul.f32 %v3980, %v3982
      %v3984 = vadd.f32 %v3980, %v3983
      %vm3985 = vweird.f32 %v3962
      %vm3986 = vweird.f32 %v3980
      %vm3987 = vmor %vm3985, %vm3986
      %v3988 = vsel %vm3987, %v3980, %v3984
      %v3989 = vand.u32 2147483647, %v3962
      %vm3990 = vcmp.eq.f32.partialorder %v3989, 8.507059e+37
      %v3991 = vand.u32 %v3962, 2147483648
      %v3992 = vor.u32 1.1754944e-38, %v3991
      %v3993 = vsel %vm3990, %v3992, %v3988
      %v3994 = vrcp.pop %v3965
      %v3995 = vmul.f32 %v3965, %v3994
      %v3996 = vsub.f32 1.0, %v3995
      %v3997 = vmul.f32 %v3994, %v3996
      %v3998 = vadd.f32 %v3994, %v3997
      %vm3999 = vweird.f32 %v3965
      %vm4000 = vweird.f32 %v3994
      %vm4001 = vmor %vm3999, %vm4000
      %v4002 = vsel %vm4001, %v3994, %v3998
      %v4003 = vand.u32 2147483647, %v3965
      %vm4004 = vcmp.eq.f32.partialorder %v4003, 8.507059e+37
      %v4005 = vand.u32 %v3965, 2147483648
      %v4006 = vor.u32 1.1754944e-38, %v4005
      %v4007 = vsel %vm4004, %v4006, %v4002
      %v4008 = vmul.f32 %v3952, %v3979
      %v4009 = vmul.f32 %v3954, %v3993
      %v4010 = vmul.f32 %v3956, %v4007
      %v4012 = vsel %vm597, %v4008, 0
      %v4015 = vsel %vm597, %v4009, 0
      %v4018 = vsel %vm597, %v4010, 0
      %4020 = vmatpush.msra.mxu0 0.0
      %4021 = vmatpush.msra.mxu0 0.0
      %4022 = vmatpush.msra.mxu0 0.0
      %4023 = vmatpush.msra.mxu0 0.0
      %4024 = vmatpush.msra.mxu0 0.0
      %4025 = vmatpush.msra.mxu0 0.0
      %4026 = vmatpush.msra.mxu0 0.0
      %4027 = vmatpush.msra.mxu0 0.0
      %4028 = vmatpush.msra.mxu0 0.0
      %4029 = vmatpush.msra.mxu0 0.0
      %4030 = vmatpush.msra.mxu0 0.0
      %4031 = vmatpush.msra.mxu0 0.0
      %4032 = vmatpush.msra.mxu0 0.0
      %4033 = vmatpush.msra.mxu0 %v3884
      %4034 = vmatpush.msra.mxu0 %v3881
      %4035 = vmatpush.msra.mxu0 %v3878
      %4036 = vmatmul.f32.gmra.mxu0 %v4012
      %v4037 = vpop.f32.mrf.mxu0
      %v4038 = vadd.f32 0.0, %v4037
      %4039 = vmatmul.f32.gmra.mxu0 %v4015
      %v4040 = vpop.f32.mrf.mxu0
      %v4041 = vadd.f32 0.0, %v4040
      %4042 = vmatmul.f32.gmra.mxu0 %v4018
      %v4043 = vpop.f32.mrf.mxu0
      %v4044 = vadd.f32 0.0, %v4043
      %4045 = vdwg.mxu0
      %v4047 = vsel %vm597, %v3845, 0
      %v4050 = vsel %vm597, %v3846, 0
      %v4053 = vsel %vm597, %v3847, 0
      %4055 = vmatpush.msra.mxu0 0.0
      %4056 = vmatpush.msra.mxu0 0.0
      %4057 = vmatpush.msra.mxu0 0.0
      %4058 = vmatpush.msra.mxu0 0.0
      %4059 = vmatpush.msra.mxu0 0.0
      %4060 = vmatpush.msra.mxu0 0.0
      %4061 = vmatpush.msra.mxu0 0.0
      %4062 = vmatpush.msra.mxu0 0.0
      %4063 = vmatpush.msra.mxu0 0.0
      %4064 = vmatpush.msra.mxu0 0.0
      %4065 = vmatpush.msra.mxu0 0.0
      %4066 = vmatpush.msra.mxu0 0.0
      %4067 = vmatpush.msra.mxu0 0.0
      %4068 = vmatpush.msra.mxu0 %v3724
      %4069 = vmatpush.msra.mxu0 %v3721
      %4070 = vmatpush.msra.mxu0 %v3718
      %4071 = vmatmul.f32.gmra.mxu0 %v4047
      %v4072 = vpop.f32.mrf.mxu0
      %v4073 = vadd.f32 %v4038, %v4072
      %4074 = vmatmul.f32.gmra.mxu0 %v4050
      %v4075 = vpop.f32.mrf.mxu0
      %v4076 = vadd.f32 %v4041, %v4075
      %4077 = vmatmul.f32.gmra.mxu0 %v4053
      %v4078 = vpop.f32.mrf.mxu0
      %v4079 = vadd.f32 %v4044, %v4078
      %4080 = vdwg.mxu0
      %v4081 = vadd.f32 %v4073, %v903
      %v4082 = vadd.f32 %v4076, %v903
      %v4083 = vadd.f32 %v4079, %v903
      %v4084 = vsel %vm332, %v4081, 0.0
      %4085 = vadd.xlane.f32.xlu0 %v4084
      %v4086 = vpop.xlane.xlu0 %4085
      %v4087 = vsel %vm332, %v4082, 0.0
      %4088 = vadd.xlane.f32.xlu0 %v4087
      %v4089 = vpop.xlane.xlu0 %4088
      %v4090 = vsel %vm332, %v4083, 0.0
      %4091 = vadd.xlane.f32.xlu0 %v4090
      %v4092 = vpop.xlane.xlu0 %4091
      %v4093 = vmul.f32 %v4086, %v922
      %v4094 = vmul.f32 %v4089, %v922
      %v4095 = vmul.f32 %v4092, %v922
      %v4096 = vsub.f32 %v4081, %v4093
      %v4097 = vsub.f32 %v4082, %v4094
      %v4098 = vsub.f32 %v4083, %v4095
      %v4099 = vmul.f32 %v4096, %v4096
      %v4100 = vmul.f32 %v4097, %v4097
      %v4101 = vmul.f32 %v4098, %v4098
      %v4102 = vsel %vm332, %v4099, 0.0
      %4103 = vadd.xlane.f32.xlu0 %v4102
      %v4104 = vpop.xlane.xlu0 %4103
      %v4105 = vsel %vm332, %v4100, 0.0
      %4106 = vadd.xlane.f32.xlu0 %v4105
      %v4107 = vpop.xlane.xlu0 %4106
      %v4108 = vsel %vm332, %v4101, 0.0
      %4109 = vadd.xlane.f32.xlu0 %v4108
      %v4110 = vpop.xlane.xlu0 %4109
      %v4111 = vmul.f32 %v4104, 0.032258064
      %v4112 = vmul.f32 %v4107, 0.032258064
      %v4113 = vmul.f32 %v4110, 0.032258064
      %v4114 = vrsqrt.pop %v4111
      %v4115 = vmul.f32 %v4114, %v4111
      %v4116 = vmul.f32 %v4115, %v4114
      %v4117 = vmul.f32 0.5, %v4116
      %v4118 = vsub.f32 1.5, %v4117
      %v4119 = vmul.f32 %v4114, %v4118
      %v4120 = vmul.f32 %v4111, %v4119
      %vm4121 = vcmp.eq.f32.partialorder %v4111, inf
      %v4122 = vsel %vm4121, %v4111, %v4120
      %vm4123 = vcmp.eq.f32.partialorder %v4111, 0.0
      %v4124 = vand.u32 %v4111, 2147483648
      %v4125 = vsel %vm4123, %v4124, %v4122
      %v4126 = vrsqrt.pop %v4112
      %v4127 = vmul.f32 %v4126, %v4112
      %v4128 = vmul.f32 %v4127, %v4126
      %v4129 = vmul.f32 0.5, %v4128
      %v4130 = vsub.f32 1.5, %v4129
      %v4131 = vmul.f32 %v4126, %v4130
      %v4132 = vmul.f32 %v4112, %v4131
      %vm4133 = vcmp.eq.f32.partialorder %v4112, inf
      %v4134 = vsel %vm4133, %v4112, %v4132
      %vm4135 = vcmp.eq.f32.partialorder %v4112, 0.0
      %v4136 = vand.u32 %v4112, 2147483648
      %v4137 = vsel %vm4135, %v4136, %v4134
      %v4138 = vrsqrt.pop %v4113
      %v4139 = vmul.f32 %v4138, %v4113
      %v4140 = vmul.f32 %v4139, %v4138
      %v4141 = vmul.f32 0.5, %v4140
      %v4142 = vsub.f32 1.5, %v4141
      %v4143 = vmul.f32 %v4138, %v4142
      %v4144 = vmul.f32 %v4113, %v4143
      %vm4145 = vcmp.eq.f32.partialorder %v4113, inf
      %v4146 = vsel %vm4145, %v4113, %v4144
      %vm4147 = vcmp.eq.f32.partialorder %v4113, 0.0
      %v4148 = vand.u32 %v4113, 2147483648
      %v4149 = vsel %vm4147, %v4148, %v4146
      %v4150 = vmul.f32 %v980, %v4096
      %v4151 = vmul.f32 %v980, %v4097
      %v4152 = vmul.f32 %v980, %v4098
      %v4153 = vadd.f32 %v4125, 1e-06
      %v4154 = vadd.f32 %v4137, 1e-06
      %v4155 = vadd.f32 %v4149, 1e-06
      %v4156 = vrcp.pop %v4153
      %v4157 = vmul.f32 %v4153, %v4156
      %v4158 = vsub.f32 1.0, %v4157
      %v4159 = vmul.f32 %v4156, %v4158
      %v4160 = vadd.f32 %v4156, %v4159
      %vm4161 = vweird.f32 %v4153
      %vm4162 = vweird.f32 %v4156
      %vm4163 = vmor %vm4161, %vm4162
      %v4164 = vsel %vm4163, %v4156, %v4160
      %v4165 = vand.u32 2147483647, %v4153
      %vm4166 = vcmp.eq.f32.partialorder %v4165, 8.507059e+37
      %v4167 = vand.u32 %v4153, 2147483648
      %v4168 = vor.u32 1.1754944e-38, %v4167
      %v4169 = vsel %vm4166, %v4168, %v4164
      %v4170 = vmul.f32 %v4150, %v4169
      %v4171 = vrcp.pop %v4154
      %v4172 = vmul.f32 %v4154, %v4171
      %v4173 = vsub.f32 1.0, %v4172
      %v4174 = vmul.f32 %v4171, %v4173
      %v4175 = vadd.f32 %v4171, %v4174
      %vm4176 = vweird.f32 %v4154
      %vm4177 = vweird.f32 %v4171
      %vm4178 = vmor %vm4176, %vm4177
      %v4179 = vsel %vm4178, %v4171, %v4175
      %v4180 = vand.u32 2147483647, %v4154
      %vm4181 = vcmp.eq.f32.partialorder %v4180, 8.507059e+37
      %v4182 = vand.u32 %v4154, 2147483648
      %v4183 = vor.u32 1.1754944e-38, %v4182
      %v4184 = vsel %vm4181, %v4183, %v4179
      %v4185 = vmul.f32 %v4151, %v4184
      %v4186 = vrcp.pop %v4155
      %v4187 = vmul.f32 %v4155, %v4186
      %v4188 = vsub.f32 1.0, %v4187
      %v4189 = vmul.f32 %v4186, %v4188
      %v4190 = vadd.f32 %v4186, %v4189
      %vm4191 = vweird.f32 %v4155
      %vm4192 = vweird.f32 %v4186
      %vm4193 = vmor %vm4191, %vm4192
      %v4194 = vsel %vm4193, %v4186, %v4190
      %v4195 = vand.u32 2147483647, %v4155
      %vm4196 = vcmp.eq.f32.partialorder %v4195, 8.507059e+37
      %v4197 = vand.u32 %v4155, 2147483648
      %v4198 = vor.u32 1.1754944e-38, %v4197
      %v4199 = vsel %vm4196, %v4198, %v4194
      %v4200 = vmul.f32 %v4152, %v4199
      %v4201 = vadd.f32 %v4170, %v1032
      %v4202 = vadd.f32 %v4185, %v1032
      %v4203 = vadd.f32 %v4200, %v1032
      %v4204 = vmax.f32 %v4201, 0.0
      %v4205 = vmax.f32 %v4202, 0.0
      %v4206 = vmax.f32 %v4203, 0.0
      %4207 = vst.msk [vmem:[%s251 + $0x90] sm:$0xff] %vm332, %v4204
      %4208 = vst.msk [vmem:[%s251 + $0x98] sm:$0xff] %vm332, %v4205
      %4209 = vst.msk [vmem:[%s251 + $0xa0] sm:$0xff] %vm332, %v4206
      %v4210 = vmax.f32 %v486, 0.0
      %v4211 = vmax.f32 %v489, 0.0
      %v4212 = vmax.f32 %v492, 0.0
      %4216 = vrot.lane.b32.xlu0 %v4210, 96
      %v4217 = vpop.permute.xlu0 %4216
      %4218 = vrot.lane.b32.xlu0 %v4211, 96
      %v4219 = vpop.permute.xlu0 %4218
      %4220 = vrot.lane.b32.xlu0 %v4212, 96
      %v4221 = vpop.permute.xlu0 %4220
      %v4222 = vsel %vm514, %v4217, 0
      %v4224 = vsel %vm514, %v4219, 0
      %v4226 = vsel %vm514, %v4221, 0
      %4228 = vmatpush.msra.mxu0 0.0
      %4229 = vmatpush.msra.mxu0 0.0
      %4230 = vmatpush.msra.mxu0 0.0
      %4231 = vmatpush.msra.mxu0 0.0
      %4232 = vmatpush.msra.mxu0 0.0
      %4233 = vmatpush.msra.mxu0 0.0
      %4234 = vmatpush.msra.mxu0 0.0
      %4235 = vmatpush.msra.mxu0 0.0
      %4236 = vmatpush.msra.mxu0 0.0
      %4237 = vmatpush.msra.mxu0 0.0
      %4238 = vmatpush.msra.mxu0 0.0
      %4239 = vmatpush.msra.mxu0 0.0
      %4240 = vmatpush.msra.mxu0 0.0
      %4241 = vmatpush.msra.mxu0 0.0
      %4242 = vmatpush.msra.mxu0 0.0
      %4243 = vmatpush.msra.mxu0 %v494
      %4244 = vmatmul.f32.gmra.mxu0 %v4222
      %v4245 = vpop.f32.mrf.mxu0
      %v4246 = vadd.f32 0.0, %v4245
      %4247 = vmatmul.f32.gmra.mxu0 %v4224
      %v4248 = vpop.f32.mrf.mxu0
      %v4249 = vadd.f32 0.0, %v4248
      %4250 = vmatmul.f32.gmra.mxu0 %v4226
      %v4251 = vpop.f32.mrf.mxu0
      %v4252 = vadd.f32 0.0, %v4251
      %4253 = vdwg.mxu0
      %4257 = vrot.lane.b32.xlu0 %v486, 112
      %v4258 = vpop.permute.xlu0 %4257
      %4259 = vrot.lane.b32.xlu0 %v489, 112
      %v4260 = vpop.permute.xlu0 %4259
      %4261 = vrot.lane.b32.xlu0 %v492, 112
      %v4262 = vpop.permute.xlu0 %4261
      %v4263 = vsel %vm514, %v486, 0
      %v4265 = vsel %vm514, %v489, 0
      %v4267 = vsel %vm514, %v492, 0
      %v4269 = vsel %vm514, %v4258, 0
      %v4271 = vsel %vm514, %v4260, 0
      %v4273 = vsel %vm514, %v4262, 0
      %4275 = vmatpush.xpose.msra.mxu0 0.0
      %4276 = vmatpush.xpose.msra.mxu0 0.0
      %4277 = vmatpush.xpose.msra.mxu0 0.0
      %4278 = vmatpush.xpose.msra.mxu0 0.0
      %4279 = vmatpush.xpose.msra.mxu0 0.0
      %4280 = vmatpush.xpose.msra.mxu0 0.0
      %4281 = vmatpush.xpose.msra.mxu0 0.0
      %4282 = vmatpush.xpose.msra.mxu0 0.0
      %4283 = vmatpush.xpose.msra.mxu0 0.0
      %4284 = vmatpush.xpose.msra.mxu0 0.0
      %4285 = vmatpush.xpose.msra.mxu0 0.0
      %4286 = vmatpush.xpose.msra.mxu0 0.0
      %4287 = vmatpush.xpose.msra.mxu0 0.0
      %4288 = vmatpush.xpose.msra.mxu0 %v4273
      %4289 = vmatpush.xpose.msra.mxu0 %v4271
      %4290 = vmatpush.xpose.msra.mxu0 %v4269
      %4291 = vmatmul.f32.gmra.mxu0 %v4263
      %v4292 = vpop.f32.mrf.mxu0
      %v4293 = vadd.f32 0.0, %v4292
      %4294 = vmatmul.f32.gmra.mxu0 %v4265
      %v4295 = vpop.f32.mrf.mxu0
      %v4296 = vadd.f32 0.0, %v4295
      %4297 = vmatmul.f32.gmra.mxu0 %v4267
      %v4298 = vpop.f32.mrf.mxu0
      %v4299 = vadd.f32 0.0, %v4298
      %4300 = vdwg.mxu0
      %v4301 = vsel %vm501, -9e+15, %v4293
      %v4302 = vsel %vm501, -9e+15, %v4296
      %v4303 = vsel %vm501, -9e+15, %v4299
      %v4304 = vsel %vm597, %v4301, -inf
      %4305 = vmax.xlane.f32.xlu0 %v4304
      %v4306 = vpop.xlane.xlu0 %4305
      %v4307 = vsel %vm597, %v4302, -inf
      %4308 = vmax.xlane.f32.xlu0 %v4307
      %v4309 = vpop.xlane.xlu0 %4308
      %v4310 = vsel %vm597, %v4303, -inf
      %4311 = vmax.xlane.f32.xlu0 %v4310
      %v4312 = vpop.xlane.xlu0 %4311
      %v4313 = vsub.f32 %v4301, %v4306
      %v4314 = vsub.f32 %v4302, %v4309
      %v4315 = vsub.f32 %v4303, %v4312
      %v4316 = vmul.f32 %v4313, 1.442695
      %v4317 = vpow.pop %v4316
      %v4318 = vmul.f32 %v4314, 1.442695
      %v4319 = vpow.pop %v4318
      %v4320 = vmul.f32 %v4315, 1.442695
      %v4321 = vpow.pop %v4320
      %v4322 = vsel %vm597, %v4317, 0.0
      %4323 = vadd.xlane.f32.xlu0 %v4322
      %v4324 = vpop.xlane.xlu0 %4323
      %v4325 = vsel %vm597, %v4319, 0.0
      %4326 = vadd.xlane.f32.xlu0 %v4325
      %v4327 = vpop.xlane.xlu0 %4326
      %v4328 = vsel %vm597, %v4321, 0.0
      %4329 = vadd.xlane.f32.xlu0 %v4328
      %v4330 = vpop.xlane.xlu0 %4329
      %v4331 = vrcp.pop %v4324
      %v4332 = vmul.f32 %v4324, %v4331
      %v4333 = vsub.f32 1.0, %v4332
      %v4334 = vmul.f32 %v4331, %v4333
      %v4335 = vadd.f32 %v4331, %v4334
      %vm4336 = vweird.f32 %v4324
      %vm4337 = vweird.f32 %v4331
      %vm4338 = vmor %vm4336, %vm4337
      %v4339 = vsel %vm4338, %v4331, %v4335
      %v4340 = vand.u32 2147483647, %v4324
      %vm4341 = vcmp.eq.f32.partialorder %v4340, 8.507059e+37
      %v4342 = vand.u32 %v4324, 2147483648
      %v4343 = vor.u32 1.1754944e-38, %v4342
      %v4344 = vsel %vm4341, %v4343, %v4339
      %v4345 = vrcp.pop %v4327
      %v4346 = vmul.f32 %v4327, %v4345
      %v4347 = vsub.f32 1.0, %v4346
      %v4348 = vmul.f32 %v4345, %v4347
      %v4349 = vadd.f32 %v4345, %v4348
      %vm4350 = vweird.f32 %v4327
      %vm4351 = vweird.f32 %v4345
      %vm4352 = vmor %vm4350, %vm4351
      %v4353 = vsel %vm4352, %v4345, %v4349
      %v4354 = vand.u32 2147483647, %v4327
      %vm4355 = vcmp.eq.f32.partialorder %v4354, 8.507059e+37
      %v4356 = vand.u32 %v4327, 2147483648
      %v4357 = vor.u32 1.1754944e-38, %v4356
      %v4358 = vsel %vm4355, %v4357, %v4353
      %v4359 = vrcp.pop %v4330
      %v4360 = vmul.f32 %v4330, %v4359
      %v4361 = vsub.f32 1.0, %v4360
      %v4362 = vmul.f32 %v4359, %v4361
      %v4363 = vadd.f32 %v4359, %v4362
      %vm4364 = vweird.f32 %v4330
      %vm4365 = vweird.f32 %v4359
      %vm4366 = vmor %vm4364, %vm4365
      %v4367 = vsel %vm4366, %v4359, %v4363
      %v4368 = vand.u32 2147483647, %v4330
      %vm4369 = vcmp.eq.f32.partialorder %v4368, 8.507059e+37
      %v4370 = vand.u32 %v4330, 2147483648
      %v4371 = vor.u32 1.1754944e-38, %v4370
      %v4372 = vsel %vm4369, %v4371, %v4367
      %v4373 = vmul.f32 %v4317, %v4344
      %v4374 = vmul.f32 %v4319, %v4358
      %v4375 = vmul.f32 %v4321, %v4372
      %4376 = vrot.lane.b32.xlu0 %v4210, 88
      %v4377 = vpop.permute.xlu0 %4376
      %4378 = vrot.lane.b32.xlu0 %v4211, 88
      %v4379 = vpop.permute.xlu0 %4378
      %4380 = vrot.lane.b32.xlu0 %v4212, 88
      %v4381 = vpop.permute.xlu0 %4380
      %v4382 = vsel %vm514, %v4377, 0
      %v4384 = vsel %vm514, %v4379, 0
      %v4386 = vsel %vm514, %v4381, 0
      %4388 = vmatpush.msra.mxu0 0.0
      %4389 = vmatpush.msra.mxu0 0.0
      %4390 = vmatpush.msra.mxu0 0.0
      %4391 = vmatpush.msra.mxu0 0.0
      %4392 = vmatpush.msra.mxu0 0.0
      %4393 = vmatpush.msra.mxu0 0.0
      %4394 = vmatpush.msra.mxu0 0.0
      %4395 = vmatpush.msra.mxu0 0.0
      %4396 = vmatpush.msra.mxu0 0.0
      %4397 = vmatpush.msra.mxu0 0.0
      %4398 = vmatpush.msra.mxu0 0.0
      %4399 = vmatpush.msra.mxu0 0.0
      %4400 = vmatpush.msra.mxu0 0.0
      %4401 = vmatpush.msra.mxu0 0.0
      %4402 = vmatpush.msra.mxu0 0.0
      %4403 = vmatpush.msra.mxu0 %v495
      %4404 = vmatmul.f32.gmra.mxu0 %v4382
      %v4405 = vpop.f32.mrf.mxu0
      %v4406 = vadd.f32 0.0, %v4405
      %4407 = vmatmul.f32.gmra.mxu0 %v4384
      %v4408 = vpop.f32.mrf.mxu0
      %v4409 = vadd.f32 0.0, %v4408
      %4410 = vmatmul.f32.gmra.mxu0 %v4386
      %v4411 = vpop.f32.mrf.mxu0
      %v4412 = vadd.f32 0.0, %v4411
      %4413 = vdwg.mxu0
      %4414 = vrot.lane.b32.xlu0 %v486, 120
      %v4415 = vpop.permute.xlu0 %4414
      %4416 = vrot.lane.b32.xlu0 %v489, 120
      %v4417 = vpop.permute.xlu0 %4416
      %4418 = vrot.lane.b32.xlu0 %v492, 120
      %v4419 = vpop.permute.xlu0 %4418
      %4420 = vrot.lane.b32.xlu0 %v486, 104
      %v4421 = vpop.permute.xlu0 %4420
      %4422 = vrot.lane.b32.xlu0 %v489, 104
      %v4423 = vpop.permute.xlu0 %4422
      %4424 = vrot.lane.b32.xlu0 %v492, 104
      %v4425 = vpop.permute.xlu0 %4424
      %v4426 = vsel %vm514, %v4415, 0
      %v4428 = vsel %vm514, %v4417, 0
      %v4430 = vsel %vm514, %v4419, 0
      %v4432 = vsel %vm514, %v4421, 0
      %v4434 = vsel %vm514, %v4423, 0
      %v4436 = vsel %vm514, %v4425, 0
      %4438 = vmatpush.xpose.msra.mxu0 0.0
      %4439 = vmatpush.xpose.msra.mxu0 0.0
      %4440 = vmatpush.xpose.msra.mxu0 0.0
      %4441 = vmatpush.xpose.msra.mxu0 0.0
      %4442 = vmatpush.xpose.msra.mxu0 0.0
      %4443 = vmatpush.xpose.msra.mxu0 0.0
      %4444 = vmatpush.xpose.msra.mxu0 0.0
      %4445 = vmatpush.xpose.msra.mxu0 0.0
      %4446 = vmatpush.xpose.msra.mxu0 0.0
      %4447 = vmatpush.xpose.msra.mxu0 0.0
      %4448 = vmatpush.xpose.msra.mxu0 0.0
      %4449 = vmatpush.xpose.msra.mxu0 0.0
      %4450 = vmatpush.xpose.msra.mxu0 0.0
      %4451 = vmatpush.xpose.msra.mxu0 %v4436
      %4452 = vmatpush.xpose.msra.mxu0 %v4434
      %4453 = vmatpush.xpose.msra.mxu0 %v4432
      %4454 = vmatmul.f32.gmra.mxu0 %v4426
      %v4455 = vpop.f32.mrf.mxu0
      %v4456 = vadd.f32 0.0, %v4455
      %4457 = vmatmul.f32.gmra.mxu0 %v4428
      %v4458 = vpop.f32.mrf.mxu0
      %v4459 = vadd.f32 0.0, %v4458
      %4460 = vmatmul.f32.gmra.mxu0 %v4430
      %v4461 = vpop.f32.mrf.mxu0
      %v4462 = vadd.f32 0.0, %v4461
      %4463 = vdwg.mxu0
      %v4464 = vsel %vm501, -9e+15, %v4456
      %v4465 = vsel %vm501, -9e+15, %v4459
      %v4466 = vsel %vm501, -9e+15, %v4462
      %v4467 = vsel %vm597, %v4464, -inf
      %4468 = vmax.xlane.f32.xlu0 %v4467
      %v4469 = vpop.xlane.xlu0 %4468
      %v4470 = vsel %vm597, %v4465, -inf
      %4471 = vmax.xlane.f32.xlu0 %v4470
      %v4472 = vpop.xlane.xlu0 %4471
      %v4473 = vsel %vm597, %v4466, -inf
      %4474 = vmax.xlane.f32.xlu0 %v4473
      %v4475 = vpop.xlane.xlu0 %4474
      %v4476 = vsub.f32 %v4464, %v4469
      %v4477 = vsub.f32 %v4465, %v4472
      %v4478 = vsub.f32 %v4466, %v4475
      %v4479 = vmul.f32 %v4476, 1.442695
      %v4480 = vpow.pop %v4479
      %v4481 = vmul.f32 %v4477, 1.442695
      %v4482 = vpow.pop %v4481
      %v4483 = vmul.f32 %v4478, 1.442695
      %v4484 = vpow.pop %v4483
      %v4485 = vsel %vm597, %v4480, 0.0
      %4486 = vadd.xlane.f32.xlu0 %v4485
      %v4487 = vpop.xlane.xlu0 %4486
      %v4488 = vsel %vm597, %v4482, 0.0
      %4489 = vadd.xlane.f32.xlu0 %v4488
      %v4490 = vpop.xlane.xlu0 %4489
      %v4491 = vsel %vm597, %v4484, 0.0
      %4492 = vadd.xlane.f32.xlu0 %v4491
      %v4493 = vpop.xlane.xlu0 %4492
      %v4494 = vrcp.pop %v4487
      %v4495 = vmul.f32 %v4487, %v4494
      %v4496 = vsub.f32 1.0, %v4495
      %v4497 = vmul.f32 %v4494, %v4496
      %v4498 = vadd.f32 %v4494, %v4497
      %vm4499 = vweird.f32 %v4487
      %vm4500 = vweird.f32 %v4494
      %vm4501 = vmor %vm4499, %vm4500
      %v4502 = vsel %vm4501, %v4494, %v4498
      %v4503 = vand.u32 2147483647, %v4487
      %vm4504 = vcmp.eq.f32.partialorder %v4503, 8.507059e+37
      %v4505 = vand.u32 %v4487, 2147483648
      %v4506 = vor.u32 1.1754944e-38, %v4505
      %v4507 = vsel %vm4504, %v4506, %v4502
      %v4508 = vrcp.pop %v4490
      %v4509 = vmul.f32 %v4490, %v4508
      %v4510 = vsub.f32 1.0, %v4509
      %v4511 = vmul.f32 %v4508, %v4510
      %v4512 = vadd.f32 %v4508, %v4511
      %vm4513 = vweird.f32 %v4490
      %vm4514 = vweird.f32 %v4508
      %vm4515 = vmor %vm4513, %vm4514
      %v4516 = vsel %vm4515, %v4508, %v4512
      %v4517 = vand.u32 2147483647, %v4490
      %vm4518 = vcmp.eq.f32.partialorder %v4517, 8.507059e+37
      %v4519 = vand.u32 %v4490, 2147483648
      %v4520 = vor.u32 1.1754944e-38, %v4519
      %v4521 = vsel %vm4518, %v4520, %v4516
      %v4522 = vrcp.pop %v4493
      %v4523 = vmul.f32 %v4493, %v4522
      %v4524 = vsub.f32 1.0, %v4523
      %v4525 = vmul.f32 %v4522, %v4524
      %v4526 = vadd.f32 %v4522, %v4525
      %vm4527 = vweird.f32 %v4493
      %vm4528 = vweird.f32 %v4522
      %vm4529 = vmor %vm4527, %vm4528
      %v4530 = vsel %vm4529, %v4522, %v4526
      %v4531 = vand.u32 2147483647, %v4493
      %vm4532 = vcmp.eq.f32.partialorder %v4531, 8.507059e+37
      %v4533 = vand.u32 %v4493, 2147483648
      %v4534 = vor.u32 1.1754944e-38, %v4533
      %v4535 = vsel %vm4532, %v4534, %v4530
      %v4536 = vmul.f32 %v4480, %v4507
      %v4537 = vmul.f32 %v4482, %v4521
      %v4538 = vmul.f32 %v4484, %v4535
      %v4540 = vsel %vm597, %v4536, 0
      %v4543 = vsel %vm597, %v4537, 0
      %v4546 = vsel %vm597, %v4538, 0
      %4548 = vmatpush.msra.mxu0 0.0
      %4549 = vmatpush.msra.mxu0 0.0
      %4550 = vmatpush.msra.mxu0 0.0
      %4551 = vmatpush.msra.mxu0 0.0
      %4552 = vmatpush.msra.mxu0 0.0
      %4553 = vmatpush.msra.mxu0 0.0
      %4554 = vmatpush.msra.mxu0 0.0
      %4555 = vmatpush.msra.mxu0 0.0
      %4556 = vmatpush.msra.mxu0 0.0
      %4557 = vmatpush.msra.mxu0 0.0
      %4558 = vmatpush.msra.mxu0 0.0
      %4559 = vmatpush.msra.mxu0 0.0
      %4560 = vmatpush.msra.mxu0 0.0
      %4561 = vmatpush.msra.mxu0 %v4412
      %4562 = vmatpush.msra.mxu0 %v4409
      %4563 = vmatpush.msra.mxu0 %v4406
      %4564 = vmatmul.f32.gmra.mxu0 %v4540
      %v4565 = vpop.f32.mrf.mxu0
      %v4566 = vadd.f32 0.0, %v4565
      %4567 = vmatmul.f32.gmra.mxu0 %v4543
      %v4568 = vpop.f32.mrf.mxu0
      %v4569 = vadd.f32 0.0, %v4568
      %4570 = vmatmul.f32.gmra.mxu0 %v4546
      %v4571 = vpop.f32.mrf.mxu0
      %v4572 = vadd.f32 0.0, %v4571
      %4573 = vdwg.mxu0
      %v4575 = vsel %vm597, %v4373, 0
      %v4578 = vsel %vm597, %v4374, 0
      %v4581 = vsel %vm597, %v4375, 0
      %4583 = vmatpush.msra.mxu0 0.0
      %4584 = vmatpush.msra.mxu0 0.0
      %4585 = vmatpush.msra.mxu0 0.0
      %4586 = vmatpush.msra.mxu0 0.0
      %4587 = vmatpush.msra.mxu0 0.0
      %4588 = vmatpush.msra.mxu0 0.0
      %4589 = vmatpush.msra.mxu0 0.0
      %4590 = vmatpush.msra.mxu0 0.0
      %4591 = vmatpush.msra.mxu0 0.0
      %4592 = vmatpush.msra.mxu0 0.0
      %4593 = vmatpush.msra.mxu0 0.0
      %4594 = vmatpush.msra.mxu0 0.0
      %4595 = vmatpush.msra.mxu0 0.0
      %4596 = vmatpush.msra.mxu0 %v4252
      %4597 = vmatpush.msra.mxu0 %v4249
      %4598 = vmatpush.msra.mxu0 %v4246
      %4599 = vmatmul.f32.gmra.mxu0 %v4575
      %v4600 = vpop.f32.mrf.mxu0
      %v4601 = vadd.f32 %v4566, %v4600
      %4602 = vmatmul.f32.gmra.mxu0 %v4578
      %v4603 = vpop.f32.mrf.mxu0
      %v4604 = vadd.f32 %v4569, %v4603
      %4605 = vmatmul.f32.gmra.mxu0 %v4581
      %v4606 = vpop.f32.mrf.mxu0
      %v4607 = vadd.f32 %v4572, %v4606
      %4608 = vdwg.mxu0
      %v4609 = vadd.f32 %v4601, %v903
      %v4610 = vadd.f32 %v4604, %v903
      %v4611 = vadd.f32 %v4607, %v903
      %v4612 = vsel %vm332, %v4609, 0.0
      %4613 = vadd.xlane.f32.xlu0 %v4612
      %v4614 = vpop.xlane.xlu0 %4613
      %v4615 = vsel %vm332, %v4610, 0.0
      %4616 = vadd.xlane.f32.xlu0 %v4615
      %v4617 = vpop.xlane.xlu0 %4616
      %v4618 = vsel %vm332, %v4611, 0.0
      %4619 = vadd.xlane.f32.xlu0 %v4618
      %v4620 = vpop.xlane.xlu0 %4619
      %v4621 = vmul.f32 %v4614, %v922
      %v4622 = vmul.f32 %v4617, %v922
      %v4623 = vmul.f32 %v4620, %v922
      %v4624 = vsub.f32 %v4609, %v4621
      %v4625 = vsub.f32 %v4610, %v4622
      %v4626 = vsub.f32 %v4611, %v4623
      %v4627 = vmul.f32 %v4624, %v4624
      %v4628 = vmul.f32 %v4625, %v4625
      %v4629 = vmul.f32 %v4626, %v4626
      %v4630 = vsel %vm332, %v4627, 0.0
      %4631 = vadd.xlane.f32.xlu0 %v4630
      %v4632 = vpop.xlane.xlu0 %4631
      %v4633 = vsel %vm332, %v4628, 0.0
      %4634 = vadd.xlane.f32.xlu0 %v4633
      %v4635 = vpop.xlane.xlu0 %4634
      %v4636 = vsel %vm332, %v4629, 0.0
      %4637 = vadd.xlane.f32.xlu0 %v4636
      %v4638 = vpop.xlane.xlu0 %4637
      %v4639 = vmul.f32 %v4632, 0.032258064
      %v4640 = vmul.f32 %v4635, 0.032258064
      %v4641 = vmul.f32 %v4638, 0.032258064
      %v4642 = vrsqrt.pop %v4639
      %v4643 = vmul.f32 %v4642, %v4639
      %v4644 = vmul.f32 %v4643, %v4642
      %v4645 = vmul.f32 0.5, %v4644
      %v4646 = vsub.f32 1.5, %v4645
      %v4647 = vmul.f32 %v4642, %v4646
      %v4648 = vmul.f32 %v4639, %v4647
      %vm4649 = vcmp.eq.f32.partialorder %v4639, inf
      %v4650 = vsel %vm4649, %v4639, %v4648
      %vm4651 = vcmp.eq.f32.partialorder %v4639, 0.0
      %v4652 = vand.u32 %v4639, 2147483648
      %v4653 = vsel %vm4651, %v4652, %v4650
      %v4654 = vrsqrt.pop %v4640
      %v4655 = vmul.f32 %v4654, %v4640
      %v4656 = vmul.f32 %v4655, %v4654
      %v4657 = vmul.f32 0.5, %v4656
      %v4658 = vsub.f32 1.5, %v4657
      %v4659 = vmul.f32 %v4654, %v4658
      %v4660 = vmul.f32 %v4640, %v4659
      %vm4661 = vcmp.eq.f32.partialorder %v4640, inf
      %v4662 = vsel %vm4661, %v4640, %v4660
      %vm4663 = vcmp.eq.f32.partialorder %v4640, 0.0
      %v4664 = vand.u32 %v4640, 2147483648
      %v4665 = vsel %vm4663, %v4664, %v4662
      %v4666 = vrsqrt.pop %v4641
      %v4667 = vmul.f32 %v4666, %v4641
      %v4668 = vmul.f32 %v4667, %v4666
      %v4669 = vmul.f32 0.5, %v4668
      %v4670 = vsub.f32 1.5, %v4669
      %v4671 = vmul.f32 %v4666, %v4670
      %v4672 = vmul.f32 %v4641, %v4671
      %vm4673 = vcmp.eq.f32.partialorder %v4641, inf
      %v4674 = vsel %vm4673, %v4641, %v4672
      %vm4675 = vcmp.eq.f32.partialorder %v4641, 0.0
      %v4676 = vand.u32 %v4641, 2147483648
      %v4677 = vsel %vm4675, %v4676, %v4674
      %v4678 = vmul.f32 %v980, %v4624
      %v4679 = vmul.f32 %v980, %v4625
      %v4680 = vmul.f32 %v980, %v4626
      %v4681 = vadd.f32 %v4653, 1e-06
      %v4682 = vadd.f32 %v4665, 1e-06
      %v4683 = vadd.f32 %v4677, 1e-06
      %v4684 = vrcp.pop %v4681
      %v4685 = vmul.f32 %v4681, %v4684
      %v4686 = vsub.f32 1.0, %v4685
      %v4687 = vmul.f32 %v4684, %v4686
      %v4688 = vadd.f32 %v4684, %v4687
      %vm4689 = vweird.f32 %v4681
      %vm4690 = vweird.f32 %v4684
      %vm4691 = vmor %vm4689, %vm4690
      %v4692 = vsel %vm4691, %v4684, %v4688
      %v4693 = vand.u32 2147483647, %v4681
      %vm4694 = vcmp.eq.f32.partialorder %v4693, 8.507059e+37
      %v4695 = vand.u32 %v4681, 2147483648
      %v4696 = vor.u32 1.1754944e-38, %v4695
      %v4697 = vsel %vm4694, %v4696, %v4692
      %v4698 = vmul.f32 %v4678, %v4697
      %v4699 = vrcp.pop %v4682
      %v4700 = vmul.f32 %v4682, %v4699
      %v4701 = vsub.f32 1.0, %v4700
      %v4702 = vmul.f32 %v4699, %v4701
      %v4703 = vadd.f32 %v4699, %v4702
      %vm4704 = vweird.f32 %v4682
      %vm4705 = vweird.f32 %v4699
      %vm4706 = vmor %vm4704, %vm4705
      %v4707 = vsel %vm4706, %v4699, %v4703
      %v4708 = vand.u32 2147483647, %v4682
      %vm4709 = vcmp.eq.f32.partialorder %v4708, 8.507059e+37
      %v4710 = vand.u32 %v4682, 2147483648
      %v4711 = vor.u32 1.1754944e-38, %v4710
      %v4712 = vsel %vm4709, %v4711, %v4707
      %v4713 = vmul.f32 %v4679, %v4712
      %v4714 = vrcp.pop %v4683
      %v4715 = vmul.f32 %v4683, %v4714
      %v4716 = vsub.f32 1.0, %v4715
      %v4717 = vmul.f32 %v4714, %v4716
      %v4718 = vadd.f32 %v4714, %v4717
      %vm4719 = vweird.f32 %v4683
      %vm4720 = vweird.f32 %v4714
      %vm4721 = vmor %vm4719, %vm4720
      %v4722 = vsel %vm4721, %v4714, %v4718
      %v4723 = vand.u32 2147483647, %v4683
      %vm4724 = vcmp.eq.f32.partialorder %v4723, 8.507059e+37
      %v4725 = vand.u32 %v4683, 2147483648
      %v4726 = vor.u32 1.1754944e-38, %v4725
      %v4727 = vsel %vm4724, %v4726, %v4722
      %v4728 = vmul.f32 %v4680, %v4727
      %v4729 = vadd.f32 %v4698, %v1032
      %v4730 = vadd.f32 %v4713, %v1032
      %v4731 = vadd.f32 %v4728, %v1032
      %v4732 = vmax.f32 %v4729, 0.0
      %v4733 = vmax.f32 %v4730, 0.0
      %v4734 = vmax.f32 %v4731, 0.0
      %4735 = vst.msk [vmem:[%s251 + $0xa8] sm:$0xff] %vm332, %v4732
      %4736 = vst.msk [vmem:[%s251 + $0xb0] sm:$0xff] %vm332, %v4733
      %4737 = vst.msk [vmem:[%s251 + $0xb8] sm:$0xff] %vm332, %v4734
      %p4738 = scmp.lt.s32.totalorder %s17, 1
      %s4739 = scalar_select %p4738, %s17, 1
      %s4740 = smul.addr %s4739, 24
      %s4741 = smul.addr %s4740, 8
      %s4742 = scalar_lea.vmem %s6, %s4741
      // Predicated region
      $region45: #{_transformer_layer.1} parent=43 // pred_check
        %p4743 = pneg %p166
      $region46: #{_transformer_layer.1} parent=43 // pred_check_branch
        %4745 = sbr.rel (%p4743) target = $region48
      $region47: #{_transformer_layer.1} parent=43 // pred_region
        _
      $region48: #{_transformer_layer.1} parent=43 // pred_fallthru
        _
    $region44: #{_transformer_layer.1} parent=5 // pred_fallthru
      _
    %p4746 = scmp.le.s32.totalorder 2, %s12
    // Predicated region
    $region49: #{_transformer_layer.1} parent=5 // pred_check
      %p4747 = pneg %p4746
    $region50: #{_transformer_layer.1} parent=5 // pred_check_branch
      %4749 = sbr.rel (%p4747) target = $region52
    $region51: #{_transformer_layer.1} parent=5 // pred_region
      %s4750 = ssub.s32 %s12, 2
      // Predicated region
      $region53: #{_transformer_layer.1} parent=51 // pred_check
        %p4751 = pneg %p172
      $region54: #{_transformer_layer.1} parent=51 // pred_check_branch
        %4753 = sbr.rel (%p4751) target = $region56
      $region55: #{_transformer_layer.1} parent=51 // pred_region
        %p4754 = scmp.lt.s32.totalorder %s18, 1
        %s4755 = scalar_select %p4754, %s18, 1
        %s4756 = smul.addr %s4755, 24
        %s4757 = smul.addr %s4756, 8
        %s4758 = scalar_lea.vmem %s6, %s4757
      $region56: #{_transformer_layer.1} parent=51 // pred_fallthru
        _
    $region52: #{_transformer_layer.1} parent=5 // pred_fallthru
      _
  $region6: #{_transformer_layer.1} parent=0 // loop_footer
    %s16 = sadd.s32 1, %s12
  $region7: #{_transformer_layer.1} parent=0 // loop_footer_branch
    %11 = sbr.rel target = $region3
  $region8: #{_transformer_layer.1} parent=0 // loop_exit
    _

</llo_original>
